<compile_context>
chip_gen: v6e
topology: v6e:2x2x1
jax: 0.10.0
libtpu: 0.0.40
codegen_flags: <defaults>
</compile_context>

<pallas_src>
import functools
import math

import jax
import jax.numpy as jnp
from jax.experimental import pallas as pl
from jax.experimental.pallas import tpu as pltpu  # noqa: F401  (TPU backend assumed)

# ----------------------------- model config ---------------------------------
D_MODEL = 32
NUM_HEADS = 4
D_K = D_MODEL // NUM_HEADS
DIM_FF = 64
NUM_LAYERS = 2
LN_EPS = 1e-5          # PyTorch nn.LayerNorm default

# ------------------------- packed-slab column layout -------------------------
# Weight slab: (NUM_LAYERS, D_MODEL, W_SLAB_W). Every per-layer weight matrix
# with D_MODEL rows is concatenated along the column axis; ff w2 is stored
# TRANSPOSED so it fits the same 32-row slab (consumed via dot_general that
# contracts lane-against-lane, i.e. no in-kernel transpose).
WC_SA_QKV = 0                        # (D, 3D)  fused self-attn Q|K|V
WC_SA_O = WC_SA_QKV + 3 * D_MODEL    # (D, D)
WC_CA_Q = WC_SA_O + D_MODEL          # (D, D)
WC_CA_KV = WC_CA_Q + D_MODEL         # (D, 2D)  fused cross-attn K|V
WC_CA_O = WC_CA_KV + 2 * D_MODEL     # (D, D)
WC_FF1 = WC_CA_O + D_MODEL           # (D, FF)
WC_FF2T = WC_FF1 + DIM_FF            # (D, FF)  = w2^T
W_SLAB_W = WC_FF2T + DIM_FF          # 384

# Vector slab: (NUM_LAYERS + 1, 1, VEC_W). All biases / LayerNorm params of a
# layer in one row; row NUM_LAYERS holds the final LayerNorm gamma|beta.
VC_SA_BQKV = 0
VC_SA_BO = VC_SA_BQKV + 3 * D_MODEL
VC_SA_G = VC_SA_BO + D_MODEL
VC_SA_B = VC_SA_G + D_MODEL
VC_CA_BQ = VC_SA_B + D_MODEL
VC_CA_BKV = VC_CA_BQ + D_MODEL
VC_CA_BO = VC_CA_BKV + 2 * D_MODEL
VC_CA_G = VC_CA_BO + D_MODEL
VC_CA_B = VC_CA_G + D_MODEL
VC_FF_B1 = VC_CA_B + D_MODEL
VC_FF_B2 = VC_FF_B1 + DIM_FF
VC_FF_G = VC_FF_B2 + D_MODEL
VC_FF_B = VC_FF_G + D_MODEL
VEC_W = VC_FF_B + D_MODEL            # 544


# ------------------------- in-kernel helpers (traced) -------------------------
def _layernorm(y, gamma, beta):
    # y: (M, D), gamma/beta: (1, D)
    mu = jnp.mean(y, axis=-1, keepdims=True)
    var = jnp.mean((y - mu) ** 2, axis=-1, keepdims=True)
    return (y - mu) * jax.lax.rsqrt(var + LN_EPS) * gamma + beta


def _head_lane_mask(m):
    """(NUM_HEADS*m, D) 0/1 mask: sublane block h keeps only head-h lanes."""
    rows = NUM_HEADS * m
    ri = jax.lax.broadcasted_iota(jnp.int32, (rows, D_MODEL), 0)
    ci = jax.lax.broadcasted_iota(jnp.int32, (rows, D_MODEL), 1)
    keep = jnp.zeros((rows, D_MODEL), jnp.bool_)
    for h in range(NUM_HEADS):
        keep = keep | ((ri >= h * m) & (ri < (h + 1) * m)
                       & (ci >= h * D_K) & (ci < (h + 1) * D_K))
    return jnp.where(keep, 1.0, 0.0).astype(jnp.float32)


def _score_mask(n_batch, sq, sk):
    """Additive mask over head-stacked scores: 0 where head AND folded batch
    match, -1e30 elsewhere (block-diagonal over heads and batch)."""
    mq, mk = n_batch * sq, n_batch * sk
    rows, cols = NUM_HEADS * mq, NUM_HEADS * mk
    ri = jax.lax.broadcasted_iota(jnp.int32, (rows, cols), 0)
    ci = jax.lax.broadcasted_iota(jnp.int32, (rows, cols), 1)
    keep = jnp.zeros((rows, cols), jnp.bool_)
    for h in range(NUM_HEADS):
        for b in range(n_batch):
            r0 = h * mq + b * sq
            c0 = h * mk + b * sk
            keep = keep | ((ri >= r0) & (ri < r0 + sq)
                           & (ci >= c0) & (ci < c0 + sk))
    return jnp.where(keep, 0.0, -1e30).astype(jnp.float32)


def _attn_core(q, k, v, wo, bo, q_hmask, kv_hmask, score_mask):
    """All-head (and all folded-batch) attention in 3 MXU ops.

    q: (Mq, D); k, v: (Mk, D); scale already folded into q. Heads are stacked
    along the sublane axis via replication + lane masks; `score_mask` keeps
    heads/batches independent; heads are merged back by summing sublane blocks
    (row block h of ctx_e is exactly zero outside head-h lanes).
    """
    mq = q.shape[0]
    q_e = jnp.concatenate([q] * NUM_HEADS, axis=0) * q_hmask        # (H*Mq, D)
    k_e = jnp.concatenate([k] * NUM_HEADS, axis=0) * kv_hmask       # (H*Mk, D)
    v_e = jnp.concatenate([v] * NUM_HEADS, axis=0) * kv_hmask       # (H*Mk, D)
    # q_e @ k_e^T without an explicit transpose (contract lane dim vs lane dim)
    s = jax.lax.dot_general(q_e, k_e, (((1,), (1,)), ((), ())),
                            preferred_element_type=jnp.float32)     # (H*Mq, H*Mk)
    s = s + score_mask
    s = s - jnp.max(s, axis=-1, keepdims=True)
    p = jnp.exp(s)
    p = p * pl.reciprocal(jnp.sum(p, axis=-1, keepdims=True))
    ctx_e = jnp.dot(p, v_e, preferred_element_type=jnp.float32)     # (H*Mq, D)
    ctx = ctx_e[0:mq, :]
    for h in range(1, NUM_HEADS):                                   # merge heads
        ctx = ctx + ctx_e[h * mq:(h + 1) * mq, :]
    return jnp.dot(ctx, wo, preferred_element_type=jnp.float32) + bo


# --------------------------------- kernel -------------------------------------
def decoder_kernel(tgt_ref, cond_ref, w_ref, vec_ref, out_ref,
                   *, n_batch, s_tgt, s_cond):
    """Whole decoder (all layers + final LN) in one grid step; the batch is
    folded along the sublane axis and kept independent via block-diag masks."""
    x = tgt_ref[...].astype(jnp.float32)        # (B*S_tgt, D)
    cond = cond_ref[...].astype(jnp.float32)    # (B*S_cond, D)
    mt = n_batch * s_tgt
    mc = n_batch * s_cond

    # Static masks (built once from iota, reused by both layers).
    q_hmask = _head_lane_mask(mt)
    kv_hmask_cross = _head_lane_mask(mc)
    self_mask = _score_mask(n_batch, s_tgt, s_tgt)
    cross_mask = _score_mask(n_batch, s_tgt, s_cond)

    def vec(l, off, n):
        return vec_ref[l, :, off:off + n]       # (1, n)

    for l in range(NUM_LAYERS):                 # static unroll; weights stay in VMEM
        # --- self-attention + add & norm1 (fused QKV projection) ---
        qkv = jnp.dot(x, w_ref[l, :, WC_SA_QKV:WC_SA_QKV + 3 * D_MODEL],
                      preferred_element_type=jnp.float32) + vec(l, VC_SA_BQKV, 3 * D_MODEL)
        attn = _attn_core(qkv[:, 0:D_MODEL],
                          qkv[:, D_MODEL:2 * D_MODEL],
                          qkv[:, 2 * D_MODEL:3 * D_MODEL],
                          w_ref[l, :, WC_SA_O:WC_SA_O + D_MODEL],
                          vec(l, VC_SA_BO, D_MODEL),
                          q_hmask, q_hmask, self_mask)
        x = _layernorm(x + attn, vec(l, VC_SA_G, D_MODEL), vec(l, VC_SA_B, D_MODEL))

        # --- cross-attention + add & norm2 (fused KV projection of cond) ---
        q = jnp.dot(x, w_ref[l, :, WC_CA_Q:WC_CA_Q + D_MODEL],
                    preferred_element_type=jnp.float32) + vec(l, VC_CA_BQ, D_MODEL)
        kv = jnp.dot(cond, w_ref[l, :, WC_CA_KV:WC_CA_KV + 2 * D_MODEL],
                     preferred_element_type=jnp.float32) + vec(l, VC_CA_BKV, 2 * D_MODEL)
        attn = _attn_core(q, kv[:, 0:D_MODEL], kv[:, D_MODEL:2 * D_MODEL],
                          w_ref[l, :, WC_CA_O:WC_CA_O + D_MODEL],
                          vec(l, VC_CA_BO, D_MODEL),
                          q_hmask, kv_hmask_cross, cross_mask)
        x = _layernorm(x + attn, vec(l, VC_CA_G, D_MODEL), vec(l, VC_CA_B, D_MODEL))

        # --- feed-forward + add & norm3 (dropout = identity, eval mode) ---
        h = jnp.dot(x, w_ref[l, :, WC_FF1:WC_FF1 + DIM_FF],
                    preferred_element_type=jnp.float32) + vec(l, VC_FF_B1, DIM_FF)
        h = jnp.maximum(h, 0.0)
        ff = jax.lax.dot_general(h, w_ref[l, :, WC_FF2T:WC_FF2T + DIM_FF],
                                 (((1,), (1,)), ((), ())),
                                 preferred_element_type=jnp.float32) + vec(l, VC_FF_B2, D_MODEL)
        x = _layernorm(x + ff, vec(l, VC_FF_G, D_MODEL), vec(l, VC_FF_B, D_MODEL))

    out_ref[...] = _layernorm(x, vec(NUM_LAYERS, 0, D_MODEL),
                              vec(NUM_LAYERS, D_MODEL, D_MODEL)).astype(out_ref.dtype)


# ---------------------------- parameter packing --------------------------------
def pack_params(params):
    """Consolidate all parameters into 2 slabs (operand-consolidation feedback):
      * w_slab  (L, D, W_SLAB_W): every D_MODEL-row weight matrix (ff w2 stored
        transposed); 1/sqrt(d_k) folded into Wq (exact).
      * vec_slab (L+1, 1, VEC_W): all biases + LayerNorm gamma/beta per layer;
        last row = final LayerNorm gamma|beta.
    """
    scale = 1.0 / math.sqrt(D_K)
    w_rows, v_rows = [], []
    for lp in params["layers"]:
        sa, ca, ff = lp["self_attn"], lp["cross_attn"], lp["ffn"]
        w_rows.append(jnp.concatenate([
            sa["wq"] * scale, sa["wk"], sa["wv"], sa["wo"],
            ca["wq"] * scale, ca["wk"], ca["wv"], ca["wo"],
            ff["w1"], ff["w2"].T,
        ], axis=1))                                                  # (D, 384)
        v_rows.append(jnp.concatenate([
            sa["bq"] * scale, sa["bk"], sa["bv"], sa["bo"], sa["gamma"], sa["beta"],
            ca["bq"] * scale, ca["bk"], ca["bv"], ca["bo"], ca["gamma"], ca["beta"],
            ff["b1"], ff["b2"], ff["gamma"], ff["beta"],
        ], axis=1))                                                  # (1, 544)
    v_rows.append(jnp.concatenate([
        params["final_gamma"], params["final_beta"],
        jnp.zeros((1, VEC_W - 2 * D_MODEL), jnp.float32)], axis=1))
    w_slab = jnp.stack(w_rows)                                       # (L, D, 384)
    vec_slab = jnp.stack(v_rows)                                     # (L+1, 1, 544)
    return w_slab, vec_slab


# --------------------------- fused pallas_call wrapper --------------------------
def decoder_forward(tgt, cond, params):
    B, s_tgt, d = tgt.shape
    _, s_cond, _ = cond.shape
    assert d == D_MODEL
    w_slab, vec_slab = pack_params(params)

    # Fold the batch along the sublane axis: one grid step for the whole call.
    tgt2 = tgt.reshape(B * s_tgt, d)
    cond2 = cond.reshape(B * s_cond, d)

    kernel = functools.partial(decoder_kernel,
                               n_batch=B, s_tgt=s_tgt, s_cond=s_cond)
    out2 = pl.pallas_call(
        kernel,
        out_shape=jax.ShapeDtypeStruct((B * s_tgt, d), tgt.dtype),
        grid=(1,),
        in_specs=[
            pl.BlockSpec((B * s_tgt, d), lambda i: (0, 0)),
            pl.BlockSpec((B * s_cond, d), lambda i: (0, 0)),
            pl.BlockSpec(w_slab.shape, lambda i: (0, 0, 0)),
            pl.BlockSpec(vec_slab.shape, lambda i: (0, 0, 0)),
        ],
        out_specs=pl.BlockSpec((B * s_tgt, d), lambda i: (0, 0)),
    )(tgt2, cond2, w_slab, vec_slab)
    return out2.reshape(B, s_tgt, d)


# ------------------------------ parameters ------------------------------------
def _init_linear(key, fan_in, fan_out):
    k1, k2 = jax.random.split(key)
    bound = 1.0 / math.sqrt(fan_in)
    w = jax.random.uniform(k1, (fan_in, fan_out), jnp.float32, -bound, bound)
    b = jax.random.uniform(k2, (1, fan_out), jnp.float32, -bound, bound)
    return w, b


def _init_mha(key):
    ks = jax.random.split(key, 4)
    wq, bq = _init_linear(ks[0], D_MODEL, D_MODEL)
    wk, bk = _init_linear(ks[1], D_MODEL, D_MODEL)
    wv, bv = _init_linear(ks[2], D_MODEL, D_MODEL)
    wo, bo = _init_linear(ks[3], D_MODEL, D_MODEL)
    return dict(wq=wq, bq=bq, wk=wk, bk=bk, wv=wv, bv=bv, wo=wo, bo=bo,
                gamma=jnp.ones((1, D_MODEL), jnp.float32),
                beta=jnp.zeros((1, D_MODEL), jnp.float32))


def _init_ffn(key):
    k1, k2 = jax.random.split(key)
    w1, b1 = _init_linear(k1, D_MODEL, DIM_FF)
    w2, b2 = _init_linear(k2, DIM_FF, D_MODEL)
    return dict(w1=w1, b1=b1, w2=w2, b2=b2,
                gamma=jnp.ones((1, D_MODEL), jnp.float32),
                beta=jnp.zeros((1, D_MODEL), jnp.float32))


def init_decoder_params(key):
    layers = []
    for _ in range(NUM_LAYERS):
        key, k1, k2, k3 = jax.random.split(key, 4)
        layers.append(dict(self_attn=_init_mha(k1),
                           cross_attn=_init_mha(k2),
                           ffn=_init_ffn(k3)))
    return dict(layers=layers,
                final_gamma=jnp.ones((1, D_MODEL), jnp.float32),
                final_beta=jnp.zeros((1, D_MODEL), jnp.float32))


# ------------------------ pure-JAX reference (checking) ------------------------
def _ln_ref(x, gamma, beta):
    mu = jnp.mean(x, axis=-1, keepdims=True)
    var = jnp.mean((x - mu) ** 2, axis=-1, keepdims=True)
    return (x - mu) * jax.lax.rsqrt(var + LN_EPS) * gamma + beta


def _mha_ref(q_in, kv_in, p):
    B, Sq, D = q_in.shape
    Sk = kv_in.shape[1]
    q = (q_in @ p["wq"] + p["bq"]).reshape(B, Sq, NUM_HEADS, D_K).transpose(0, 2, 1, 3)
    k = (kv_in @ p["wk"] + p["bk"]).reshape(B, Sk, NUM_HEADS, D_K).transpose(0, 2, 1, 3)
    v = (kv_in @ p["wv"] + p["bv"]).reshape(B, Sk, NUM_HEADS, D_K).transpose(0, 2, 1, 3)
    scores = jnp.einsum('bhqd,bhkd->bhqk', q, k) / math.sqrt(D_K)
    attn = jax.nn.softmax(scores, axis=-1)
    ctx = jnp.einsum('bhqk,bhkd->bhqd', attn, v).transpose(0, 2, 1, 3).reshape(B, Sq, D)
    return ctx @ p["wo"] + p["bo"]


def decoder_ref(tgt, cond, params):
    for lp in params["layers"]:
        tgt = _ln_ref(tgt + _mha_ref(tgt, tgt, lp["self_attn"]),
                      lp["self_attn"]["gamma"], lp["self_attn"]["beta"])
        tgt = _ln_ref(tgt + _mha_ref(tgt, cond, lp["cross_attn"]),
                      lp["cross_attn"]["gamma"], lp["cross_attn"]["beta"])
        fp = lp["ffn"]
        h = jnp.maximum(tgt @ fp["w1"] + fp["b1"], 0.0)
        tgt = _ln_ref(tgt + (h @ fp["w2"] + fp["b2"]), fp["gamma"], fp["beta"])
    return _ln_ref(tgt, params["final_gamma"], params["final_beta"])


# ---------------------------------- main ---------------------------------------
if __name__ == "__main__":
    key = jax.random.PRNGKey(0)
    k_params, k_tgt, k_cond = jax.random.split(key, 3)

    B, S_TGT, S_COND = 2, 8, 12
    params = init_decoder_params(k_params)
    tgt = jax.random.normal(k_tgt, (B, S_TGT, D_MODEL), jnp.float32)
    cond = jax.random.normal(k_cond, (B, S_COND, D_MODEL), jnp.float32)

    out = decoder_forward(tgt, cond, params)
    out = jax.block_until_ready(out)

    ref = decoder_ref(tgt, cond, params)
    assert out.shape == (B, S_TGT, D_MODEL)
    assert jnp.allclose(out, ref, rtol=1e-3, atol=1e-3), \
        f"max abs diff {jnp.max(jnp.abs(out - ref))}"

    print("KERNEL_OK")
</pallas_src>

<mosaic_0001>
module attributes {stable_mosaic.version = 11 : i64} {
  func.func @decoder_kernel(%arg0: i32, %arg1: memref<16x32xf32, #tpu.memory_space<vmem>>, %arg2: memref<24x32xf32, #tpu.memory_space<vmem>>, %arg3: memref<2x32x384xf32, #tpu.memory_space<vmem>>, %arg4: memref<3x1x544xf32, #tpu.memory_space<vmem>>, %arg5: memref<16x32xf32, #tpu.memory_space<vmem>>) attributes {dimension_semantics = [#tpu.dimension_semantics<arbitrary>], iteration_bounds = array<i64: 1>, scalar_prefetch = 0 : i64, scratch_operands = 0 : i64, tpu.core_type = #tpu.core_type<tc>, window_params = [{pipeline_mode = #tpu.pipeline_mode<synchronous>, transform_indices = @transform_0, window_bounds = array<i64: 16, 32>}, {pipeline_mode = #tpu.pipeline_mode<synchronous>, transform_indices = @transform_1, window_bounds = array<i64: 24, 32>}, {pipeline_mode = #tpu.pipeline_mode<synchronous>, transform_indices = @transform_2, window_bounds = array<i64: 2, 32, 384>}, {pipeline_mode = #tpu.pipeline_mode<synchronous>, transform_indices = @transform_3, window_bounds = array<i64: 3, 1, 544>}, {pipeline_mode = #tpu.pipeline_mode<synchronous>, transform_indices = @transform_4, window_bounds = array<i64: 16, 32>}]} {
    %c0 = arith.constant 0 : index
    %c0_0 = arith.constant 0 : index
    %0 = vector.load %arg1[%c0, %c0_0] : memref<16x32xf32, #tpu.memory_space<vmem>>, vector<16x32xf32>
    %c0_1 = arith.constant 0 : index
    %c0_2 = arith.constant 0 : index
    %1 = vector.load %arg2[%c0_1, %c0_2] : memref<24x32xf32, #tpu.memory_space<vmem>>, vector<24x32xf32>
    %2 = tpu.iota {dimensions = array<i32: 0>} : vector<64x32xi32>
    %3 = tpu.iota {dimensions = array<i32: 1>} : vector<64x32xi32>
    %false = arith.constant false
    %4 = vector.broadcast %false : i1 to vector<64x32xi1>
    %c0_i32 = arith.constant 0 : i32
    %5 = vector.broadcast %c0_i32 : i32 to vector<64x32xi32>
    %6 = arith.cmpi sge, %2, %5 : vector<64x32xi32>
    %c16_i32 = arith.constant 16 : i32
    %7 = vector.broadcast %c16_i32 : i32 to vector<64x32xi32>
    %8 = arith.cmpi slt, %2, %7 : vector<64x32xi32>
    %9 = arith.andi %6, %8 : vector<64x32xi1>
    %c0_i32_3 = arith.constant 0 : i32
    %10 = vector.broadcast %c0_i32_3 : i32 to vector<64x32xi32>
    %11 = arith.cmpi sge, %3, %10 : vector<64x32xi32>
    %12 = arith.andi %9, %11 : vector<64x32xi1>
    %c8_i32 = arith.constant 8 : i32
    %13 = vector.broadcast %c8_i32 : i32 to vector<64x32xi32>
    %14 = arith.cmpi slt, %3, %13 : vector<64x32xi32>
    %15 = arith.andi %12, %14 : vector<64x32xi1>
    %16 = arith.ori %4, %15 : vector<64x32xi1>
    %c16_i32_4 = arith.constant 16 : i32
    %17 = vector.broadcast %c16_i32_4 : i32 to vector<64x32xi32>
    %18 = arith.cmpi sge, %2, %17 : vector<64x32xi32>
    %c32_i32 = arith.constant 32 : i32
    %19 = vector.broadcast %c32_i32 : i32 to vector<64x32xi32>
    %20 = arith.cmpi slt, %2, %19 : vector<64x32xi32>
    %21 = arith.andi %18, %20 : vector<64x32xi1>
    %c8_i32_5 = arith.constant 8 : i32
    %22 = vector.broadcast %c8_i32_5 : i32 to vector<64x32xi32>
    %23 = arith.cmpi sge, %3, %22 : vector<64x32xi32>
    %24 = arith.andi %21, %23 : vector<64x32xi1>
    %c16_i32_6 = arith.constant 16 : i32
    %25 = vector.broadcast %c16_i32_6 : i32 to vector<64x32xi32>
    %26 = arith.cmpi slt, %3, %25 : vector<64x32xi32>
    %27 = arith.andi %24, %26 : vector<64x32xi1>
    %28 = arith.ori %16, %27 : vector<64x32xi1>
    %c32_i32_7 = arith.constant 32 : i32
    %29 = vector.broadcast %c32_i32_7 : i32 to vector<64x32xi32>
    %30 = arith.cmpi sge, %2, %29 : vector<64x32xi32>
    %c48_i32 = arith.constant 48 : i32
    %31 = vector.broadcast %c48_i32 : i32 to vector<64x32xi32>
    %32 = arith.cmpi slt, %2, %31 : vector<64x32xi32>
    %33 = arith.andi %30, %32 : vector<64x32xi1>
    %c16_i32_8 = arith.constant 16 : i32
    %34 = vector.broadcast %c16_i32_8 : i32 to vector<64x32xi32>
    %35 = arith.cmpi sge, %3, %34 : vector<64x32xi32>
    %36 = arith.andi %33, %35 : vector<64x32xi1>
    %c24_i32 = arith.constant 24 : i32
    %37 = vector.broadcast %c24_i32 : i32 to vector<64x32xi32>
    %38 = arith.cmpi slt, %3, %37 : vector<64x32xi32>
    %39 = arith.andi %36, %38 : vector<64x32xi1>
    %40 = arith.ori %28, %39 : vector<64x32xi1>
    %c48_i32_9 = arith.constant 48 : i32
    %41 = vector.broadcast %c48_i32_9 : i32 to vector<64x32xi32>
    %42 = arith.cmpi sge, %2, %41 : vector<64x32xi32>
    %c64_i32 = arith.constant 64 : i32
    %43 = vector.broadcast %c64_i32 : i32 to vector<64x32xi32>
    %44 = arith.cmpi slt, %2, %43 : vector<64x32xi32>
    %45 = arith.andi %42, %44 : vector<64x32xi1>
    %c24_i32_10 = arith.constant 24 : i32
    %46 = vector.broadcast %c24_i32_10 : i32 to vector<64x32xi32>
    %47 = arith.cmpi sge, %3, %46 : vector<64x32xi32>
    %48 = arith.andi %45, %47 : vector<64x32xi1>
    %c32_i32_11 = arith.constant 32 : i32
    %49 = vector.broadcast %c32_i32_11 : i32 to vector<64x32xi32>
    %50 = arith.cmpi slt, %3, %49 : vector<64x32xi32>
    %51 = arith.andi %48, %50 : vector<64x32xi1>
    %52 = arith.ori %40, %51 : vector<64x32xi1>
    %cst = arith.constant 1.000000e+00 : f32
    %cst_12 = arith.constant 0.000000e+00 : f32
    %53 = vector.broadcast %cst : f32 to vector<64x32xf32>
    %54 = vector.broadcast %cst_12 : f32 to vector<64x32xf32>
    %55 = arith.select %52, %53, %54 : vector<64x32xi1>, vector<64x32xf32>
    %56 = tpu.iota {dimensions = array<i32: 0>} : vector<96x32xi32>
    %57 = tpu.iota {dimensions = array<i32: 1>} : vector<96x32xi32>
    %false_13 = arith.constant false
    %58 = vector.broadcast %false_13 : i1 to vector<96x32xi1>
    %c0_i32_14 = arith.constant 0 : i32
    %59 = vector.broadcast %c0_i32_14 : i32 to vector<96x32xi32>
    %60 = arith.cmpi sge, %56, %59 : vector<96x32xi32>
    %c24_i32_15 = arith.constant 24 : i32
    %61 = vector.broadcast %c24_i32_15 : i32 to vector<96x32xi32>
    %62 = arith.cmpi slt, %56, %61 : vector<96x32xi32>
    %63 = arith.andi %60, %62 : vector<96x32xi1>
    %c0_i32_16 = arith.constant 0 : i32
    %64 = vector.broadcast %c0_i32_16 : i32 to vector<96x32xi32>
    %65 = arith.cmpi sge, %57, %64 : vector<96x32xi32>
    %66 = arith.andi %63, %65 : vector<96x32xi1>
    %c8_i32_17 = arith.constant 8 : i32
    %67 = vector.broadcast %c8_i32_17 : i32 to vector<96x32xi32>
    %68 = arith.cmpi slt, %57, %67 : vector<96x32xi32>
    %69 = arith.andi %66, %68 : vector<96x32xi1>
    %70 = arith.ori %58, %69 : vector<96x32xi1>
    %c24_i32_18 = arith.constant 24 : i32
    %71 = vector.broadcast %c24_i32_18 : i32 to vector<96x32xi32>
    %72 = arith.cmpi sge, %56, %71 : vector<96x32xi32>
    %c48_i32_19 = arith.constant 48 : i32
    %73 = vector.broadcast %c48_i32_19 : i32 to vector<96x32xi32>
    %74 = arith.cmpi slt, %56, %73 : vector<96x32xi32>
    %75 = arith.andi %72, %74 : vector<96x32xi1>
    %c8_i32_20 = arith.constant 8 : i32
    %76 = vector.broadcast %c8_i32_20 : i32 to vector<96x32xi32>
    %77 = arith.cmpi sge, %57, %76 : vector<96x32xi32>
    %78 = arith.andi %75, %77 : vector<96x32xi1>
    %c16_i32_21 = arith.constant 16 : i32
    %79 = vector.broadcast %c16_i32_21 : i32 to vector<96x32xi32>
    %80 = arith.cmpi slt, %57, %79 : vector<96x32xi32>
    %81 = arith.andi %78, %80 : vector<96x32xi1>
    %82 = arith.ori %70, %81 : vector<96x32xi1>
    %c48_i32_22 = arith.constant 48 : i32
    %83 = vector.broadcast %c48_i32_22 : i32 to vector<96x32xi32>
    %84 = arith.cmpi sge, %56, %83 : vector<96x32xi32>
    %c72_i32 = arith.constant 72 : i32
    %85 = vector.broadcast %c72_i32 : i32 to vector<96x32xi32>
    %86 = arith.cmpi slt, %56, %85 : vector<96x32xi32>
    %87 = arith.andi %84, %86 : vector<96x32xi1>
    %c16_i32_23 = arith.constant 16 : i32
    %88 = vector.broadcast %c16_i32_23 : i32 to vector<96x32xi32>
    %89 = arith.cmpi sge, %57, %88 : vector<96x32xi32>
    %90 = arith.andi %87, %89 : vector<96x32xi1>
    %c24_i32_24 = arith.constant 24 : i32
    %91 = vector.broadcast %c24_i32_24 : i32 to vector<96x32xi32>
    %92 = arith.cmpi slt, %57, %91 : vector<96x32xi32>
    %93 = arith.andi %90, %92 : vector<96x32xi1>
    %94 = arith.ori %82, %93 : vector<96x32xi1>
    %c72_i32_25 = arith.constant 72 : i32
    %95 = vector.broadcast %c72_i32_25 : i32 to vector<96x32xi32>
    %96 = arith.cmpi sge, %56, %95 : vector<96x32xi32>
    %c96_i32 = arith.constant 96 : i32
    %97 = vector.broadcast %c96_i32 : i32 to vector<96x32xi32>
    %98 = arith.cmpi slt, %56, %97 : vector<96x32xi32>
    %99 = arith.andi %96, %98 : vector<96x32xi1>
    %c24_i32_26 = arith.constant 24 : i32
    %100 = vector.broadcast %c24_i32_26 : i32 to vector<96x32xi32>
    %101 = arith.cmpi sge, %57, %100 : vector<96x32xi32>
    %102 = arith.andi %99, %101 : vector<96x32xi1>
    %c32_i32_27 = arith.constant 32 : i32
    %103 = vector.broadcast %c32_i32_27 : i32 to vector<96x32xi32>
    %104 = arith.cmpi slt, %57, %103 : vector<96x32xi32>
    %105 = arith.andi %102, %104 : vector<96x32xi1>
    %106 = arith.ori %94, %105 : vector<96x32xi1>
    %cst_28 = arith.constant 1.000000e+00 : f32
    %cst_29 = arith.constant 0.000000e+00 : f32
    %107 = vector.broadcast %cst_28 : f32 to vector<96x32xf32>
    %108 = vector.broadcast %cst_29 : f32 to vector<96x32xf32>
    %109 = arith.select %106, %107, %108 : vector<96x32xi1>, vector<96x32xf32>
    %110 = tpu.iota {dimensions = array<i32: 0>} : vector<64x64xi32>
    %111 = tpu.iota {dimensions = array<i32: 1>} : vector<64x64xi32>
    %false_30 = arith.constant false
    %112 = vector.broadcast %false_30 : i1 to vector<64x64xi1>
    %c0_i32_31 = arith.constant 0 : i32
    %113 = vector.broadcast %c0_i32_31 : i32 to vector<64x64xi32>
    %114 = arith.cmpi sge, %110, %113 : vector<64x64xi32>
    %c8_i32_32 = arith.constant 8 : i32
    %115 = vector.broadcast %c8_i32_32 : i32 to vector<64x64xi32>
    %116 = arith.cmpi slt, %110, %115 : vector<64x64xi32>
    %117 = arith.andi %114, %116 : vector<64x64xi1>
    %c0_i32_33 = arith.constant 0 : i32
    %118 = vector.broadcast %c0_i32_33 : i32 to vector<64x64xi32>
    %119 = arith.cmpi sge, %111, %118 : vector<64x64xi32>
    %120 = arith.andi %117, %119 : vector<64x64xi1>
    %c8_i32_34 = arith.constant 8 : i32
    %121 = vector.broadcast %c8_i32_34 : i32 to vector<64x64xi32>
    %122 = arith.cmpi slt, %111, %121 : vector<64x64xi32>
    %123 = arith.andi %120, %122 : vector<64x64xi1>
    %124 = arith.ori %112, %123 : vector<64x64xi1>
    %c8_i32_35 = arith.constant 8 : i32
    %125 = vector.broadcast %c8_i32_35 : i32 to vector<64x64xi32>
    %126 = arith.cmpi sge, %110, %125 : vector<64x64xi32>
    %c16_i32_36 = arith.constant 16 : i32
    %127 = vector.broadcast %c16_i32_36 : i32 to vector<64x64xi32>
    %128 = arith.cmpi slt, %110, %127 : vector<64x64xi32>
    %129 = arith.andi %126, %128 : vector<64x64xi1>
    %c8_i32_37 = arith.constant 8 : i32
    %130 = vector.broadcast %c8_i32_37 : i32 to vector<64x64xi32>
    %131 = arith.cmpi sge, %111, %130 : vector<64x64xi32>
    %132 = arith.andi %129, %131 : vector<64x64xi1>
    %c16_i32_38 = arith.constant 16 : i32
    %133 = vector.broadcast %c16_i32_38 : i32 to vector<64x64xi32>
    %134 = arith.cmpi slt, %111, %133 : vector<64x64xi32>
    %135 = arith.andi %132, %134 : vector<64x64xi1>
    %136 = arith.ori %124, %135 : vector<64x64xi1>
    %c16_i32_39 = arith.constant 16 : i32
    %137 = vector.broadcast %c16_i32_39 : i32 to vector<64x64xi32>
    %138 = arith.cmpi sge, %110, %137 : vector<64x64xi32>
    %c24_i32_40 = arith.constant 24 : i32
    %139 = vector.broadcast %c24_i32_40 : i32 to vector<64x64xi32>
    %140 = arith.cmpi slt, %110, %139 : vector<64x64xi32>
    %141 = arith.andi %138, %140 : vector<64x64xi1>
    %c16_i32_41 = arith.constant 16 : i32
    %142 = vector.broadcast %c16_i32_41 : i32 to vector<64x64xi32>
    %143 = arith.cmpi sge, %111, %142 : vector<64x64xi32>
    %144 = arith.andi %141, %143 : vector<64x64xi1>
    %c24_i32_42 = arith.constant 24 : i32
    %145 = vector.broadcast %c24_i32_42 : i32 to vector<64x64xi32>
    %146 = arith.cmpi slt, %111, %145 : vector<64x64xi32>
    %147 = arith.andi %144, %146 : vector<64x64xi1>
    %148 = arith.ori %136, %147 : vector<64x64xi1>
    %c24_i32_43 = arith.constant 24 : i32
    %149 = vector.broadcast %c24_i32_43 : i32 to vector<64x64xi32>
    %150 = arith.cmpi sge, %110, %149 : vector<64x64xi32>
    %c32_i32_44 = arith.constant 32 : i32
    %151 = vector.broadcast %c32_i32_44 : i32 to vector<64x64xi32>
    %152 = arith.cmpi slt, %110, %151 : vector<64x64xi32>
    %153 = arith.andi %150, %152 : vector<64x64xi1>
    %c24_i32_45 = arith.constant 24 : i32
    %154 = vector.broadcast %c24_i32_45 : i32 to vector<64x64xi32>
    %155 = arith.cmpi sge, %111, %154 : vector<64x64xi32>
    %156 = arith.andi %153, %155 : vector<64x64xi1>
    %c32_i32_46 = arith.constant 32 : i32
    %157 = vector.broadcast %c32_i32_46 : i32 to vector<64x64xi32>
    %158 = arith.cmpi slt, %111, %157 : vector<64x64xi32>
    %159 = arith.andi %156, %158 : vector<64x64xi1>
    %160 = arith.ori %148, %159 : vector<64x64xi1>
    %c32_i32_47 = arith.constant 32 : i32
    %161 = vector.broadcast %c32_i32_47 : i32 to vector<64x64xi32>
    %162 = arith.cmpi sge, %110, %161 : vector<64x64xi32>
    %c40_i32 = arith.constant 40 : i32
    %163 = vector.broadcast %c40_i32 : i32 to vector<64x64xi32>
    %164 = arith.cmpi slt, %110, %163 : vector<64x64xi32>
    %165 = arith.andi %162, %164 : vector<64x64xi1>
    %c32_i32_48 = arith.constant 32 : i32
    %166 = vector.broadcast %c32_i32_48 : i32 to vector<64x64xi32>
    %167 = arith.cmpi sge, %111, %166 : vector<64x64xi32>
    %168 = arith.andi %165, %167 : vector<64x64xi1>
    %c40_i32_49 = arith.constant 40 : i32
    %169 = vector.broadcast %c40_i32_49 : i32 to vector<64x64xi32>
    %170 = arith.cmpi slt, %111, %169 : vector<64x64xi32>
    %171 = arith.andi %168, %170 : vector<64x64xi1>
    %172 = arith.ori %160, %171 : vector<64x64xi1>
    %c40_i32_50 = arith.constant 40 : i32
    %173 = vector.broadcast %c40_i32_50 : i32 to vector<64x64xi32>
    %174 = arith.cmpi sge, %110, %173 : vector<64x64xi32>
    %c48_i32_51 = arith.constant 48 : i32
    %175 = vector.broadcast %c48_i32_51 : i32 to vector<64x64xi32>
    %176 = arith.cmpi slt, %110, %175 : vector<64x64xi32>
    %177 = arith.andi %174, %176 : vector<64x64xi1>
    %c40_i32_52 = arith.constant 40 : i32
    %178 = vector.broadcast %c40_i32_52 : i32 to vector<64x64xi32>
    %179 = arith.cmpi sge, %111, %178 : vector<64x64xi32>
    %180 = arith.andi %177, %179 : vector<64x64xi1>
    %c48_i32_53 = arith.constant 48 : i32
    %181 = vector.broadcast %c48_i32_53 : i32 to vector<64x64xi32>
    %182 = arith.cmpi slt, %111, %181 : vector<64x64xi32>
    %183 = arith.andi %180, %182 : vector<64x64xi1>
    %184 = arith.ori %172, %183 : vector<64x64xi1>
    %c48_i32_54 = arith.constant 48 : i32
    %185 = vector.broadcast %c48_i32_54 : i32 to vector<64x64xi32>
    %186 = arith.cmpi sge, %110, %185 : vector<64x64xi32>
    %c56_i32 = arith.constant 56 : i32
    %187 = vector.broadcast %c56_i32 : i32 to vector<64x64xi32>
    %188 = arith.cmpi slt, %110, %187 : vector<64x64xi32>
    %189 = arith.andi %186, %188 : vector<64x64xi1>
    %c48_i32_55 = arith.constant 48 : i32
    %190 = vector.broadcast %c48_i32_55 : i32 to vector<64x64xi32>
    %191 = arith.cmpi sge, %111, %190 : vector<64x64xi32>
    %192 = arith.andi %189, %191 : vector<64x64xi1>
    %c56_i32_56 = arith.constant 56 : i32
    %193 = vector.broadcast %c56_i32_56 : i32 to vector<64x64xi32>
    %194 = arith.cmpi slt, %111, %193 : vector<64x64xi32>
    %195 = arith.andi %192, %194 : vector<64x64xi1>
    %196 = arith.ori %184, %195 : vector<64x64xi1>
    %c56_i32_57 = arith.constant 56 : i32
    %197 = vector.broadcast %c56_i32_57 : i32 to vector<64x64xi32>
    %198 = arith.cmpi sge, %110, %197 : vector<64x64xi32>
    %c64_i32_58 = arith.constant 64 : i32
    %199 = vector.broadcast %c64_i32_58 : i32 to vector<64x64xi32>
    %200 = arith.cmpi slt, %110, %199 : vector<64x64xi32>
    %201 = arith.andi %198, %200 : vector<64x64xi1>
    %c56_i32_59 = arith.constant 56 : i32
    %202 = vector.broadcast %c56_i32_59 : i32 to vector<64x64xi32>
    %203 = arith.cmpi sge, %111, %202 : vector<64x64xi32>
    %204 = arith.andi %201, %203 : vector<64x64xi1>
    %c64_i32_60 = arith.constant 64 : i32
    %205 = vector.broadcast %c64_i32_60 : i32 to vector<64x64xi32>
    %206 = arith.cmpi slt, %111, %205 : vector<64x64xi32>
    %207 = arith.andi %204, %206 : vector<64x64xi1>
    %208 = arith.ori %196, %207 : vector<64x64xi1>
    %cst_61 = arith.constant 0.000000e+00 : f32
    %cst_62 = arith.constant -1.000000e+30 : f32
    %209 = vector.broadcast %cst_61 : f32 to vector<64x64xf32>
    %210 = vector.broadcast %cst_62 : f32 to vector<64x64xf32>
    %211 = arith.select %208, %209, %210 : vector<64x64xi1>, vector<64x64xf32>
    %212 = tpu.iota {dimensions = array<i32: 0>} : vector<64x96xi32>
    %213 = tpu.iota {dimensions = array<i32: 1>} : vector<64x96xi32>
    %false_63 = arith.constant false
    %214 = vector.broadcast %false_63 : i1 to vector<64x96xi1>
    %c0_i32_64 = arith.constant 0 : i32
    %215 = vector.broadcast %c0_i32_64 : i32 to vector<64x96xi32>
    %216 = arith.cmpi sge, %212, %215 : vector<64x96xi32>
    %c8_i32_65 = arith.constant 8 : i32
    %217 = vector.broadcast %c8_i32_65 : i32 to vector<64x96xi32>
    %218 = arith.cmpi slt, %212, %217 : vector<64x96xi32>
    %219 = arith.andi %216, %218 : vector<64x96xi1>
    %c0_i32_66 = arith.constant 0 : i32
    %220 = vector.broadcast %c0_i32_66 : i32 to vector<64x96xi32>
    %221 = arith.cmpi sge, %213, %220 : vector<64x96xi32>
    %222 = arith.andi %219, %221 : vector<64x96xi1>
    %c12_i32 = arith.constant 12 : i32
    %223 = vector.broadcast %c12_i32 : i32 to vector<64x96xi32>
    %224 = arith.cmpi slt, %213, %223 : vector<64x96xi32>
    %225 = arith.andi %222, %224 : vector<64x96xi1>
    %226 = arith.ori %214, %225 : vector<64x96xi1>
    %c8_i32_67 = arith.constant 8 : i32
    %227 = vector.broadcast %c8_i32_67 : i32 to vector<64x96xi32>
    %228 = arith.cmpi sge, %212, %227 : vector<64x96xi32>
    %c16_i32_68 = arith.constant 16 : i32
    %229 = vector.broadcast %c16_i32_68 : i32 to vector<64x96xi32>
    %230 = arith.cmpi slt, %212, %229 : vector<64x96xi32>
    %231 = arith.andi %228, %230 : vector<64x96xi1>
    %c12_i32_69 = arith.constant 12 : i32
    %232 = vector.broadcast %c12_i32_69 : i32 to vector<64x96xi32>
    %233 = arith.cmpi sge, %213, %232 : vector<64x96xi32>
    %234 = arith.andi %231, %233 : vector<64x96xi1>
    %c24_i32_70 = arith.constant 24 : i32
    %235 = vector.broadcast %c24_i32_70 : i32 to vector<64x96xi32>
    %236 = arith.cmpi slt, %213, %235 : vector<64x96xi32>
    %237 = arith.andi %234, %236 : vector<64x96xi1>
    %238 = arith.ori %226, %237 : vector<64x96xi1>
    %c16_i32_71 = arith.constant 16 : i32
    %239 = vector.broadcast %c16_i32_71 : i32 to vector<64x96xi32>
    %240 = arith.cmpi sge, %212, %239 : vector<64x96xi32>
    %c24_i32_72 = arith.constant 24 : i32
    %241 = vector.broadcast %c24_i32_72 : i32 to vector<64x96xi32>
    %242 = arith.cmpi slt, %212, %241 : vector<64x96xi32>
    %243 = arith.andi %240, %242 : vector<64x96xi1>
    %c24_i32_73 = arith.constant 24 : i32
    %244 = vector.broadcast %c24_i32_73 : i32 to vector<64x96xi32>
    %245 = arith.cmpi sge, %213, %244 : vector<64x96xi32>
    %246 = arith.andi %243, %245 : vector<64x96xi1>
    %c36_i32 = arith.constant 36 : i32
    %247 = vector.broadcast %c36_i32 : i32 to vector<64x96xi32>
    %248 = arith.cmpi slt, %213, %247 : vector<64x96xi32>
    %249 = arith.andi %246, %248 : vector<64x96xi1>
    %250 = arith.ori %238, %249 : vector<64x96xi1>
    %c24_i32_74 = arith.constant 24 : i32
    %251 = vector.broadcast %c24_i32_74 : i32 to vector<64x96xi32>
    %252 = arith.cmpi sge, %212, %251 : vector<64x96xi32>
    %c32_i32_75 = arith.constant 32 : i32
    %253 = vector.broadcast %c32_i32_75 : i32 to vector<64x96xi32>
    %254 = arith.cmpi slt, %212, %253 : vector<64x96xi32>
    %255 = arith.andi %252, %254 : vector<64x96xi1>
    %c36_i32_76 = arith.constant 36 : i32
    %256 = vector.broadcast %c36_i32_76 : i32 to vector<64x96xi32>
    %257 = arith.cmpi sge, %213, %256 : vector<64x96xi32>
    %258 = arith.andi %255, %257 : vector<64x96xi1>
    %c48_i32_77 = arith.constant 48 : i32
    %259 = vector.broadcast %c48_i32_77 : i32 to vector<64x96xi32>
    %260 = arith.cmpi slt, %213, %259 : vector<64x96xi32>
    %261 = arith.andi %258, %260 : vector<64x96xi1>
    %262 = arith.ori %250, %261 : vector<64x96xi1>
    %c32_i32_78 = arith.constant 32 : i32
    %263 = vector.broadcast %c32_i32_78 : i32 to vector<64x96xi32>
    %264 = arith.cmpi sge, %212, %263 : vector<64x96xi32>
    %c40_i32_79 = arith.constant 40 : i32
    %265 = vector.broadcast %c40_i32_79 : i32 to vector<64x96xi32>
    %266 = arith.cmpi slt, %212, %265 : vector<64x96xi32>
    %267 = arith.andi %264, %266 : vector<64x96xi1>
    %c48_i32_80 = arith.constant 48 : i32
    %268 = vector.broadcast %c48_i32_80 : i32 to vector<64x96xi32>
    %269 = arith.cmpi sge, %213, %268 : vector<64x96xi32>
    %270 = arith.andi %267, %269 : vector<64x96xi1>
    %c60_i32 = arith.constant 60 : i32
    %271 = vector.broadcast %c60_i32 : i32 to vector<64x96xi32>
    %272 = arith.cmpi slt, %213, %271 : vector<64x96xi32>
    %273 = arith.andi %270, %272 : vector<64x96xi1>
    %274 = arith.ori %262, %273 : vector<64x96xi1>
    %c40_i32_81 = arith.constant 40 : i32
    %275 = vector.broadcast %c40_i32_81 : i32 to vector<64x96xi32>
    %276 = arith.cmpi sge, %212, %275 : vector<64x96xi32>
    %c48_i32_82 = arith.constant 48 : i32
    %277 = vector.broadcast %c48_i32_82 : i32 to vector<64x96xi32>
    %278 = arith.cmpi slt, %212, %277 : vector<64x96xi32>
    %279 = arith.andi %276, %278 : vector<64x96xi1>
    %c60_i32_83 = arith.constant 60 : i32
    %280 = vector.broadcast %c60_i32_83 : i32 to vector<64x96xi32>
    %281 = arith.cmpi sge, %213, %280 : vector<64x96xi32>
    %282 = arith.andi %279, %281 : vector<64x96xi1>
    %c72_i32_84 = arith.constant 72 : i32
    %283 = vector.broadcast %c72_i32_84 : i32 to vector<64x96xi32>
    %284 = arith.cmpi slt, %213, %283 : vector<64x96xi32>
    %285 = arith.andi %282, %284 : vector<64x96xi1>
    %286 = arith.ori %274, %285 : vector<64x96xi1>
    %c48_i32_85 = arith.constant 48 : i32
    %287 = vector.broadcast %c48_i32_85 : i32 to vector<64x96xi32>
    %288 = arith.cmpi sge, %212, %287 : vector<64x96xi32>
    %c56_i32_86 = arith.constant 56 : i32
    %289 = vector.broadcast %c56_i32_86 : i32 to vector<64x96xi32>
    %290 = arith.cmpi slt, %212, %289 : vector<64x96xi32>
    %291 = arith.andi %288, %290 : vector<64x96xi1>
    %c72_i32_87 = arith.constant 72 : i32
    %292 = vector.broadcast %c72_i32_87 : i32 to vector<64x96xi32>
    %293 = arith.cmpi sge, %213, %292 : vector<64x96xi32>
    %294 = arith.andi %291, %293 : vector<64x96xi1>
    %c84_i32 = arith.constant 84 : i32
    %295 = vector.broadcast %c84_i32 : i32 to vector<64x96xi32>
    %296 = arith.cmpi slt, %213, %295 : vector<64x96xi32>
    %297 = arith.andi %294, %296 : vector<64x96xi1>
    %298 = arith.ori %286, %297 : vector<64x96xi1>
    %c56_i32_88 = arith.constant 56 : i32
    %299 = vector.broadcast %c56_i32_88 : i32 to vector<64x96xi32>
    %300 = arith.cmpi sge, %212, %299 : vector<64x96xi32>
    %c64_i32_89 = arith.constant 64 : i32
    %301 = vector.broadcast %c64_i32_89 : i32 to vector<64x96xi32>
    %302 = arith.cmpi slt, %212, %301 : vector<64x96xi32>
    %303 = arith.andi %300, %302 : vector<64x96xi1>
    %c84_i32_90 = arith.constant 84 : i32
    %304 = vector.broadcast %c84_i32_90 : i32 to vector<64x96xi32>
    %305 = arith.cmpi sge, %213, %304 : vector<64x96xi32>
    %306 = arith.andi %303, %305 : vector<64x96xi1>
    %c96_i32_91 = arith.constant 96 : i32
    %307 = vector.broadcast %c96_i32_91 : i32 to vector<64x96xi32>
    %308 = arith.cmpi slt, %213, %307 : vector<64x96xi32>
    %309 = arith.andi %306, %308 : vector<64x96xi1>
    %310 = arith.ori %298, %309 : vector<64x96xi1>
    %cst_92 = arith.constant 0.000000e+00 : f32
    %cst_93 = arith.constant -1.000000e+30 : f32
    %311 = vector.broadcast %cst_92 : f32 to vector<64x96xf32>
    %312 = vector.broadcast %cst_93 : f32 to vector<64x96xf32>
    %313 = arith.select %310, %311, %312 : vector<64x96xi1>, vector<64x96xf32>
    %c0_94 = arith.constant 0 : index
    %c0_95 = arith.constant 0 : index
    %c0_96 = arith.constant 0 : index
    %314 = vector.load %arg3[%c0_94, %c0_95, %c0_96] : memref<2x32x384xf32, #tpu.memory_space<vmem>>, vector<1x32x96xf32>
    %315 = vector.shape_cast %314 : vector<1x32x96xf32> to vector<32x96xf32>
    %cst_97 = arith.constant dense<0.000000e+00> : vector<16x96xf32>
    %316 = tpu.matmul %0, %315, %cst_97 {dimension_numbers = #tpu.dot_dimension_numbers<[1], [0], [0], [1], [0, 0, 1, 1], [], []>} : vector<16x32xf32>, vector<32x96xf32>, vector<16x96xf32> -> vector<16x96xf32>
    %c0_98 = arith.constant 0 : index
    %c0_99 = arith.constant 0 : index
    %c0_100 = arith.constant 0 : index
    %317 = vector.load %arg4[%c0_98, %c0_99, %c0_100] : memref<3x1x544xf32, #tpu.memory_space<vmem>>, vector<1x1x96xf32>
    %318 = vector.shape_cast %317 : vector<1x1x96xf32> to vector<1x96xf32>
    %319 = vector.broadcast %318 : vector<1x96xf32> to vector<16x96xf32>
    %320 = arith.addf %316, %319 : vector<16x96xf32>
    %321 = vector.extract_strided_slice %320 {offsets = [0, 0], sizes = [16, 32], strides = [1, 1]} : vector<16x96xf32> to vector<16x32xf32>
    %322 = vector.extract_strided_slice %320 {offsets = [0, 32], sizes = [16, 32], strides = [1, 1]} : vector<16x96xf32> to vector<16x32xf32>
    %323 = vector.extract_strided_slice %320 {offsets = [0, 64], sizes = [16, 32], strides = [1, 1]} : vector<16x96xf32> to vector<16x32xf32>
    %c0_101 = arith.constant 0 : index
    %c0_102 = arith.constant 0 : index
    %c96 = arith.constant 96 : index
    %324 = vector.load %arg3[%c0_101, %c0_102, %c96] : memref<2x32x384xf32, #tpu.memory_space<vmem>>, vector<1x32x32xf32>
    %325 = vector.shape_cast %324 : vector<1x32x32xf32> to vector<32x32xf32>
    %c0_103 = arith.constant 0 : index
    %c0_104 = arith.constant 0 : index
    %c96_105 = arith.constant 96 : index
    %326 = vector.load %arg4[%c0_103, %c0_104, %c96_105] : memref<3x1x544xf32, #tpu.memory_space<vmem>>, vector<1x1x32xf32>
    %327 = vector.shape_cast %326 : vector<1x1x32xf32> to vector<1x32xf32>
    %328 = tpu.concatenate %321, %321, %321, %321 in 0 : vector<16x32xf32>, vector<16x32xf32>, vector<16x32xf32>, vector<16x32xf32> -> vector<64x32xf32>
    %329 = arith.mulf %328, %55 : vector<64x32xf32>
    %330 = tpu.concatenate %322, %322, %322, %322 in 0 : vector<16x32xf32>, vector<16x32xf32>, vector<16x32xf32>, vector<16x32xf32> -> vector<64x32xf32>
    %331 = arith.mulf %330, %55 : vector<64x32xf32>
    %332 = tpu.concatenate %323, %323, %323, %323 in 0 : vector<16x32xf32>, vector<16x32xf32>, vector<16x32xf32>, vector<16x32xf32> -> vector<64x32xf32>
    %333 = arith.mulf %332, %55 : vector<64x32xf32>
    %cst_106 = arith.constant dense<0.000000e+00> : vector<64x64xf32>
    %334 = tpu.matmul %329, %331, %cst_106 {dimension_numbers = #tpu.dot_dimension_numbers<[1], [1], [0], [0], [0, 0, 1, 0], [], []>} : vector<64x32xf32>, vector<64x32xf32>, vector<64x64xf32> -> vector<64x64xf32>
    %335 = arith.addf %334, %211 : vector<64x64xf32>
    %cst_107 = arith.constant dense<0xFF800000> : vector<64xf32>
    %336 = vector.multi_reduction <maximumf>, %335, %cst_107 [1] : vector<64x64xf32> to vector<64xf32>
    %337 = vector.shape_cast %336 : vector<64xf32> to vector<64x1xf32>
    %338 = vector.broadcast %337 : vector<64x1xf32> to vector<64x64xf32>
    %339 = arith.subf %335, %338 : vector<64x64xf32>
    %340 = math.exp %339 : vector<64x64xf32>
    %cst_108 = arith.constant dense<0.000000e+00> : vector<64xf32>
    %341 = vector.multi_reduction <add>, %340, %cst_108 [1] : vector<64x64xf32> to vector<64xf32>
    %342 = vector.shape_cast %341 : vector<64xf32> to vector<64x1xf32>
    %343 = tpu.reciprocal %342 : vector<64x1xf32> -> vector<64x1xf32>
    %344 = vector.broadcast %343 : vector<64x1xf32> to vector<64x64xf32>
    %345 = arith.mulf %340, %344 : vector<64x64xf32>
    %cst_109 = arith.constant dense<0.000000e+00> : vector<64x32xf32>
    %346 = tpu.matmul %345, %333, %cst_109 {dimension_numbers = #tpu.dot_dimension_numbers<[1], [0], [0], [1], [0, 0, 1, 1], [], []>} : vector<64x64xf32>, vector<64x32xf32>, vector<64x32xf32> -> vector<64x32xf32>
    %347 = vector.extract_strided_slice %346 {offsets = [0, 0], sizes = [16, 32], strides = [1, 1]} : vector<64x32xf32> to vector<16x32xf32>
    %348 = vector.extract_strided_slice %346 {offsets = [16, 0], sizes = [16, 32], strides = [1, 1]} : vector<64x32xf32> to vector<16x32xf32>
    %349 = arith.addf %347, %348 : vector<16x32xf32>
    %350 = vector.extract_strided_slice %346 {offsets = [32, 0], sizes = [16, 32], strides = [1, 1]} : vector<64x32xf32> to vector<16x32xf32>
    %351 = arith.addf %349, %350 : vector<16x32xf32>
    %352 = vector.extract_strided_slice %346 {offsets = [48, 0], sizes = [16, 32], strides = [1, 1]} : vector<64x32xf32> to vector<16x32xf32>
    %353 = arith.addf %351, %352 : vector<16x32xf32>
    %cst_110 = arith.constant dense<0.000000e+00> : vector<16x32xf32>
    %354 = tpu.matmul %353, %325, %cst_110 {dimension_numbers = #tpu.dot_dimension_numbers<[1], [0], [0], [1], [0, 0, 1, 1], [], []>} : vector<16x32xf32>, vector<32x32xf32>, vector<16x32xf32> -> vector<16x32xf32>
    %355 = vector.broadcast %327 : vector<1x32xf32> to vector<16x32xf32>
    %356 = arith.addf %354, %355 : vector<16x32xf32>
    %357 = arith.addf %0, %356 : vector<16x32xf32>
    %c0_111 = arith.constant 0 : index
    %c0_112 = arith.constant 0 : index
    %c128 = arith.constant 128 : index
    %358 = vector.load %arg4[%c0_111, %c0_112, %c128] : memref<3x1x544xf32, #tpu.memory_space<vmem>>, vector<1x1x32xf32>
    %359 = vector.shape_cast %358 : vector<1x1x32xf32> to vector<1x32xf32>
    %c0_113 = arith.constant 0 : index
    %c0_114 = arith.constant 0 : index
    %c160 = arith.constant 160 : index
    %360 = vector.load %arg4[%c0_113, %c0_114, %c160] : memref<3x1x544xf32, #tpu.memory_space<vmem>>, vector<1x1x32xf32>
    %361 = vector.shape_cast %360 : vector<1x1x32xf32> to vector<1x32xf32>
    %cst_115 = arith.constant dense<0.000000e+00> : vector<16xf32>
    %362 = vector.multi_reduction <add>, %357, %cst_115 [1] : vector<16x32xf32> to vector<16xf32>
    %363 = vector.shape_cast %362 : vector<16xf32> to vector<16x1xf32>
    %cst_116 = arith.constant 3.200000e+01 : f32
    %364 = vector.broadcast %cst_116 : f32 to vector<16x1xf32>
    %365 = arith.divf %363, %364 : vector<16x1xf32>
    %366 = vector.broadcast %365 : vector<16x1xf32> to vector<16x32xf32>
    %367 = arith.subf %357, %366 : vector<16x32xf32>
    %368 = arith.mulf %367, %367 : vector<16x32xf32>
    %cst_117 = arith.constant dense<0.000000e+00> : vector<16xf32>
    %369 = vector.multi_reduction <add>, %368, %cst_117 [1] : vector<16x32xf32> to vector<16xf32>
    %370 = vector.shape_cast %369 : vector<16xf32> to vector<16x1xf32>
    %cst_118 = arith.constant 3.200000e+01 : f32
    %371 = vector.broadcast %cst_118 : f32 to vector<16x1xf32>
    %372 = arith.divf %370, %371 : vector<16x1xf32>
    %373 = vector.broadcast %365 : vector<16x1xf32> to vector<16x32xf32>
    %374 = arith.subf %357, %373 : vector<16x32xf32>
    %cst_119 = arith.constant 9.99999974E-6 : f32
    %375 = vector.broadcast %cst_119 : f32 to vector<16x1xf32>
    %376 = arith.addf %372, %375 : vector<16x1xf32>
    %377 = math.rsqrt %376 : vector<16x1xf32>
    %378 = vector.broadcast %377 : vector<16x1xf32> to vector<16x32xf32>
    %379 = arith.mulf %374, %378 : vector<16x32xf32>
    %380 = vector.broadcast %359 : vector<1x32xf32> to vector<16x32xf32>
    %381 = arith.mulf %379, %380 : vector<16x32xf32>
    %382 = vector.broadcast %361 : vector<1x32xf32> to vector<16x32xf32>
    %383 = arith.addf %381, %382 : vector<16x32xf32>
    %c0_120 = arith.constant 0 : index
    %c0_121 = arith.constant 0 : index
    %c128_122 = arith.constant 128 : index
    %384 = vector.load %arg3[%c0_120, %c0_121, %c128_122] : memref<2x32x384xf32, #tpu.memory_space<vmem>>, vector<1x32x32xf32>
    %385 = vector.shape_cast %384 : vector<1x32x32xf32> to vector<32x32xf32>
    %cst_123 = arith.constant dense<0.000000e+00> : vector<16x32xf32>
    %386 = tpu.matmul %383, %385, %cst_123 {dimension_numbers = #tpu.dot_dimension_numbers<[1], [0], [0], [1], [0, 0, 1, 1], [], []>} : vector<16x32xf32>, vector<32x32xf32>, vector<16x32xf32> -> vector<16x32xf32>
    %c0_124 = arith.constant 0 : index
    %c0_125 = arith.constant 0 : index
    %c192 = arith.constant 192 : index
    %387 = vector.load %arg4[%c0_124, %c0_125, %c192] : memref<3x1x544xf32, #tpu.memory_space<vmem>>, vector<1x1x32xf32>
    %388 = vector.shape_cast %387 : vector<1x1x32xf32> to vector<1x32xf32>
    %389 = vector.broadcast %388 : vector<1x32xf32> to vector<16x32xf32>
    %390 = arith.addf %386, %389 : vector<16x32xf32>
    %c0_126 = arith.constant 0 : index
    %c0_127 = arith.constant 0 : index
    %c160_128 = arith.constant 160 : index
    %391 = vector.load %arg3[%c0_126, %c0_127, %c160_128] : memref<2x32x384xf32, #tpu.memory_space<vmem>>, vector<1x32x64xf32>
    %392 = vector.shape_cast %391 : vector<1x32x64xf32> to vector<32x64xf32>
    %cst_129 = arith.constant dense<0.000000e+00> : vector<24x64xf32>
    %393 = tpu.matmul %1, %392, %cst_129 {dimension_numbers = #tpu.dot_dimension_numbers<[1], [0], [0], [1], [0, 0, 1, 1], [], []>} : vector<24x32xf32>, vector<32x64xf32>, vector<24x64xf32> -> vector<24x64xf32>
    %c0_130 = arith.constant 0 : index
    %c0_131 = arith.constant 0 : index
    %c224 = arith.constant 224 : index
    %394 = vector.load %arg4[%c0_130, %c0_131, %c224] : memref<3x1x544xf32, #tpu.memory_space<vmem>>, vector<1x1x64xf32>
    %395 = vector.shape_cast %394 : vector<1x1x64xf32> to vector<1x64xf32>
    %396 = vector.broadcast %395 : vector<1x64xf32> to vector<24x64xf32>
    %397 = arith.addf %393, %396 : vector<24x64xf32>
    %398 = vector.extract_strided_slice %397 {offsets = [0, 0], sizes = [24, 32], strides = [1, 1]} : vector<24x64xf32> to vector<24x32xf32>
    %399 = vector.extract_strided_slice %397 {offsets = [0, 32], sizes = [24, 32], strides = [1, 1]} : vector<24x64xf32> to vector<24x32xf32>
    %c0_132 = arith.constant 0 : index
    %c0_133 = arith.constant 0 : index
    %c224_134 = arith.constant 224 : index
    %400 = vector.load %arg3[%c0_132, %c0_133, %c224_134] : memref<2x32x384xf32, #tpu.memory_space<vmem>>, vector<1x32x32xf32>
    %401 = vector.shape_cast %400 : vector<1x32x32xf32> to vector<32x32xf32>
    %c0_135 = arith.constant 0 : index
    %c0_136 = arith.constant 0 : index
    %c288 = arith.constant 288 : index
    %402 = vector.load %arg4[%c0_135, %c0_136, %c288] : memref<3x1x544xf32, #tpu.memory_space<vmem>>, vector<1x1x32xf32>
    %403 = vector.shape_cast %402 : vector<1x1x32xf32> to vector<1x32xf32>
    %404 = tpu.concatenate %390, %390, %390, %390 in 0 : vector<16x32xf32>, vector<16x32xf32>, vector<16x32xf32>, vector<16x32xf32> -> vector<64x32xf32>
    %405 = arith.mulf %404, %55 : vector<64x32xf32>
    %406 = tpu.concatenate %398, %398, %398, %398 in 0 : vector<24x32xf32>, vector<24x32xf32>, vector<24x32xf32>, vector<24x32xf32> -> vector<96x32xf32>
    %407 = arith.mulf %406, %109 : vector<96x32xf32>
    %408 = tpu.concatenate %399, %399, %399, %399 in 0 : vector<24x32xf32>, vector<24x32xf32>, vector<24x32xf32>, vector<24x32xf32> -> vector<96x32xf32>
    %409 = arith.mulf %408, %109 : vector<96x32xf32>
    %cst_137 = arith.constant dense<0.000000e+00> : vector<64x96xf32>
    %410 = tpu.matmul %405, %407, %cst_137 {dimension_numbers = #tpu.dot_dimension_numbers<[1], [1], [0], [0], [0, 0, 1, 0], [], []>} : vector<64x32xf32>, vector<96x32xf32>, vector<64x96xf32> -> vector<64x96xf32>
    %411 = arith.addf %410, %313 : vector<64x96xf32>
    %cst_138 = arith.constant dense<0xFF800000> : vector<64xf32>
    %412 = vector.multi_reduction <maximumf>, %411, %cst_138 [1] : vector<64x96xf32> to vector<64xf32>
    %413 = vector.shape_cast %412 : vector<64xf32> to vector<64x1xf32>
    %414 = vector.broadcast %413 : vector<64x1xf32> to vector<64x96xf32>
    %415 = arith.subf %411, %414 : vector<64x96xf32>
    %416 = math.exp %415 : vector<64x96xf32>
    %cst_139 = arith.constant dense<0.000000e+00> : vector<64xf32>
    %417 = vector.multi_reduction <add>, %416, %cst_139 [1] : vector<64x96xf32> to vector<64xf32>
    %418 = vector.shape_cast %417 : vector<64xf32> to vector<64x1xf32>
    %419 = tpu.reciprocal %418 : vector<64x1xf32> -> vector<64x1xf32>
    %420 = vector.broadcast %419 : vector<64x1xf32> to vector<64x96xf32>
    %421 = arith.mulf %416, %420 : vector<64x96xf32>
    %cst_140 = arith.constant dense<0.000000e+00> : vector<64x32xf32>
    %422 = tpu.matmul %421, %409, %cst_140 {dimension_numbers = #tpu.dot_dimension_numbers<[1], [0], [0], [1], [0, 0, 1, 1], [], []>} : vector<64x96xf32>, vector<96x32xf32>, vector<64x32xf32> -> vector<64x32xf32>
    %423 = vector.extract_strided_slice %422 {offsets = [0, 0], sizes = [16, 32], strides = [1, 1]} : vector<64x32xf32> to vector<16x32xf32>
    %424 = vector.extract_strided_slice %422 {offsets = [16, 0], sizes = [16, 32], strides = [1, 1]} : vector<64x32xf32> to vector<16x32xf32>
    %425 = arith.addf %423, %424 : vector<16x32xf32>
    %426 = vector.extract_strided_slice %422 {offsets = [32, 0], sizes = [16, 32], strides = [1, 1]} : vector<64x32xf32> to vector<16x32xf32>
    %427 = arith.addf %425, %426 : vector<16x32xf32>
    %428 = vector.extract_strided_slice %422 {offsets = [48, 0], sizes = [16, 32], strides = [1, 1]} : vector<64x32xf32> to vector<16x32xf32>
    %429 = arith.addf %427, %428 : vector<16x32xf32>
    %cst_141 = arith.constant dense<0.000000e+00> : vector<16x32xf32>
    %430 = tpu.matmul %429, %401, %cst_141 {dimension_numbers = #tpu.dot_dimension_numbers<[1], [0], [0], [1], [0, 0, 1, 1], [], []>} : vector<16x32xf32>, vector<32x32xf32>, vector<16x32xf32> -> vector<16x32xf32>
    %431 = vector.broadcast %403 : vector<1x32xf32> to vector<16x32xf32>
    %432 = arith.addf %430, %431 : vector<16x32xf32>
    %433 = arith.addf %383, %432 : vector<16x32xf32>
    %c0_142 = arith.constant 0 : index
    %c0_143 = arith.constant 0 : index
    %c320 = arith.constant 320 : index
    %434 = vector.load %arg4[%c0_142, %c0_143, %c320] : memref<3x1x544xf32, #tpu.memory_space<vmem>>, vector<1x1x32xf32>
    %435 = vector.shape_cast %434 : vector<1x1x32xf32> to vector<1x32xf32>
    %c0_144 = arith.constant 0 : index
    %c0_145 = arith.constant 0 : index
    %c352 = arith.constant 352 : index
    %436 = vector.load %arg4[%c0_144, %c0_145, %c352] : memref<3x1x544xf32, #tpu.memory_space<vmem>>, vector<1x1x32xf32>
    %437 = vector.shape_cast %436 : vector<1x1x32xf32> to vector<1x32xf32>
    %cst_146 = arith.constant dense<0.000000e+00> : vector<16xf32>
    %438 = vector.multi_reduction <add>, %433, %cst_146 [1] : vector<16x32xf32> to vector<16xf32>
    %439 = vector.shape_cast %438 : vector<16xf32> to vector<16x1xf32>
    %cst_147 = arith.constant 3.200000e+01 : f32
    %440 = vector.broadcast %cst_147 : f32 to vector<16x1xf32>
    %441 = arith.divf %439, %440 : vector<16x1xf32>
    %442 = vector.broadcast %441 : vector<16x1xf32> to vector<16x32xf32>
    %443 = arith.subf %433, %442 : vector<16x32xf32>
    %444 = arith.mulf %443, %443 : vector<16x32xf32>
    %cst_148 = arith.constant dense<0.000000e+00> : vector<16xf32>
    %445 = vector.multi_reduction <add>, %444, %cst_148 [1] : vector<16x32xf32> to vector<16xf32>
    %446 = vector.shape_cast %445 : vector<16xf32> to vector<16x1xf32>
    %cst_149 = arith.constant 3.200000e+01 : f32
    %447 = vector.broadcast %cst_149 : f32 to vector<16x1xf32>
    %448 = arith.divf %446, %447 : vector<16x1xf32>
    %449 = vector.broadcast %441 : vector<16x1xf32> to vector<16x32xf32>
    %450 = arith.subf %433, %449 : vector<16x32xf32>
    %cst_150 = arith.constant 9.99999974E-6 : f32
    %451 = vector.broadcast %cst_150 : f32 to vector<16x1xf32>
    %452 = arith.addf %448, %451 : vector<16x1xf32>
    %453 = math.rsqrt %452 : vector<16x1xf32>
    %454 = vector.broadcast %453 : vector<16x1xf32> to vector<16x32xf32>
    %455 = arith.mulf %450, %454 : vector<16x32xf32>
    %456 = vector.broadcast %435 : vector<1x32xf32> to vector<16x32xf32>
    %457 = arith.mulf %455, %456 : vector<16x32xf32>
    %458 = vector.broadcast %437 : vector<1x32xf32> to vector<16x32xf32>
    %459 = arith.addf %457, %458 : vector<16x32xf32>
    %c0_151 = arith.constant 0 : index
    %c0_152 = arith.constant 0 : index
    %c256 = arith.constant 256 : index
    %460 = vector.load %arg3[%c0_151, %c0_152, %c256] : memref<2x32x384xf32, #tpu.memory_space<vmem>>, vector<1x32x64xf32>
    %461 = vector.shape_cast %460 : vector<1x32x64xf32> to vector<32x64xf32>
    %cst_153 = arith.constant dense<0.000000e+00> : vector<16x64xf32>
    %462 = tpu.matmul %459, %461, %cst_153 {dimension_numbers = #tpu.dot_dimension_numbers<[1], [0], [0], [1], [0, 0, 1, 1], [], []>} : vector<16x32xf32>, vector<32x64xf32>, vector<16x64xf32> -> vector<16x64xf32>
    %c0_154 = arith.constant 0 : index
    %c0_155 = arith.constant 0 : index
    %c384 = arith.constant 384 : index
    %463 = vector.load %arg4[%c0_154, %c0_155, %c384] : memref<3x1x544xf32, #tpu.memory_space<vmem>>, vector<1x1x64xf32>
    %464 = vector.shape_cast %463 : vector<1x1x64xf32> to vector<1x64xf32>
    %465 = vector.broadcast %464 : vector<1x64xf32> to vector<16x64xf32>
    %466 = arith.addf %462, %465 : vector<16x64xf32>
    %cst_156 = arith.constant 0.000000e+00 : f32
    %467 = vector.broadcast %cst_156 : f32 to vector<16x64xf32>
    %468 = arith.maximumf %466, %467 : vector<16x64xf32>
    %c0_157 = arith.constant 0 : index
    %c0_158 = arith.constant 0 : index
    %c320_159 = arith.constant 320 : index
    %469 = vector.load %arg3[%c0_157, %c0_158, %c320_159] : memref<2x32x384xf32, #tpu.memory_space<vmem>>, vector<1x32x64xf32>
    %470 = vector.shape_cast %469 : vector<1x32x64xf32> to vector<32x64xf32>
    %cst_160 = arith.constant dense<0.000000e+00> : vector<16x32xf32>
    %471 = tpu.matmul %468, %470, %cst_160 {dimension_numbers = #tpu.dot_dimension_numbers<[1], [1], [0], [0], [0, 0, 1, 0], [], []>} : vector<16x64xf32>, vector<32x64xf32>, vector<16x32xf32> -> vector<16x32xf32>
    %c0_161 = arith.constant 0 : index
    %c0_162 = arith.constant 0 : index
    %c448 = arith.constant 448 : index
    %472 = vector.load %arg4[%c0_161, %c0_162, %c448] : memref<3x1x544xf32, #tpu.memory_space<vmem>>, vector<1x1x32xf32>
    %473 = vector.shape_cast %472 : vector<1x1x32xf32> to vector<1x32xf32>
    %474 = vector.broadcast %473 : vector<1x32xf32> to vector<16x32xf32>
    %475 = arith.addf %471, %474 : vector<16x32xf32>
    %476 = arith.addf %459, %475 : vector<16x32xf32>
    %c0_163 = arith.constant 0 : index
    %c0_164 = arith.constant 0 : index
    %c480 = arith.constant 480 : index
    %477 = vector.load %arg4[%c0_163, %c0_164, %c480] : memref<3x1x544xf32, #tpu.memory_space<vmem>>, vector<1x1x32xf32>
    %478 = vector.shape_cast %477 : vector<1x1x32xf32> to vector<1x32xf32>
    %c0_165 = arith.constant 0 : index
    %c0_166 = arith.constant 0 : index
    %c512 = arith.constant 512 : index
    %479 = vector.load %arg4[%c0_165, %c0_166, %c512] : memref<3x1x544xf32, #tpu.memory_space<vmem>>, vector<1x1x32xf32>
    %480 = vector.shape_cast %479 : vector<1x1x32xf32> to vector<1x32xf32>
    %cst_167 = arith.constant dense<0.000000e+00> : vector<16xf32>
    %481 = vector.multi_reduction <add>, %476, %cst_167 [1] : vector<16x32xf32> to vector<16xf32>
    %482 = vector.shape_cast %481 : vector<16xf32> to vector<16x1xf32>
    %cst_168 = arith.constant 3.200000e+01 : f32
    %483 = vector.broadcast %cst_168 : f32 to vector<16x1xf32>
    %484 = arith.divf %482, %483 : vector<16x1xf32>
    %485 = vector.broadcast %484 : vector<16x1xf32> to vector<16x32xf32>
    %486 = arith.subf %476, %485 : vector<16x32xf32>
    %487 = arith.mulf %486, %486 : vector<16x32xf32>
    %cst_169 = arith.constant dense<0.000000e+00> : vector<16xf32>
    %488 = vector.multi_reduction <add>, %487, %cst_169 [1] : vector<16x32xf32> to vector<16xf32>
    %489 = vector.shape_cast %488 : vector<16xf32> to vector<16x1xf32>
    %cst_170 = arith.constant 3.200000e+01 : f32
    %490 = vector.broadcast %cst_170 : f32 to vector<16x1xf32>
    %491 = arith.divf %489, %490 : vector<16x1xf32>
    %492 = vector.broadcast %484 : vector<16x1xf32> to vector<16x32xf32>
    %493 = arith.subf %476, %492 : vector<16x32xf32>
    %cst_171 = arith.constant 9.99999974E-6 : f32
    %494 = vector.broadcast %cst_171 : f32 to vector<16x1xf32>
    %495 = arith.addf %491, %494 : vector<16x1xf32>
    %496 = math.rsqrt %495 : vector<16x1xf32>
    %497 = vector.broadcast %496 : vector<16x1xf32> to vector<16x32xf32>
    %498 = arith.mulf %493, %497 : vector<16x32xf32>
    %499 = vector.broadcast %478 : vector<1x32xf32> to vector<16x32xf32>
    %500 = arith.mulf %498, %499 : vector<16x32xf32>
    %501 = vector.broadcast %480 : vector<1x32xf32> to vector<16x32xf32>
    %502 = arith.addf %500, %501 : vector<16x32xf32>
    %c1 = arith.constant 1 : index
    %c0_172 = arith.constant 0 : index
    %c0_173 = arith.constant 0 : index
    %503 = vector.load %arg3[%c1, %c0_172, %c0_173] : memref<2x32x384xf32, #tpu.memory_space<vmem>>, vector<1x32x96xf32>
    %504 = vector.shape_cast %503 : vector<1x32x96xf32> to vector<32x96xf32>
    %cst_174 = arith.constant dense<0.000000e+00> : vector<16x96xf32>
    %505 = tpu.matmul %502, %504, %cst_174 {dimension_numbers = #tpu.dot_dimension_numbers<[1], [0], [0], [1], [0, 0, 1, 1], [], []>} : vector<16x32xf32>, vector<32x96xf32>, vector<16x96xf32> -> vector<16x96xf32>
    %c1_175 = arith.constant 1 : index
    %c0_176 = arith.constant 0 : index
    %c0_177 = arith.constant 0 : index
    %506 = vector.load %arg4[%c1_175, %c0_176, %c0_177] : memref<3x1x544xf32, #tpu.memory_space<vmem>>, vector<1x1x96xf32>
    %507 = vector.shape_cast %506 : vector<1x1x96xf32> to vector<1x96xf32>
    %508 = vector.broadcast %507 : vector<1x96xf32> to vector<16x96xf32>
    %509 = arith.addf %505, %508 : vector<16x96xf32>
    %510 = vector.extract_strided_slice %509 {offsets = [0, 0], sizes = [16, 32], strides = [1, 1]} : vector<16x96xf32> to vector<16x32xf32>
    %511 = vector.extract_strided_slice %509 {offsets = [0, 32], sizes = [16, 32], strides = [1, 1]} : vector<16x96xf32> to vector<16x32xf32>
    %512 = vector.extract_strided_slice %509 {offsets = [0, 64], sizes = [16, 32], strides = [1, 1]} : vector<16x96xf32> to vector<16x32xf32>
    %c1_178 = arith.constant 1 : index
    %c0_179 = arith.constant 0 : index
    %c96_180 = arith.constant 96 : index
    %513 = vector.load %arg3[%c1_178, %c0_179, %c96_180] : memref<2x32x384xf32, #tpu.memory_space<vmem>>, vector<1x32x32xf32>
    %514 = vector.shape_cast %513 : vector<1x32x32xf32> to vector<32x32xf32>
    %c1_181 = arith.constant 1 : index
    %c0_182 = arith.constant 0 : index
    %c96_183 = arith.constant 96 : index
    %515 = vector.load %arg4[%c1_181, %c0_182, %c96_183] : memref<3x1x544xf32, #tpu.memory_space<vmem>>, vector<1x1x32xf32>
    %516 = vector.shape_cast %515 : vector<1x1x32xf32> to vector<1x32xf32>
    %517 = tpu.concatenate %510, %510, %510, %510 in 0 : vector<16x32xf32>, vector<16x32xf32>, vector<16x32xf32>, vector<16x32xf32> -> vector<64x32xf32>
    %518 = arith.mulf %517, %55 : vector<64x32xf32>
    %519 = tpu.concatenate %511, %511, %511, %511 in 0 : vector<16x32xf32>, vector<16x32xf32>, vector<16x32xf32>, vector<16x32xf32> -> vector<64x32xf32>
    %520 = arith.mulf %519, %55 : vector<64x32xf32>
    %521 = tpu.concatenate %512, %512, %512, %512 in 0 : vector<16x32xf32>, vector<16x32xf32>, vector<16x32xf32>, vector<16x32xf32> -> vector<64x32xf32>
    %522 = arith.mulf %521, %55 : vector<64x32xf32>
    %cst_184 = arith.constant dense<0.000000e+00> : vector<64x64xf32>
    %523 = tpu.matmul %518, %520, %cst_184 {dimension_numbers = #tpu.dot_dimension_numbers<[1], [1], [0], [0], [0, 0, 1, 0], [], []>} : vector<64x32xf32>, vector<64x32xf32>, vector<64x64xf32> -> vector<64x64xf32>
    %524 = arith.addf %523, %211 : vector<64x64xf32>
    %cst_185 = arith.constant dense<0xFF800000> : vector<64xf32>
    %525 = vector.multi_reduction <maximumf>, %524, %cst_185 [1] : vector<64x64xf32> to vector<64xf32>
    %526 = vector.shape_cast %525 : vector<64xf32> to vector<64x1xf32>
    %527 = vector.broadcast %526 : vector<64x1xf32> to vector<64x64xf32>
    %528 = arith.subf %524, %527 : vector<64x64xf32>
    %529 = math.exp %528 : vector<64x64xf32>
    %cst_186 = arith.constant dense<0.000000e+00> : vector<64xf32>
    %530 = vector.multi_reduction <add>, %529, %cst_186 [1] : vector<64x64xf32> to vector<64xf32>
    %531 = vector.shape_cast %530 : vector<64xf32> to vector<64x1xf32>
    %532 = tpu.reciprocal %531 : vector<64x1xf32> -> vector<64x1xf32>
    %533 = vector.broadcast %532 : vector<64x1xf32> to vector<64x64xf32>
    %534 = arith.mulf %529, %533 : vector<64x64xf32>
    %cst_187 = arith.constant dense<0.000000e+00> : vector<64x32xf32>
    %535 = tpu.matmul %534, %522, %cst_187 {dimension_numbers = #tpu.dot_dimension_numbers<[1], [0], [0], [1], [0, 0, 1, 1], [], []>} : vector<64x64xf32>, vector<64x32xf32>, vector<64x32xf32> -> vector<64x32xf32>
    %536 = vector.extract_strided_slice %535 {offsets = [0, 0], sizes = [16, 32], strides = [1, 1]} : vector<64x32xf32> to vector<16x32xf32>
    %537 = vector.extract_strided_slice %535 {offsets = [16, 0], sizes = [16, 32], strides = [1, 1]} : vector<64x32xf32> to vector<16x32xf32>
    %538 = arith.addf %536, %537 : vector<16x32xf32>
    %539 = vector.extract_strided_slice %535 {offsets = [32, 0], sizes = [16, 32], strides = [1, 1]} : vector<64x32xf32> to vector<16x32xf32>
    %540 = arith.addf %538, %539 : vector<16x32xf32>
    %541 = vector.extract_strided_slice %535 {offsets = [48, 0], sizes = [16, 32], strides = [1, 1]} : vector<64x32xf32> to vector<16x32xf32>
    %542 = arith.addf %540, %541 : vector<16x32xf32>
    %cst_188 = arith.constant dense<0.000000e+00> : vector<16x32xf32>
    %543 = tpu.matmul %542, %514, %cst_188 {dimension_numbers = #tpu.dot_dimension_numbers<[1], [0], [0], [1], [0, 0, 1, 1], [], []>} : vector<16x32xf32>, vector<32x32xf32>, vector<16x32xf32> -> vector<16x32xf32>
    %544 = vector.broadcast %516 : vector<1x32xf32> to vector<16x32xf32>
    %545 = arith.addf %543, %544 : vector<16x32xf32>
    %546 = arith.addf %502, %545 : vector<16x32xf32>
    %c1_189 = arith.constant 1 : index
    %c0_190 = arith.constant 0 : index
    %c128_191 = arith.constant 128 : index
    %547 = vector.load %arg4[%c1_189, %c0_190, %c128_191] : memref<3x1x544xf32, #tpu.memory_space<vmem>>, vector<1x1x32xf32>
    %548 = vector.shape_cast %547 : vector<1x1x32xf32> to vector<1x32xf32>
    %c1_192 = arith.constant 1 : index
    %c0_193 = arith.constant 0 : index
    %c160_194 = arith.constant 160 : index
    %549 = vector.load %arg4[%c1_192, %c0_193, %c160_194] : memref<3x1x544xf32, #tpu.memory_space<vmem>>, vector<1x1x32xf32>
    %550 = vector.shape_cast %549 : vector<1x1x32xf32> to vector<1x32xf32>
    %cst_195 = arith.constant dense<0.000000e+00> : vector<16xf32>
    %551 = vector.multi_reduction <add>, %546, %cst_195 [1] : vector<16x32xf32> to vector<16xf32>
    %552 = vector.shape_cast %551 : vector<16xf32> to vector<16x1xf32>
    %cst_196 = arith.constant 3.200000e+01 : f32
    %553 = vector.broadcast %cst_196 : f32 to vector<16x1xf32>
    %554 = arith.divf %552, %553 : vector<16x1xf32>
    %555 = vector.broadcast %554 : vector<16x1xf32> to vector<16x32xf32>
    %556 = arith.subf %546, %555 : vector<16x32xf32>
    %557 = arith.mulf %556, %556 : vector<16x32xf32>
    %cst_197 = arith.constant dense<0.000000e+00> : vector<16xf32>
    %558 = vector.multi_reduction <add>, %557, %cst_197 [1] : vector<16x32xf32> to vector<16xf32>
    %559 = vector.shape_cast %558 : vector<16xf32> to vector<16x1xf32>
    %cst_198 = arith.constant 3.200000e+01 : f32
    %560 = vector.broadcast %cst_198 : f32 to vector<16x1xf32>
    %561 = arith.divf %559, %560 : vector<16x1xf32>
    %562 = vector.broadcast %554 : vector<16x1xf32> to vector<16x32xf32>
    %563 = arith.subf %546, %562 : vector<16x32xf32>
    %cst_199 = arith.constant 9.99999974E-6 : f32
    %564 = vector.broadcast %cst_199 : f32 to vector<16x1xf32>
    %565 = arith.addf %561, %564 : vector<16x1xf32>
    %566 = math.rsqrt %565 : vector<16x1xf32>
    %567 = vector.broadcast %566 : vector<16x1xf32> to vector<16x32xf32>
    %568 = arith.mulf %563, %567 : vector<16x32xf32>
    %569 = vector.broadcast %548 : vector<1x32xf32> to vector<16x32xf32>
    %570 = arith.mulf %568, %569 : vector<16x32xf32>
    %571 = vector.broadcast %550 : vector<1x32xf32> to vector<16x32xf32>
    %572 = arith.addf %570, %571 : vector<16x32xf32>
    %c1_200 = arith.constant 1 : index
    %c0_201 = arith.constant 0 : index
    %c128_202 = arith.constant 128 : index
    %573 = vector.load %arg3[%c1_200, %c0_201, %c128_202] : memref<2x32x384xf32, #tpu.memory_space<vmem>>, vector<1x32x32xf32>
    %574 = vector.shape_cast %573 : vector<1x32x32xf32> to vector<32x32xf32>
    %cst_203 = arith.constant dense<0.000000e+00> : vector<16x32xf32>
    %575 = tpu.matmul %572, %574, %cst_203 {dimension_numbers = #tpu.dot_dimension_numbers<[1], [0], [0], [1], [0, 0, 1, 1], [], []>} : vector<16x32xf32>, vector<32x32xf32>, vector<16x32xf32> -> vector<16x32xf32>
    %c1_204 = arith.constant 1 : index
    %c0_205 = arith.constant 0 : index
    %c192_206 = arith.constant 192 : index
    %576 = vector.load %arg4[%c1_204, %c0_205, %c192_206] : memref<3x1x544xf32, #tpu.memory_space<vmem>>, vector<1x1x32xf32>
    %577 = vector.shape_cast %576 : vector<1x1x32xf32> to vector<1x32xf32>
    %578 = vector.broadcast %577 : vector<1x32xf32> to vector<16x32xf32>
    %579 = arith.addf %575, %578 : vector<16x32xf32>
    %c1_207 = arith.constant 1 : index
    %c0_208 = arith.constant 0 : index
    %c160_209 = arith.constant 160 : index
    %580 = vector.load %arg3[%c1_207, %c0_208, %c160_209] : memref<2x32x384xf32, #tpu.memory_space<vmem>>, vector<1x32x64xf32>
    %581 = vector.shape_cast %580 : vector<1x32x64xf32> to vector<32x64xf32>
    %cst_210 = arith.constant dense<0.000000e+00> : vector<24x64xf32>
    %582 = tpu.matmul %1, %581, %cst_210 {dimension_numbers = #tpu.dot_dimension_numbers<[1], [0], [0], [1], [0, 0, 1, 1], [], []>} : vector<24x32xf32>, vector<32x64xf32>, vector<24x64xf32> -> vector<24x64xf32>
    %c1_211 = arith.constant 1 : index
    %c0_212 = arith.constant 0 : index
    %c224_213 = arith.constant 224 : index
    %583 = vector.load %arg4[%c1_211, %c0_212, %c224_213] : memref<3x1x544xf32, #tpu.memory_space<vmem>>, vector<1x1x64xf32>
    %584 = vector.shape_cast %583 : vector<1x1x64xf32> to vector<1x64xf32>
    %585 = vector.broadcast %584 : vector<1x64xf32> to vector<24x64xf32>
    %586 = arith.addf %582, %585 : vector<24x64xf32>
    %587 = vector.extract_strided_slice %586 {offsets = [0, 0], sizes = [24, 32], strides = [1, 1]} : vector<24x64xf32> to vector<24x32xf32>
    %588 = vector.extract_strided_slice %586 {offsets = [0, 32], sizes = [24, 32], strides = [1, 1]} : vector<24x64xf32> to vector<24x32xf32>
    %c1_214 = arith.constant 1 : index
    %c0_215 = arith.constant 0 : index
    %c224_216 = arith.constant 224 : index
    %589 = vector.load %arg3[%c1_214, %c0_215, %c224_216] : memref<2x32x384xf32, #tpu.memory_space<vmem>>, vector<1x32x32xf32>
    %590 = vector.shape_cast %589 : vector<1x32x32xf32> to vector<32x32xf32>
    %c1_217 = arith.constant 1 : index
    %c0_218 = arith.constant 0 : index
    %c288_219 = arith.constant 288 : index
    %591 = vector.load %arg4[%c1_217, %c0_218, %c288_219] : memref<3x1x544xf32, #tpu.memory_space<vmem>>, vector<1x1x32xf32>
    %592 = vector.shape_cast %591 : vector<1x1x32xf32> to vector<1x32xf32>
    %593 = tpu.concatenate %579, %579, %579, %579 in 0 : vector<16x32xf32>, vector<16x32xf32>, vector<16x32xf32>, vector<16x32xf32> -> vector<64x32xf32>
    %594 = arith.mulf %593, %55 : vector<64x32xf32>
    %595 = tpu.concatenate %587, %587, %587, %587 in 0 : vector<24x32xf32>, vector<24x32xf32>, vector<24x32xf32>, vector<24x32xf32> -> vector<96x32xf32>
    %596 = arith.mulf %595, %109 : vector<96x32xf32>
    %597 = tpu.concatenate %588, %588, %588, %588 in 0 : vector<24x32xf32>, vector<24x32xf32>, vector<24x32xf32>, vector<24x32xf32> -> vector<96x32xf32>
    %598 = arith.mulf %597, %109 : vector<96x32xf32>
    %cst_220 = arith.constant dense<0.000000e+00> : vector<64x96xf32>
    %599 = tpu.matmul %594, %596, %cst_220 {dimension_numbers = #tpu.dot_dimension_numbers<[1], [1], [0], [0], [0, 0, 1, 0], [], []>} : vector<64x32xf32>, vector<96x32xf32>, vector<64x96xf32> -> vector<64x96xf32>
    %600 = arith.addf %599, %313 : vector<64x96xf32>
    %cst_221 = arith.constant dense<0xFF800000> : vector<64xf32>
    %601 = vector.multi_reduction <maximumf>, %600, %cst_221 [1] : vector<64x96xf32> to vector<64xf32>
    %602 = vector.shape_cast %601 : vector<64xf32> to vector<64x1xf32>
    %603 = vector.broadcast %602 : vector<64x1xf32> to vector<64x96xf32>
    %604 = arith.subf %600, %603 : vector<64x96xf32>
    %605 = math.exp %604 : vector<64x96xf32>
    %cst_222 = arith.constant dense<0.000000e+00> : vector<64xf32>
    %606 = vector.multi_reduction <add>, %605, %cst_222 [1] : vector<64x96xf32> to vector<64xf32>
    %607 = vector.shape_cast %606 : vector<64xf32> to vector<64x1xf32>
    %608 = tpu.reciprocal %607 : vector<64x1xf32> -> vector<64x1xf32>
    %609 = vector.broadcast %608 : vector<64x1xf32> to vector<64x96xf32>
    %610 = arith.mulf %605, %609 : vector<64x96xf32>
    %cst_223 = arith.constant dense<0.000000e+00> : vector<64x32xf32>
    %611 = tpu.matmul %610, %598, %cst_223 {dimension_numbers = #tpu.dot_dimension_numbers<[1], [0], [0], [1], [0, 0, 1, 1], [], []>} : vector<64x96xf32>, vector<96x32xf32>, vector<64x32xf32> -> vector<64x32xf32>
    %612 = vector.extract_strided_slice %611 {offsets = [0, 0], sizes = [16, 32], strides = [1, 1]} : vector<64x32xf32> to vector<16x32xf32>
    %613 = vector.extract_strided_slice %611 {offsets = [16, 0], sizes = [16, 32], strides = [1, 1]} : vector<64x32xf32> to vector<16x32xf32>
    %614 = arith.addf %612, %613 : vector<16x32xf32>
    %615 = vector.extract_strided_slice %611 {offsets = [32, 0], sizes = [16, 32], strides = [1, 1]} : vector<64x32xf32> to vector<16x32xf32>
    %616 = arith.addf %614, %615 : vector<16x32xf32>
    %617 = vector.extract_strided_slice %611 {offsets = [48, 0], sizes = [16, 32], strides = [1, 1]} : vector<64x32xf32> to vector<16x32xf32>
    %618 = arith.addf %616, %617 : vector<16x32xf32>
    %cst_224 = arith.constant dense<0.000000e+00> : vector<16x32xf32>
    %619 = tpu.matmul %618, %590, %cst_224 {dimension_numbers = #tpu.dot_dimension_numbers<[1], [0], [0], [1], [0, 0, 1, 1], [], []>} : vector<16x32xf32>, vector<32x32xf32>, vector<16x32xf32> -> vector<16x32xf32>
    %620 = vector.broadcast %592 : vector<1x32xf32> to vector<16x32xf32>
    %621 = arith.addf %619, %620 : vector<16x32xf32>
    %622 = arith.addf %572, %621 : vector<16x32xf32>
    %c1_225 = arith.constant 1 : index
    %c0_226 = arith.constant 0 : index
    %c320_227 = arith.constant 320 : index
    %623 = vector.load %arg4[%c1_225, %c0_226, %c320_227] : memref<3x1x544xf32, #tpu.memory_space<vmem>>, vector<1x1x32xf32>
    %624 = vector.shape_cast %623 : vector<1x1x32xf32> to vector<1x32xf32>
    %c1_228 = arith.constant 1 : index
    %c0_229 = arith.constant 0 : index
    %c352_230 = arith.constant 352 : index
    %625 = vector.load %arg4[%c1_228, %c0_229, %c352_230] : memref<3x1x544xf32, #tpu.memory_space<vmem>>, vector<1x1x32xf32>
    %626 = vector.shape_cast %625 : vector<1x1x32xf32> to vector<1x32xf32>
    %cst_231 = arith.constant dense<0.000000e+00> : vector<16xf32>
    %627 = vector.multi_reduction <add>, %622, %cst_231 [1] : vector<16x32xf32> to vector<16xf32>
    %628 = vector.shape_cast %627 : vector<16xf32> to vector<16x1xf32>
    %cst_232 = arith.constant 3.200000e+01 : f32
    %629 = vector.broadcast %cst_232 : f32 to vector<16x1xf32>
    %630 = arith.divf %628, %629 : vector<16x1xf32>
    %631 = vector.broadcast %630 : vector<16x1xf32> to vector<16x32xf32>
    %632 = arith.subf %622, %631 : vector<16x32xf32>
    %633 = arith.mulf %632, %632 : vector<16x32xf32>
    %cst_233 = arith.constant dense<0.000000e+00> : vector<16xf32>
    %634 = vector.multi_reduction <add>, %633, %cst_233 [1] : vector<16x32xf32> to vector<16xf32>
    %635 = vector.shape_cast %634 : vector<16xf32> to vector<16x1xf32>
    %cst_234 = arith.constant 3.200000e+01 : f32
    %636 = vector.broadcast %cst_234 : f32 to vector<16x1xf32>
    %637 = arith.divf %635, %636 : vector<16x1xf32>
    %638 = vector.broadcast %630 : vector<16x1xf32> to vector<16x32xf32>
    %639 = arith.subf %622, %638 : vector<16x32xf32>
    %cst_235 = arith.constant 9.99999974E-6 : f32
    %640 = vector.broadcast %cst_235 : f32 to vector<16x1xf32>
    %641 = arith.addf %637, %640 : vector<16x1xf32>
    %642 = math.rsqrt %641 : vector<16x1xf32>
    %643 = vector.broadcast %642 : vector<16x1xf32> to vector<16x32xf32>
    %644 = arith.mulf %639, %643 : vector<16x32xf32>
    %645 = vector.broadcast %624 : vector<1x32xf32> to vector<16x32xf32>
    %646 = arith.mulf %644, %645 : vector<16x32xf32>
    %647 = vector.broadcast %626 : vector<1x32xf32> to vector<16x32xf32>
    %648 = arith.addf %646, %647 : vector<16x32xf32>
    %c1_236 = arith.constant 1 : index
    %c0_237 = arith.constant 0 : index
    %c256_238 = arith.constant 256 : index
    %649 = vector.load %arg3[%c1_236, %c0_237, %c256_238] : memref<2x32x384xf32, #tpu.memory_space<vmem>>, vector<1x32x64xf32>
    %650 = vector.shape_cast %649 : vector<1x32x64xf32> to vector<32x64xf32>
    %cst_239 = arith.constant dense<0.000000e+00> : vector<16x64xf32>
    %651 = tpu.matmul %648, %650, %cst_239 {dimension_numbers = #tpu.dot_dimension_numbers<[1], [0], [0], [1], [0, 0, 1, 1], [], []>} : vector<16x32xf32>, vector<32x64xf32>, vector<16x64xf32> -> vector<16x64xf32>
    %c1_240 = arith.constant 1 : index
    %c0_241 = arith.constant 0 : index
    %c384_242 = arith.constant 384 : index
    %652 = vector.load %arg4[%c1_240, %c0_241, %c384_242] : memref<3x1x544xf32, #tpu.memory_space<vmem>>, vector<1x1x64xf32>
    %653 = vector.shape_cast %652 : vector<1x1x64xf32> to vector<1x64xf32>
    %654 = vector.broadcast %653 : vector<1x64xf32> to vector<16x64xf32>
    %655 = arith.addf %651, %654 : vector<16x64xf32>
    %cst_243 = arith.constant 0.000000e+00 : f32
    %656 = vector.broadcast %cst_243 : f32 to vector<16x64xf32>
    %657 = arith.maximumf %655, %656 : vector<16x64xf32>
    %c1_244 = arith.constant 1 : index
    %c0_245 = arith.constant 0 : index
    %c320_246 = arith.constant 320 : index
    %658 = vector.load %arg3[%c1_244, %c0_245, %c320_246] : memref<2x32x384xf32, #tpu.memory_space<vmem>>, vector<1x32x64xf32>
    %659 = vector.shape_cast %658 : vector<1x32x64xf32> to vector<32x64xf32>
    %cst_247 = arith.constant dense<0.000000e+00> : vector<16x32xf32>
    %660 = tpu.matmul %657, %659, %cst_247 {dimension_numbers = #tpu.dot_dimension_numbers<[1], [1], [0], [0], [0, 0, 1, 0], [], []>} : vector<16x64xf32>, vector<32x64xf32>, vector<16x32xf32> -> vector<16x32xf32>
    %c1_248 = arith.constant 1 : index
    %c0_249 = arith.constant 0 : index
    %c448_250 = arith.constant 448 : index
    %661 = vector.load %arg4[%c1_248, %c0_249, %c448_250] : memref<3x1x544xf32, #tpu.memory_space<vmem>>, vector<1x1x32xf32>
    %662 = vector.shape_cast %661 : vector<1x1x32xf32> to vector<1x32xf32>
    %663 = vector.broadcast %662 : vector<1x32xf32> to vector<16x32xf32>
    %664 = arith.addf %660, %663 : vector<16x32xf32>
    %665 = arith.addf %648, %664 : vector<16x32xf32>
    %c1_251 = arith.constant 1 : index
    %c0_252 = arith.constant 0 : index
    %c480_253 = arith.constant 480 : index
    %666 = vector.load %arg4[%c1_251, %c0_252, %c480_253] : memref<3x1x544xf32, #tpu.memory_space<vmem>>, vector<1x1x32xf32>
    %667 = vector.shape_cast %666 : vector<1x1x32xf32> to vector<1x32xf32>
    %c1_254 = arith.constant 1 : index
    %c0_255 = arith.constant 0 : index
    %c512_256 = arith.constant 512 : index
    %668 = vector.load %arg4[%c1_254, %c0_255, %c512_256] : memref<3x1x544xf32, #tpu.memory_space<vmem>>, vector<1x1x32xf32>
    %669 = vector.shape_cast %668 : vector<1x1x32xf32> to vector<1x32xf32>
    %cst_257 = arith.constant dense<0.000000e+00> : vector<16xf32>
    %670 = vector.multi_reduction <add>, %665, %cst_257 [1] : vector<16x32xf32> to vector<16xf32>
    %671 = vector.shape_cast %670 : vector<16xf32> to vector<16x1xf32>
    %cst_258 = arith.constant 3.200000e+01 : f32
    %672 = vector.broadcast %cst_258 : f32 to vector<16x1xf32>
    %673 = arith.divf %671, %672 : vector<16x1xf32>
    %674 = vector.broadcast %673 : vector<16x1xf32> to vector<16x32xf32>
    %675 = arith.subf %665, %674 : vector<16x32xf32>
    %676 = arith.mulf %675, %675 : vector<16x32xf32>
    %cst_259 = arith.constant dense<0.000000e+00> : vector<16xf32>
    %677 = vector.multi_reduction <add>, %676, %cst_259 [1] : vector<16x32xf32> to vector<16xf32>
    %678 = vector.shape_cast %677 : vector<16xf32> to vector<16x1xf32>
    %cst_260 = arith.constant 3.200000e+01 : f32
    %679 = vector.broadcast %cst_260 : f32 to vector<16x1xf32>
    %680 = arith.divf %678, %679 : vector<16x1xf32>
    %681 = vector.broadcast %673 : vector<16x1xf32> to vector<16x32xf32>
    %682 = arith.subf %665, %681 : vector<16x32xf32>
    %cst_261 = arith.constant 9.99999974E-6 : f32
    %683 = vector.broadcast %cst_261 : f32 to vector<16x1xf32>
    %684 = arith.addf %680, %683 : vector<16x1xf32>
    %685 = math.rsqrt %684 : vector<16x1xf32>
    %686 = vector.broadcast %685 : vector<16x1xf32> to vector<16x32xf32>
    %687 = arith.mulf %682, %686 : vector<16x32xf32>
    %688 = vector.broadcast %667 : vector<1x32xf32> to vector<16x32xf32>
    %689 = arith.mulf %687, %688 : vector<16x32xf32>
    %690 = vector.broadcast %669 : vector<1x32xf32> to vector<16x32xf32>
    %691 = arith.addf %689, %690 : vector<16x32xf32>
    %c2 = arith.constant 2 : index
    %c0_262 = arith.constant 0 : index
    %c0_263 = arith.constant 0 : index
    %692 = vector.load %arg4[%c2, %c0_262, %c0_263] : memref<3x1x544xf32, #tpu.memory_space<vmem>>, vector<1x1x32xf32>
    %693 = vector.shape_cast %692 : vector<1x1x32xf32> to vector<1x32xf32>
    %c2_264 = arith.constant 2 : index
    %c0_265 = arith.constant 0 : index
    %c32 = arith.constant 32 : index
    %694 = vector.load %arg4[%c2_264, %c0_265, %c32] : memref<3x1x544xf32, #tpu.memory_space<vmem>>, vector<1x1x32xf32>
    %695 = vector.shape_cast %694 : vector<1x1x32xf32> to vector<1x32xf32>
    %cst_266 = arith.constant dense<0.000000e+00> : vector<16xf32>
    %696 = vector.multi_reduction <add>, %691, %cst_266 [1] : vector<16x32xf32> to vector<16xf32>
    %697 = vector.shape_cast %696 : vector<16xf32> to vector<16x1xf32>
    %cst_267 = arith.constant 3.200000e+01 : f32
    %698 = vector.broadcast %cst_267 : f32 to vector<16x1xf32>
    %699 = arith.divf %697, %698 : vector<16x1xf32>
    %700 = vector.broadcast %699 : vector<16x1xf32> to vector<16x32xf32>
    %701 = arith.subf %691, %700 : vector<16x32xf32>
    %702 = arith.mulf %701, %701 : vector<16x32xf32>
    %cst_268 = arith.constant dense<0.000000e+00> : vector<16xf32>
    %703 = vector.multi_reduction <add>, %702, %cst_268 [1] : vector<16x32xf32> to vector<16xf32>
    %704 = vector.shape_cast %703 : vector<16xf32> to vector<16x1xf32>
    %cst_269 = arith.constant 3.200000e+01 : f32
    %705 = vector.broadcast %cst_269 : f32 to vector<16x1xf32>
    %706 = arith.divf %704, %705 : vector<16x1xf32>
    %707 = vector.broadcast %699 : vector<16x1xf32> to vector<16x32xf32>
    %708 = arith.subf %691, %707 : vector<16x32xf32>
    %cst_270 = arith.constant 9.99999974E-6 : f32
    %709 = vector.broadcast %cst_270 : f32 to vector<16x1xf32>
    %710 = arith.addf %706, %709 : vector<16x1xf32>
    %711 = math.rsqrt %710 : vector<16x1xf32>
    %712 = vector.broadcast %711 : vector<16x1xf32> to vector<16x32xf32>
    %713 = arith.mulf %708, %712 : vector<16x32xf32>
    %714 = vector.broadcast %693 : vector<1x32xf32> to vector<16x32xf32>
    %715 = arith.mulf %713, %714 : vector<16x32xf32>
    %716 = vector.broadcast %695 : vector<1x32xf32> to vector<16x32xf32>
    %717 = arith.addf %715, %716 : vector<16x32xf32>
    %c0_271 = arith.constant 0 : index
    %c0_272 = arith.constant 0 : index
    %718 = vector.load %arg5[%c0_271, %c0_272] : memref<16x32xf32, #tpu.memory_space<vmem>>, vector<16x32xf32>
    tpu.vector_store %arg5[%c0_271, %c0_272], %717 {strides = array<i32>} : memref<16x32xf32, #tpu.memory_space<vmem>>, vector<16x32xf32>,
    return
  }
  func.func @transform_0(%arg0: i32) -> (i32, i32) {
    %c0_i32 = arith.constant 0 : i32
    %c0_i32_0 = arith.constant 0 : i32
    %c0_i32_1 = arith.constant 0 : i32
    return %c0_i32, %c0_i32_0 : i32, i32
  }
  func.func @transform_1(%arg0: i32) -> (i32, i32) {
    %c0_i32 = arith.constant 0 : i32
    %c0_i32_0 = arith.constant 0 : i32
    %c0_i32_1 = arith.constant 0 : i32
    return %c0_i32, %c0_i32_0 : i32, i32
  }
  func.func @transform_2(%arg0: i32) -> (i32, i32, i32) {
    %c0_i32 = arith.constant 0 : i32
    %c0_i32_0 = arith.constant 0 : i32
    %c0_i32_1 = arith.constant 0 : i32
    %c0_i32_2 = arith.constant 0 : i32
    return %c0_i32, %c0_i32_0, %c0_i32_1 : i32, i32, i32
  }
  func.func @transform_3(%arg0: i32) -> (i32, i32, i32) {
    %c0_i32 = arith.constant 0 : i32
    %c0_i32_0 = arith.constant 0 : i32
    %c0_i32_1 = arith.constant 0 : i32
    %c0_i32_2 = arith.constant 0 : i32
    return %c0_i32, %c0_i32_0, %c0_i32_1 : i32, i32, i32
  }
  func.func @transform_4(%arg0: i32) -> (i32, i32) {
    %c0_i32 = arith.constant 0 : i32
    %c0_i32_0 = arith.constant 0 : i32
    %c0_i32_1 = arith.constant 0 : i32
    return %c0_i32, %c0_i32_0 : i32, i32
  }
}

</mosaic_0001>

<llo_original>
// kernel: tpu_custom_call.1
$region0: #{tpu_custom_call.1}
  #allocation0 [shape = 'u32[]', space=smem, size = 0x4, offset = 0x4, fixed_abs, tag = 'smem constant byte address 0x4 - core index']
  #allocation1 [shape = 'u32[144,128]{1,0:T(1,128)}', space=vmem, size = 0x12000, scoped, tag = 'internal scratch']
  %s0 = inlined_call_operand.hbm [shape: f32[16,32], index: 0, kind: input, shape index: {}]
  %s1 = inlined_call_operand.hbm [shape: f32[24,32], index: 1, kind: input, shape index: {}]
  %s2 = inlined_call_operand.hbm [shape: f32[2,32,384], index: 2, kind: input, shape index: {}]
  %s3 = inlined_call_operand.hbm [shape: f32[3,1,544], index: 3, kind: input, shape index: {}]
  %s4 = inlined_call_operand.hbm [shape: f32[16,32], index: 4, kind: output, shape index: {}]
  %s5 = sld [smem:[#allocation0]]
  $region42: #{tpu_custom_call.1} parent=0
    _
  %s7 = ssub.s32 1, %s5
  %s8 = scalar_select 0, %s7, %s5
  $region1: #{tpu_custom_call.1} parent=0
    #allocation2 [shape = 'u8[8192]{0}', space=vmem, size = 0x2000, scoped, tag = 'input window, operand 0, single buffered']
    #allocation3 [shape = 's32[1]{0}', space=sflag, size = 0x4, scoped, tag = 'scoped memory for tpu_custom_call.1']
    #allocation4 [shape = 's32[1]{0}', space=sflag, size = 0x4, scoped, tag = 'scoped memory for tpu_custom_call.1']
    #allocation5 [shape = 'u8[12288]{0}', space=vmem, size = 0x3000, scoped, tag = 'input window, operand 1, single buffered']
    #allocation6 [shape = 's32[1]{0}', space=sflag, size = 0x4, scoped, tag = 'scoped memory for tpu_custom_call.1']
    #allocation7 [shape = 'u8[98304]{0}', space=vmem, size = 0x18000, scoped, tag = 'input window, operand 2, single buffered']
    #allocation8 [shape = 'u8[7680]{0}', space=vmem, size = 0x2000, scoped, tag = 'input window, operand 3, single buffered']
    #allocation9 [shape = 's32[1]{0}', space=sflag, size = 0x4, scoped, tag = 'scoped memory for tpu_custom_call.1']
    #allocation10 [shape = 'u8[8192]{0}', space=vmem, size = 0x2000, scoped, tag = 'output window, operand 0, single buffered']
    %9 = vsyncpa [#allocation3], 0
    %10 = vsyncpa [#allocation6], 0
    %11 = vsyncpa [#allocation9], 0
    %12 = vsyncpa [#allocation4], 0
    // Predicated region
    $region2: #{tpu_custom_call.1} parent=1 // pred_check
      _
    $region3: #{tpu_custom_call.1} parent=1 // pred_check_branch
      %14 = sbr.rel (0) target = $region5
    $region4: #{tpu_custom_call.1} parent=1 // pred_region
      %s16 = ssub.s32 256, 256
      %17 = vsyncadd [#allocation3], %s16
      %s18 = sshll.u32 [#allocation2], 4
      %s19 = int_to_ptr.vmem [resolvable:$true] %s18
      %24 = dma.hbm_to_vmem [thread:$0]  %s0, 256, %s19, [#allocation3], 128, 128, 8
    $region5: #{tpu_custom_call.1} parent=1 // pred_fallthru
      _
    // Predicated region
    $region6: #{tpu_custom_call.1} parent=1 // pred_check
      _
    $region7: #{tpu_custom_call.1} parent=1 // pred_check_branch
      %26 = sbr.rel (0) target = $region9
    $region8: #{tpu_custom_call.1} parent=1 // pred_region
      %s28 = ssub.s32 384, 384
      %29 = vsyncadd [#allocation6], %s28
      %s30 = sshll.u32 [#allocation5], 4
      %s31 = int_to_ptr.vmem [resolvable:$true] %s30
      %36 = dma.hbm_to_vmem [thread:$0]  %s1, 384, %s31, [#allocation6], 128, 128, 8
    $region9: #{tpu_custom_call.1} parent=1 // pred_fallthru
      _
    // Predicated region
    $region10: #{tpu_custom_call.1} parent=1 // pred_check
      _
    $region11: #{tpu_custom_call.1} parent=1 // pred_check_branch
      %38 = sbr.rel (0) target = $region13
    $region12: #{tpu_custom_call.1} parent=1 // pred_region
      %s40 = ssub.s32 3072, 3072
      %41 = vsyncadd [#allocation6], %s40
      %s42 = sshll.u32 [#allocation7], 4
      %s43 = int_to_ptr.vmem [resolvable:$true] %s42
      %48 = dma.hbm_to_vmem [thread:$0]  %s2, 3072, %s43, [#allocation6], 384, 384, 24
    $region13: #{tpu_custom_call.1} parent=1 // pred_fallthru
      _
    // Predicated region
    $region14: #{tpu_custom_call.1} parent=1 // pred_check
      _
    $region15: #{tpu_custom_call.1} parent=1 // pred_check_branch
      %50 = sbr.rel (0) target = $region17
    $region16: #{tpu_custom_call.1} parent=1 // pred_region
      %s52 = ssub.s32 240, 240
      %53 = vsyncadd [#allocation9], %s52
      %s54 = sshll.u32 [#allocation8], 4
      %s55 = int_to_ptr.vmem [resolvable:$true] %s54
      %60 = dma.hbm_to_vmem [thread:$0]  %s3, 240, %s55, [#allocation9], 80, 80, 5
    $region17: #{tpu_custom_call.1} parent=1 // pred_fallthru
      _
    // Predicated region
    $region18: #{tpu_custom_call.1} parent=1 // pred_check
      _
    $region19: #{tpu_custom_call.1} parent=1 // pred_check_branch
      %62 = sbr.rel (0) target = $region21
    $region20: #{tpu_custom_call.1} parent=1 // pred_region
      %63 = dma.done [#allocation3], 256
    $region21: #{tpu_custom_call.1} parent=1 // pred_fallthru
      _
    // Predicated region
    $region22: #{tpu_custom_call.1} parent=1 // pred_check
      _
    $region23: #{tpu_custom_call.1} parent=1 // pred_check_branch
      %65 = sbr.rel (0) target = $region25
    $region24: #{tpu_custom_call.1} parent=1 // pred_region
      %66 = dma.done [#allocation6], 384
    $region25: #{tpu_custom_call.1} parent=1 // pred_fallthru
      _
    // Predicated region
    $region26: #{tpu_custom_call.1} parent=1 // pred_check
      _
    $region27: #{tpu_custom_call.1} parent=1 // pred_check_branch
      %68 = sbr.rel (0) target = $region29
    $region28: #{tpu_custom_call.1} parent=1 // pred_region
      %69 = dma.done [#allocation6], 3072
    $region29: #{tpu_custom_call.1} parent=1 // pred_fallthru
      _
    // Predicated region
    $region30: #{tpu_custom_call.1} parent=1 // pred_check
      _
    $region31: #{tpu_custom_call.1} parent=1 // pred_check_branch
      %71 = sbr.rel (0) target = $region33
    $region32: #{tpu_custom_call.1} parent=1 // pred_region
      %72 = dma.done [#allocation9], 240
    $region33: #{tpu_custom_call.1} parent=1 // pred_fallthru
      _
    %v73 = vld [vmem:[#allocation2] sm:$0xff]
    %v74 = vld [vmem:[#allocation2 + $0x8] sm:$0xff]
    %v75 = vld [vmem:[#allocation5] sm:$0xff]
    %v76 = vld [vmem:[#allocation5 + $0x8] sm:$0xff]
    %v77 = vld [vmem:[#allocation5 + $0x10] sm:$0xff]
    %v78 = vlaneseq
    %v79 = vshrl.u32 %v78, 7
    %v80 = vadd.s32 %v79, 8
    %v81 = vadd.s32 %v79, 16
    %v82 = vadd.s32 %v79, 24
    %v83 = vadd.s32 %v79, 32
    %v84 = vadd.s32 %v79, 40
    %v85 = vadd.s32 %v79, 48
    %v86 = vadd.s32 %v79, 56
    %v87 = vlaneseq
    %v88 = vand.u32 %v87, 127
    %vm89 = vcmp.ge.s32.totalorder %v79, 0
    %vm90 = vcmp.ge.s32.totalorder %v80, 0
    %vm91 = vcmp.ge.s32.totalorder %v81, 0
    %vm92 = vcmp.ge.s32.totalorder %v82, 0
    %vm93 = vcmp.ge.s32.totalorder %v83, 0
    %vm94 = vcmp.ge.s32.totalorder %v84, 0
    %vm95 = vcmp.ge.s32.totalorder %v85, 0
    %vm96 = vcmp.ge.s32.totalorder %v86, 0
    %vm97 = vcmp.lt.s32.totalorder %v79, 16
    %vm98 = vcmp.lt.s32.totalorder %v80, 16
    %vm99 = vcmp.lt.s32.totalorder %v81, 16
    %vm100 = vcmp.lt.s32.totalorder %v82, 16
    %vm101 = vcmp.lt.s32.totalorder %v83, 16
    %vm102 = vcmp.lt.s32.totalorder %v84, 16
    %vm103 = vcmp.lt.s32.totalorder %v85, 16
    %vm104 = vcmp.lt.s32.totalorder %v86, 16
    %vm105 = vmand %vm89, %vm97
    %vm106 = vmand %vm90, %vm98
    %vm107 = vmand %vm91, %vm99
    %vm108 = vmand %vm92, %vm100
    %vm109 = vmand %vm93, %vm101
    %vm110 = vmand %vm94, %vm102
    %vm111 = vmand %vm95, %vm103
    %vm112 = vmand %vm96, %vm104
    %vm113 = vcmp.ge.s32.totalorder %v88, 0
    %vm114 = vmand %vm105, %vm113
    %vm115 = vmand %vm106, %vm113
    %vm116 = vmand %vm107, %vm113
    %vm117 = vmand %vm108, %vm113
    %vm118 = vmand %vm109, %vm113
    %vm119 = vmand %vm110, %vm113
    %vm120 = vmand %vm111, %vm113
    %vm121 = vmand %vm112, %vm113
    %vm122 = vcmp.lt.s32.totalorder %v88, 8
    %vm123 = vmand %vm114, %vm122
    %vm124 = vmand %vm115, %vm122
    %vm125 = vmand %vm116, %vm122
    %vm126 = vmand %vm117, %vm122
    %vm127 = vmand %vm118, %vm122
    %vm128 = vmand %vm119, %vm122
    %vm129 = vmand %vm120, %vm122
    %vm130 = vmand %vm121, %vm122
    %vm131 = vcmp.ge.s32.totalorder %v79, 16
    %vm132 = vcmp.ge.s32.totalorder %v80, 16
    %vm133 = vcmp.ge.s32.totalorder %v81, 16
    %vm134 = vcmp.ge.s32.totalorder %v82, 16
    %vm135 = vcmp.ge.s32.totalorder %v83, 16
    %vm136 = vcmp.ge.s32.totalorder %v84, 16
    %vm137 = vcmp.ge.s32.totalorder %v85, 16
    %vm138 = vcmp.ge.s32.totalorder %v86, 16
    %vm139 = vcmp.lt.s32.totalorder %v79, 32
    %vm140 = vcmp.lt.s32.totalorder %v80, 32
    %vm141 = vcmp.lt.s32.totalorder %v81, 32
    %vm142 = vcmp.lt.s32.totalorder %v82, 32
    %vm143 = vcmp.lt.s32.totalorder %v83, 32
    %vm144 = vcmp.lt.s32.totalorder %v84, 32
    %vm145 = vcmp.lt.s32.totalorder %v85, 32
    %vm146 = vcmp.lt.s32.totalorder %v86, 32
    %vm147 = vmand %vm131, %vm139
    %vm148 = vmand %vm132, %vm140
    %vm149 = vmand %vm133, %vm141
    %vm150 = vmand %vm134, %vm142
    %vm151 = vmand %vm135, %vm143
    %vm152 = vmand %vm136, %vm144
    %vm153 = vmand %vm137, %vm145
    %vm154 = vmand %vm138, %vm146
    %vm155 = vcmp.ge.s32.totalorder %v88, 8
    %vm156 = vmand %vm147, %vm155
    %vm157 = vmand %vm148, %vm155
    %vm158 = vmand %vm149, %vm155
    %vm159 = vmand %vm150, %vm155
    %vm160 = vmand %vm151, %vm155
    %vm161 = vmand %vm152, %vm155
    %vm162 = vmand %vm153, %vm155
    %vm163 = vmand %vm154, %vm155
    %vm164 = vcmp.lt.s32.totalorder %v88, 16
    %vm165 = vmand %vm156, %vm164
    %vm166 = vmand %vm157, %vm164
    %vm167 = vmand %vm158, %vm164
    %vm168 = vmand %vm159, %vm164
    %vm169 = vmand %vm160, %vm164
    %vm170 = vmand %vm161, %vm164
    %vm171 = vmand %vm162, %vm164
    %vm172 = vmand %vm163, %vm164
    %vm173 = vmor %vm123, %vm165
    %vm174 = vmor %vm124, %vm166
    %vm175 = vmor %vm125, %vm167
    %vm176 = vmor %vm126, %vm168
    %vm177 = vmor %vm127, %vm169
    %vm178 = vmor %vm128, %vm170
    %vm179 = vmor %vm129, %vm171
    %vm180 = vmor %vm130, %vm172
    %vm181 = vcmp.ge.s32.totalorder %v79, 32
    %vm182 = vcmp.ge.s32.totalorder %v80, 32
    %vm183 = vcmp.ge.s32.totalorder %v81, 32
    %vm184 = vcmp.ge.s32.totalorder %v82, 32
    %vm185 = vcmp.ge.s32.totalorder %v83, 32
    %vm186 = vcmp.ge.s32.totalorder %v84, 32
    %vm187 = vcmp.ge.s32.totalorder %v85, 32
    %vm188 = vcmp.ge.s32.totalorder %v86, 32
    %vm189 = vcmp.lt.s32.totalorder %v79, 48
    %vm190 = vcmp.lt.s32.totalorder %v80, 48
    %vm191 = vcmp.lt.s32.totalorder %v81, 48
    %vm192 = vcmp.lt.s32.totalorder %v82, 48
    %vm193 = vcmp.lt.s32.totalorder %v83, 48
    %vm194 = vcmp.lt.s32.totalorder %v84, 48
    %vm195 = vcmp.lt.s32.totalorder %v85, 48
    %vm196 = vcmp.lt.s32.totalorder %v86, 48
    %vm197 = vmand %vm181, %vm189
    %vm198 = vmand %vm182, %vm190
    %vm199 = vmand %vm183, %vm191
    %vm200 = vmand %vm184, %vm192
    %vm201 = vmand %vm185, %vm193
    %vm202 = vmand %vm186, %vm194
    %vm203 = vmand %vm187, %vm195
    %vm204 = vmand %vm188, %vm196
    %vm205 = vcmp.ge.s32.totalorder %v88, 16
    %vm206 = vmand %vm197, %vm205
    %vm207 = vmand %vm198, %vm205
    %vm208 = vmand %vm199, %vm205
    %vm209 = vmand %vm200, %vm205
    %vm210 = vmand %vm201, %vm205
    %vm211 = vmand %vm202, %vm205
    %vm212 = vmand %vm203, %vm205
    %vm213 = vmand %vm204, %vm205
    %vm214 = vcmp.lt.s32.totalorder %v88, 24
    %vm215 = vmand %vm206, %vm214
    %vm216 = vmand %vm207, %vm214
    %vm217 = vmand %vm208, %vm214
    %vm218 = vmand %vm209, %vm214
    %vm219 = vmand %vm210, %vm214
    %vm220 = vmand %vm211, %vm214
    %vm221 = vmand %vm212, %vm214
    %vm222 = vmand %vm213, %vm214
    %vm223 = vmor %vm173, %vm215
    %vm224 = vmor %vm174, %vm216
    %vm225 = vmor %vm175, %vm217
    %vm226 = vmor %vm176, %vm218
    %vm227 = vmor %vm177, %vm219
    %vm228 = vmor %vm178, %vm220
    %vm229 = vmor %vm179, %vm221
    %vm230 = vmor %vm180, %vm222
    %vm231 = vcmp.ge.s32.totalorder %v79, 48
    %vm232 = vcmp.ge.s32.totalorder %v80, 48
    %vm233 = vcmp.ge.s32.totalorder %v81, 48
    %vm234 = vcmp.ge.s32.totalorder %v82, 48
    %vm235 = vcmp.ge.s32.totalorder %v83, 48
    %vm236 = vcmp.ge.s32.totalorder %v84, 48
    %vm237 = vcmp.ge.s32.totalorder %v85, 48
    %vm238 = vcmp.ge.s32.totalorder %v86, 48
    %vm239 = vcmp.lt.s32.totalorder %v79, 64
    %vm240 = vcmp.lt.s32.totalorder %v80, 64
    %vm241 = vcmp.lt.s32.totalorder %v81, 64
    %vm242 = vcmp.lt.s32.totalorder %v82, 64
    %vm243 = vcmp.lt.s32.totalorder %v83, 64
    %vm244 = vcmp.lt.s32.totalorder %v84, 64
    %vm245 = vcmp.lt.s32.totalorder %v85, 64
    %vm246 = vcmp.lt.s32.totalorder %v86, 64
    %vm247 = vmand %vm231, %vm239
    %vm248 = vmand %vm232, %vm240
    %vm249 = vmand %vm233, %vm241
    %vm250 = vmand %vm234, %vm242
    %vm251 = vmand %vm235, %vm243
    %vm252 = vmand %vm236, %vm244
    %vm253 = vmand %vm237, %vm245
    %vm254 = vmand %vm238, %vm246
    %vm255 = vcmp.ge.s32.totalorder %v88, 24
    %vm256 = vmand %vm247, %vm255
    %vm257 = vmand %vm248, %vm255
    %vm258 = vmand %vm249, %vm255
    %vm259 = vmand %vm250, %vm255
    %vm260 = vmand %vm251, %vm255
    %vm261 = vmand %vm252, %vm255
    %vm262 = vmand %vm253, %vm255
    %vm263 = vmand %vm254, %vm255
    %vm264 = vcmp.lt.s32.totalorder %v88, 32
    %vm265 = vmand %vm256, %vm264
    %vm266 = vmand %vm257, %vm264
    %vm267 = vmand %vm258, %vm264
    %vm268 = vmand %vm259, %vm264
    %vm269 = vmand %vm260, %vm264
    %vm270 = vmand %vm261, %vm264
    %vm271 = vmand %vm262, %vm264
    %vm272 = vmand %vm263, %vm264
    %vm273 = vmor %vm223, %vm265
    %vm274 = vmor %vm224, %vm266
    %vm275 = vmor %vm225, %vm267
    %vm276 = vmor %vm226, %vm268
    %vm277 = vmor %vm227, %vm269
    %vm278 = vmor %vm228, %vm270
    %vm279 = vmor %vm229, %vm271
    %vm280 = vmor %vm230, %vm272
    %v281 = vsel %vm273, 1.0, 0.0
    %v282 = vsel %vm274, 1.0, 0.0
    %v283 = vsel %vm275, 1.0, 0.0
    %v284 = vsel %vm276, 1.0, 0.0
    %v285 = vsel %vm277, 1.0, 0.0
    %v286 = vsel %vm278, 1.0, 0.0
    %v287 = vsel %vm279, 1.0, 0.0
    %v288 = vsel %vm280, 1.0, 0.0
    %v289 = vadd.s32 %v79, 64
    %v290 = vadd.s32 %v79, 72
    %v291 = vadd.s32 %v79, 80
    %v292 = vadd.s32 %v79, 88
    %vm293 = vcmp.ge.s32.totalorder %v289, 0
    %vm294 = vcmp.ge.s32.totalorder %v290, 0
    %vm295 = vcmp.ge.s32.totalorder %v291, 0
    %vm296 = vcmp.ge.s32.totalorder %v292, 0
    %vm297 = vcmp.lt.s32.totalorder %v79, 24
    %vm298 = vcmp.lt.s32.totalorder %v80, 24
    %vm299 = vcmp.lt.s32.totalorder %v81, 24
    %vm300 = vcmp.lt.s32.totalorder %v82, 24
    %vm301 = vcmp.lt.s32.totalorder %v83, 24
    %vm302 = vcmp.lt.s32.totalorder %v84, 24
    %vm303 = vcmp.lt.s32.totalorder %v85, 24
    %vm304 = vcmp.lt.s32.totalorder %v86, 24
    %vm305 = vcmp.lt.s32.totalorder %v289, 24
    %vm306 = vcmp.lt.s32.totalorder %v290, 24
    %vm307 = vcmp.lt.s32.totalorder %v291, 24
    %vm308 = vcmp.lt.s32.totalorder %v292, 24
    %vm309 = vmand %vm89, %vm297
    %vm310 = vmand %vm90, %vm298
    %vm311 = vmand %vm91, %vm299
    %vm312 = vmand %vm92, %vm300
    %vm313 = vmand %vm93, %vm301
    %vm314 = vmand %vm94, %vm302
    %vm315 = vmand %vm95, %vm303
    %vm316 = vmand %vm96, %vm304
    %vm317 = vmand %vm293, %vm305
    %vm318 = vmand %vm294, %vm306
    %vm319 = vmand %vm295, %vm307
    %vm320 = vmand %vm296, %vm308
    %vm321 = vmand %vm309, %vm113
    %vm322 = vmand %vm310, %vm113
    %vm323 = vmand %vm311, %vm113
    %vm324 = vmand %vm312, %vm113
    %vm325 = vmand %vm313, %vm113
    %vm326 = vmand %vm314, %vm113
    %vm327 = vmand %vm315, %vm113
    %vm328 = vmand %vm316, %vm113
    %vm329 = vmand %vm317, %vm113
    %vm330 = vmand %vm318, %vm113
    %vm331 = vmand %vm319, %vm113
    %vm332 = vmand %vm320, %vm113
    %vm333 = vmand %vm321, %vm122
    %vm334 = vmand %vm322, %vm122
    %vm335 = vmand %vm323, %vm122
    %vm336 = vmand %vm324, %vm122
    %vm337 = vmand %vm325, %vm122
    %vm338 = vmand %vm326, %vm122
    %vm339 = vmand %vm327, %vm122
    %vm340 = vmand %vm328, %vm122
    %vm341 = vmand %vm329, %vm122
    %vm342 = vmand %vm330, %vm122
    %vm343 = vmand %vm331, %vm122
    %vm344 = vmand %vm332, %vm122
    %vm345 = vcmp.ge.s32.totalorder %v79, 24
    %vm346 = vcmp.ge.s32.totalorder %v80, 24
    %vm347 = vcmp.ge.s32.totalorder %v81, 24
    %vm348 = vcmp.ge.s32.totalorder %v82, 24
    %vm349 = vcmp.ge.s32.totalorder %v83, 24
    %vm350 = vcmp.ge.s32.totalorder %v84, 24
    %vm351 = vcmp.ge.s32.totalorder %v85, 24
    %vm352 = vcmp.ge.s32.totalorder %v86, 24
    %vm353 = vcmp.ge.s32.totalorder %v289, 24
    %vm354 = vcmp.ge.s32.totalorder %v290, 24
    %vm355 = vcmp.ge.s32.totalorder %v291, 24
    %vm356 = vcmp.ge.s32.totalorder %v292, 24
    %vm357 = vcmp.lt.s32.totalorder %v289, 48
    %vm358 = vcmp.lt.s32.totalorder %v290, 48
    %vm359 = vcmp.lt.s32.totalorder %v291, 48
    %vm360 = vcmp.lt.s32.totalorder %v292, 48
    %vm361 = vmand %vm345, %vm189
    %vm362 = vmand %vm346, %vm190
    %vm363 = vmand %vm347, %vm191
    %vm364 = vmand %vm348, %vm192
    %vm365 = vmand %vm349, %vm193
    %vm366 = vmand %vm350, %vm194
    %vm367 = vmand %vm351, %vm195
    %vm368 = vmand %vm352, %vm196
    %vm369 = vmand %vm353, %vm357
    %vm370 = vmand %vm354, %vm358
    %vm371 = vmand %vm355, %vm359
    %vm372 = vmand %vm356, %vm360
    %vm373 = vmand %vm361, %vm155
    %vm374 = vmand %vm362, %vm155
    %vm375 = vmand %vm363, %vm155
    %vm376 = vmand %vm364, %vm155
    %vm377 = vmand %vm365, %vm155
    %vm378 = vmand %vm366, %vm155
    %vm379 = vmand %vm367, %vm155
    %vm380 = vmand %vm368, %vm155
    %vm381 = vmand %vm369, %vm155
    %vm382 = vmand %vm370, %vm155
    %vm383 = vmand %vm371, %vm155
    %vm384 = vmand %vm372, %vm155
    %vm385 = vmand %vm373, %vm164
    %vm386 = vmand %vm374, %vm164
    %vm387 = vmand %vm375, %vm164
    %vm388 = vmand %vm376, %vm164
    %vm389 = vmand %vm377, %vm164
    %vm390 = vmand %vm378, %vm164
    %vm391 = vmand %vm379, %vm164
    %vm392 = vmand %vm380, %vm164
    %vm393 = vmand %vm381, %vm164
    %vm394 = vmand %vm382, %vm164
    %vm395 = vmand %vm383, %vm164
    %vm396 = vmand %vm384, %vm164
    %vm397 = vmor %vm333, %vm385
    %vm398 = vmor %vm334, %vm386
    %vm399 = vmor %vm335, %vm387
    %vm400 = vmor %vm336, %vm388
    %vm401 = vmor %vm337, %vm389
    %vm402 = vmor %vm338, %vm390
    %vm403 = vmor %vm339, %vm391
    %vm404 = vmor %vm340, %vm392
    %vm405 = vmor %vm341, %vm393
    %vm406 = vmor %vm342, %vm394
    %vm407 = vmor %vm343, %vm395
    %vm408 = vmor %vm344, %vm396
    %vm409 = vcmp.ge.s32.totalorder %v289, 48
    %vm410 = vcmp.ge.s32.totalorder %v290, 48
    %vm411 = vcmp.ge.s32.totalorder %v291, 48
    %vm412 = vcmp.ge.s32.totalorder %v292, 48
    %vm413 = vcmp.lt.s32.totalorder %v79, 72
    %vm414 = vcmp.lt.s32.totalorder %v80, 72
    %vm415 = vcmp.lt.s32.totalorder %v81, 72
    %vm416 = vcmp.lt.s32.totalorder %v82, 72
    %vm417 = vcmp.lt.s32.totalorder %v83, 72
    %vm418 = vcmp.lt.s32.totalorder %v84, 72
    %vm419 = vcmp.lt.s32.totalorder %v85, 72
    %vm420 = vcmp.lt.s32.totalorder %v86, 72
    %vm421 = vcmp.lt.s32.totalorder %v289, 72
    %vm422 = vcmp.lt.s32.totalorder %v290, 72
    %vm423 = vcmp.lt.s32.totalorder %v291, 72
    %vm424 = vcmp.lt.s32.totalorder %v292, 72
    %vm425 = vmand %vm231, %vm413
    %vm426 = vmand %vm232, %vm414
    %vm427 = vmand %vm233, %vm415
    %vm428 = vmand %vm234, %vm416
    %vm429 = vmand %vm235, %vm417
    %vm430 = vmand %vm236, %vm418
    %vm431 = vmand %vm237, %vm419
    %vm432 = vmand %vm238, %vm420
    %vm433 = vmand %vm409, %vm421
    %vm434 = vmand %vm410, %vm422
    %vm435 = vmand %vm411, %vm423
    %vm436 = vmand %vm412, %vm424
    %vm437 = vmand %vm425, %vm205
    %vm438 = vmand %vm426, %vm205
    %vm439 = vmand %vm427, %vm205
    %vm440 = vmand %vm428, %vm205
    %vm441 = vmand %vm429, %vm205
    %vm442 = vmand %vm430, %vm205
    %vm443 = vmand %vm431, %vm205
    %vm444 = vmand %vm432, %vm205
    %vm445 = vmand %vm433, %vm205
    %vm446 = vmand %vm434, %vm205
    %vm447 = vmand %vm435, %vm205
    %vm448 = vmand %vm436, %vm205
    %vm449 = vmand %vm437, %vm214
    %vm450 = vmand %vm438, %vm214
    %vm451 = vmand %vm439, %vm214
    %vm452 = vmand %vm440, %vm214
    %vm453 = vmand %vm441, %vm214
    %vm454 = vmand %vm442, %vm214
    %vm455 = vmand %vm443, %vm214
    %vm456 = vmand %vm444, %vm214
    %vm457 = vmand %vm445, %vm214
    %vm458 = vmand %vm446, %vm214
    %vm459 = vmand %vm447, %vm214
    %vm460 = vmand %vm448, %vm214
    %vm461 = vmor %vm397, %vm449
    %vm462 = vmor %vm398, %vm450
    %vm463 = vmor %vm399, %vm451
    %vm464 = vmor %vm400, %vm452
    %vm465 = vmor %vm401, %vm453
    %vm466 = vmor %vm402, %vm454
    %vm467 = vmor %vm403, %vm455
    %vm468 = vmor %vm404, %vm456
    %vm469 = vmor %vm405, %vm457
    %vm470 = vmor %vm406, %vm458
    %vm471 = vmor %vm407, %vm459
    %vm472 = vmor %vm408, %vm460
    %vm473 = vcmp.ge.s32.totalorder %v79, 72
    %vm474 = vcmp.ge.s32.totalorder %v80, 72
    %vm475 = vcmp.ge.s32.totalorder %v81, 72
    %vm476 = vcmp.ge.s32.totalorder %v82, 72
    %vm477 = vcmp.ge.s32.totalorder %v83, 72
    %vm478 = vcmp.ge.s32.totalorder %v84, 72
    %vm479 = vcmp.ge.s32.totalorder %v85, 72
    %vm480 = vcmp.ge.s32.totalorder %v86, 72
    %vm481 = vcmp.ge.s32.totalorder %v289, 72
    %vm482 = vcmp.ge.s32.totalorder %v290, 72
    %vm483 = vcmp.ge.s32.totalorder %v291, 72
    %vm484 = vcmp.ge.s32.totalorder %v292, 72
    %vm485 = vcmp.lt.s32.totalorder %v79, 96
    %vm486 = vcmp.lt.s32.totalorder %v80, 96
    %vm487 = vcmp.lt.s32.totalorder %v81, 96
    %vm488 = vcmp.lt.s32.totalorder %v82, 96
    %vm489 = vcmp.lt.s32.totalorder %v83, 96
    %vm490 = vcmp.lt.s32.totalorder %v84, 96
    %vm491 = vcmp.lt.s32.totalorder %v85, 96
    %vm492 = vcmp.lt.s32.totalorder %v86, 96
    %vm493 = vcmp.lt.s32.totalorder %v289, 96
    %vm494 = vcmp.lt.s32.totalorder %v290, 96
    %vm495 = vcmp.lt.s32.totalorder %v291, 96
    %vm496 = vcmp.lt.s32.totalorder %v292, 96
    %vm497 = vmand %vm473, %vm485
    %vm498 = vmand %vm474, %vm486
    %vm499 = vmand %vm475, %vm487
    %vm500 = vmand %vm476, %vm488
    %vm501 = vmand %vm477, %vm489
    %vm502 = vmand %vm478, %vm490
    %vm503 = vmand %vm479, %vm491
    %vm504 = vmand %vm480, %vm492
    %vm505 = vmand %vm481, %vm493
    %vm506 = vmand %vm482, %vm494
    %vm507 = vmand %vm483, %vm495
    %vm508 = vmand %vm484, %vm496
    %vm509 = vmand %vm497, %vm255
    %vm510 = vmand %vm498, %vm255
    %vm511 = vmand %vm499, %vm255
    %vm512 = vmand %vm500, %vm255
    %vm513 = vmand %vm501, %vm255
    %vm514 = vmand %vm502, %vm255
    %vm515 = vmand %vm503, %vm255
    %vm516 = vmand %vm504, %vm255
    %vm517 = vmand %vm505, %vm255
    %vm518 = vmand %vm506, %vm255
    %vm519 = vmand %vm507, %vm255
    %vm520 = vmand %vm508, %vm255
    %vm521 = vmand %vm509, %vm264
    %vm522 = vmand %vm510, %vm264
    %vm523 = vmand %vm511, %vm264
    %vm524 = vmand %vm512, %vm264
    %vm525 = vmand %vm513, %vm264
    %vm526 = vmand %vm514, %vm264
    %vm527 = vmand %vm515, %vm264
    %vm528 = vmand %vm516, %vm264
    %vm529 = vmand %vm517, %vm264
    %vm530 = vmand %vm518, %vm264
    %vm531 = vmand %vm519, %vm264
    %vm532 = vmand %vm520, %vm264
    %vm533 = vmor %vm461, %vm521
    %vm534 = vmor %vm462, %vm522
    %vm535 = vmor %vm463, %vm523
    %vm536 = vmor %vm464, %vm524
    %vm537 = vmor %vm465, %vm525
    %vm538 = vmor %vm466, %vm526
    %vm539 = vmor %vm467, %vm527
    %vm540 = vmor %vm468, %vm528
    %vm541 = vmor %vm469, %vm529
    %vm542 = vmor %vm470, %vm530
    %vm543 = vmor %vm471, %vm531
    %vm544 = vmor %vm472, %vm532
    %v545 = vsel %vm533, 1.0, 0.0
    %v546 = vsel %vm534, 1.0, 0.0
    %v547 = vsel %vm535, 1.0, 0.0
    %v548 = vsel %vm536, 1.0, 0.0
    %v549 = vsel %vm537, 1.0, 0.0
    %v550 = vsel %vm538, 1.0, 0.0
    %v551 = vsel %vm539, 1.0, 0.0
    %v552 = vsel %vm540, 1.0, 0.0
    %v553 = vsel %vm541, 1.0, 0.0
    %v554 = vsel %vm542, 1.0, 0.0
    %v555 = vsel %vm543, 1.0, 0.0
    %v556 = vsel %vm544, 1.0, 0.0
    %vm557 = vcmp.lt.s32.totalorder %v79, 8
    %vm558 = vcmp.lt.s32.totalorder %v80, 8
    %vm559 = vcmp.lt.s32.totalorder %v81, 8
    %vm560 = vcmp.lt.s32.totalorder %v82, 8
    %vm561 = vcmp.lt.s32.totalorder %v83, 8
    %vm562 = vcmp.lt.s32.totalorder %v84, 8
    %vm563 = vcmp.lt.s32.totalorder %v85, 8
    %vm564 = vcmp.lt.s32.totalorder %v86, 8
    %vm565 = vmand %vm89, %vm557
    %vm566 = vmand %vm90, %vm558
    %vm567 = vmand %vm91, %vm559
    %vm568 = vmand %vm92, %vm560
    %vm569 = vmand %vm93, %vm561
    %vm570 = vmand %vm94, %vm562
    %vm571 = vmand %vm95, %vm563
    %vm572 = vmand %vm96, %vm564
    %vm573 = vmand %vm565, %vm113
    %vm574 = vmand %vm566, %vm113
    %vm575 = vmand %vm567, %vm113
    %vm576 = vmand %vm568, %vm113
    %vm577 = vmand %vm569, %vm113
    %vm578 = vmand %vm570, %vm113
    %vm579 = vmand %vm571, %vm113
    %vm580 = vmand %vm572, %vm113
    %vm581 = vmand %vm573, %vm122
    %vm582 = vmand %vm574, %vm122
    %vm583 = vmand %vm575, %vm122
    %vm584 = vmand %vm576, %vm122
    %vm585 = vmand %vm577, %vm122
    %vm586 = vmand %vm578, %vm122
    %vm587 = vmand %vm579, %vm122
    %vm588 = vmand %vm580, %vm122
    %vm589 = vcmp.ge.s32.totalorder %v79, 8
    %vm590 = vcmp.ge.s32.totalorder %v80, 8
    %vm591 = vcmp.ge.s32.totalorder %v81, 8
    %vm592 = vcmp.ge.s32.totalorder %v82, 8
    %vm593 = vcmp.ge.s32.totalorder %v83, 8
    %vm594 = vcmp.ge.s32.totalorder %v84, 8
    %vm595 = vcmp.ge.s32.totalorder %v85, 8
    %vm596 = vcmp.ge.s32.totalorder %v86, 8
    %vm597 = vmand %vm589, %vm97
    %vm598 = vmand %vm590, %vm98
    %vm599 = vmand %vm591, %vm99
    %vm600 = vmand %vm592, %vm100
    %vm601 = vmand %vm593, %vm101
    %vm602 = vmand %vm594, %vm102
    %vm603 = vmand %vm595, %vm103
    %vm604 = vmand %vm596, %vm104
    %vm605 = vmand %vm597, %vm155
    %vm606 = vmand %vm598, %vm155
    %vm607 = vmand %vm599, %vm155
    %vm608 = vmand %vm600, %vm155
    %vm609 = vmand %vm601, %vm155
    %vm610 = vmand %vm602, %vm155
    %vm611 = vmand %vm603, %vm155
    %vm612 = vmand %vm604, %vm155
    %vm613 = vmand %vm605, %vm164
    %vm614 = vmand %vm606, %vm164
    %vm615 = vmand %vm607, %vm164
    %vm616 = vmand %vm608, %vm164
    %vm617 = vmand %vm609, %vm164
    %vm618 = vmand %vm610, %vm164
    %vm619 = vmand %vm611, %vm164
    %vm620 = vmand %vm612, %vm164
    %vm621 = vmor %vm581, %vm613
    %vm622 = vmor %vm582, %vm614
    %vm623 = vmor %vm583, %vm615
    %vm624 = vmor %vm584, %vm616
    %vm625 = vmor %vm585, %vm617
    %vm626 = vmor %vm586, %vm618
    %vm627 = vmor %vm587, %vm619
    %vm628 = vmor %vm588, %vm620
    %vm629 = vmand %vm131, %vm297
    %vm630 = vmand %vm132, %vm298
    %vm631 = vmand %vm133, %vm299
    %vm632 = vmand %vm134, %vm300
    %vm633 = vmand %vm135, %vm301
    %vm634 = vmand %vm136, %vm302
    %vm635 = vmand %vm137, %vm303
    %vm636 = vmand %vm138, %vm304
    %vm637 = vmand %vm629, %vm205
    %vm638 = vmand %vm630, %vm205
    %vm639 = vmand %vm631, %vm205
    %vm640 = vmand %vm632, %vm205
    %vm641 = vmand %vm633, %vm205
    %vm642 = vmand %vm634, %vm205
    %vm643 = vmand %vm635, %vm205
    %vm644 = vmand %vm636, %vm205
    %vm645 = vmand %vm637, %vm214
    %vm646 = vmand %vm638, %vm214
    %vm647 = vmand %vm639, %vm214
    %vm648 = vmand %vm640, %vm214
    %vm649 = vmand %vm641, %vm214
    %vm650 = vmand %vm642, %vm214
    %vm651 = vmand %vm643, %vm214
    %vm652 = vmand %vm644, %vm214
    %vm653 = vmor %vm621, %vm645
    %vm654 = vmor %vm622, %vm646
    %vm655 = vmor %vm623, %vm647
    %vm656 = vmor %vm624, %vm648
    %vm657 = vmor %vm625, %vm649
    %vm658 = vmor %vm626, %vm650
    %vm659 = vmor %vm627, %vm651
    %vm660 = vmor %vm628, %vm652
    %vm661 = vmand %vm345, %vm139
    %vm662 = vmand %vm346, %vm140
    %vm663 = vmand %vm347, %vm141
    %vm664 = vmand %vm348, %vm142
    %vm665 = vmand %vm349, %vm143
    %vm666 = vmand %vm350, %vm144
    %vm667 = vmand %vm351, %vm145
    %vm668 = vmand %vm352, %vm146
    %vm669 = vmand %vm661, %vm255
    %vm670 = vmand %vm662, %vm255
    %vm671 = vmand %vm663, %vm255
    %vm672 = vmand %vm664, %vm255
    %vm673 = vmand %vm665, %vm255
    %vm674 = vmand %vm666, %vm255
    %vm675 = vmand %vm667, %vm255
    %vm676 = vmand %vm668, %vm255
    %vm677 = vmand %vm669, %vm264
    %vm678 = vmand %vm670, %vm264
    %vm679 = vmand %vm671, %vm264
    %vm680 = vmand %vm672, %vm264
    %vm681 = vmand %vm673, %vm264
    %vm682 = vmand %vm674, %vm264
    %vm683 = vmand %vm675, %vm264
    %vm684 = vmand %vm676, %vm264
    %vm685 = vmor %vm653, %vm677
    %vm686 = vmor %vm654, %vm678
    %vm687 = vmor %vm655, %vm679
    %vm688 = vmor %vm656, %vm680
    %vm689 = vmor %vm657, %vm681
    %vm690 = vmor %vm658, %vm682
    %vm691 = vmor %vm659, %vm683
    %vm692 = vmor %vm660, %vm684
    %vm693 = vcmp.lt.s32.totalorder %v79, 40
    %vm694 = vcmp.lt.s32.totalorder %v80, 40
    %vm695 = vcmp.lt.s32.totalorder %v81, 40
    %vm696 = vcmp.lt.s32.totalorder %v82, 40
    %vm697 = vcmp.lt.s32.totalorder %v83, 40
    %vm698 = vcmp.lt.s32.totalorder %v84, 40
    %vm699 = vcmp.lt.s32.totalorder %v85, 40
    %vm700 = vcmp.lt.s32.totalorder %v86, 40
    %vm701 = vmand %vm181, %vm693
    %vm702 = vmand %vm182, %vm694
    %vm703 = vmand %vm183, %vm695
    %vm704 = vmand %vm184, %vm696
    %vm705 = vmand %vm185, %vm697
    %vm706 = vmand %vm186, %vm698
    %vm707 = vmand %vm187, %vm699
    %vm708 = vmand %vm188, %vm700
    %vm709 = vcmp.ge.s32.totalorder %v88, 32
    %vm710 = vmand %vm701, %vm709
    %vm711 = vmand %vm702, %vm709
    %vm712 = vmand %vm703, %vm709
    %vm713 = vmand %vm704, %vm709
    %vm714 = vmand %vm705, %vm709
    %vm715 = vmand %vm706, %vm709
    %vm716 = vmand %vm707, %vm709
    %vm717 = vmand %vm708, %vm709
    %vm718 = vcmp.lt.s32.totalorder %v88, 40
    %vm719 = vmand %vm710, %vm718
    %vm720 = vmand %vm711, %vm718
    %vm721 = vmand %vm712, %vm718
    %vm722 = vmand %vm713, %vm718
    %vm723 = vmand %vm714, %vm718
    %vm724 = vmand %vm715, %vm718
    %vm725 = vmand %vm716, %vm718
    %vm726 = vmand %vm717, %vm718
    %vm727 = vmor %vm685, %vm719
    %vm728 = vmor %vm686, %vm720
    %vm729 = vmor %vm687, %vm721
    %vm730 = vmor %vm688, %vm722
    %vm731 = vmor %vm689, %vm723
    %vm732 = vmor %vm690, %vm724
    %vm733 = vmor %vm691, %vm725
    %vm734 = vmor %vm692, %vm726
    %vm735 = vcmp.ge.s32.totalorder %v79, 40
    %vm736 = vcmp.ge.s32.totalorder %v80, 40
    %vm737 = vcmp.ge.s32.totalorder %v81, 40
    %vm738 = vcmp.ge.s32.totalorder %v82, 40
    %vm739 = vcmp.ge.s32.totalorder %v83, 40
    %vm740 = vcmp.ge.s32.totalorder %v84, 40
    %vm741 = vcmp.ge.s32.totalorder %v85, 40
    %vm742 = vcmp.ge.s32.totalorder %v86, 40
    %vm743 = vmand %vm735, %vm189
    %vm744 = vmand %vm736, %vm190
    %vm745 = vmand %vm737, %vm191
    %vm746 = vmand %vm738, %vm192
    %vm747 = vmand %vm739, %vm193
    %vm748 = vmand %vm740, %vm194
    %vm749 = vmand %vm741, %vm195
    %vm750 = vmand %vm742, %vm196
    %vm751 = vcmp.ge.s32.totalorder %v88, 40
    %vm752 = vmand %vm743, %vm751
    %vm753 = vmand %vm744, %vm751
    %vm754 = vmand %vm745, %vm751
    %vm755 = vmand %vm746, %vm751
    %vm756 = vmand %vm747, %vm751
    %vm757 = vmand %vm748, %vm751
    %vm758 = vmand %vm749, %vm751
    %vm759 = vmand %vm750, %vm751
    %vm760 = vcmp.lt.s32.totalorder %v88, 48
    %vm761 = vmand %vm752, %vm760
    %vm762 = vmand %vm753, %vm760
    %vm763 = vmand %vm754, %vm760
    %vm764 = vmand %vm755, %vm760
    %vm765 = vmand %vm756, %vm760
    %vm766 = vmand %vm757, %vm760
    %vm767 = vmand %vm758, %vm760
    %vm768 = vmand %vm759, %vm760
    %vm769 = vmor %vm727, %vm761
    %vm770 = vmor %vm728, %vm762
    %vm771 = vmor %vm729, %vm763
    %vm772 = vmor %vm730, %vm764
    %vm773 = vmor %vm731, %vm765
    %vm774 = vmor %vm732, %vm766
    %vm775 = vmor %vm733, %vm767
    %vm776 = vmor %vm734, %vm768
    %vm777 = vcmp.lt.s32.totalorder %v79, 56
    %vm778 = vcmp.lt.s32.totalorder %v80, 56
    %vm779 = vcmp.lt.s32.totalorder %v81, 56
    %vm780 = vcmp.lt.s32.totalorder %v82, 56
    %vm781 = vcmp.lt.s32.totalorder %v83, 56
    %vm782 = vcmp.lt.s32.totalorder %v84, 56
    %vm783 = vcmp.lt.s32.totalorder %v85, 56
    %vm784 = vcmp.lt.s32.totalorder %v86, 56
    %vm785 = vmand %vm231, %vm777
    %vm786 = vmand %vm232, %vm778
    %vm787 = vmand %vm233, %vm779
    %vm788 = vmand %vm234, %vm780
    %vm789 = vmand %vm235, %vm781
    %vm790 = vmand %vm236, %vm782
    %vm791 = vmand %vm237, %vm783
    %vm792 = vmand %vm238, %vm784
    %vm793 = vcmp.ge.s32.totalorder %v88, 48
    %vm794 = vmand %vm785, %vm793
    %vm795 = vmand %vm786, %vm793
    %vm796 = vmand %vm787, %vm793
    %vm797 = vmand %vm788, %vm793
    %vm798 = vmand %vm789, %vm793
    %vm799 = vmand %vm790, %vm793
    %vm800 = vmand %vm791, %vm793
    %vm801 = vmand %vm792, %vm793
    %vm802 = vcmp.lt.s32.totalorder %v88, 56
    %vm803 = vmand %vm794, %vm802
    %vm804 = vmand %vm795, %vm802
    %vm805 = vmand %vm796, %vm802
    %vm806 = vmand %vm797, %vm802
    %vm807 = vmand %vm798, %vm802
    %vm808 = vmand %vm799, %vm802
    %vm809 = vmand %vm800, %vm802
    %vm810 = vmand %vm801, %vm802
    %vm811 = vmor %vm769, %vm803
    %vm812 = vmor %vm770, %vm804
    %vm813 = vmor %vm771, %vm805
    %vm814 = vmor %vm772, %vm806
    %vm815 = vmor %vm773, %vm807
    %vm816 = vmor %vm774, %vm808
    %vm817 = vmor %vm775, %vm809
    %vm818 = vmor %vm776, %vm810
    %vm819 = vcmp.ge.s32.totalorder %v79, 56
    %vm820 = vcmp.ge.s32.totalorder %v80, 56
    %vm821 = vcmp.ge.s32.totalorder %v81, 56
    %vm822 = vcmp.ge.s32.totalorder %v82, 56
    %vm823 = vcmp.ge.s32.totalorder %v83, 56
    %vm824 = vcmp.ge.s32.totalorder %v84, 56
    %vm825 = vcmp.ge.s32.totalorder %v85, 56
    %vm826 = vcmp.ge.s32.totalorder %v86, 56
    %vm827 = vmand %vm819, %vm239
    %vm828 = vmand %vm820, %vm240
    %vm829 = vmand %vm821, %vm241
    %vm830 = vmand %vm822, %vm242
    %vm831 = vmand %vm823, %vm243
    %vm832 = vmand %vm824, %vm244
    %vm833 = vmand %vm825, %vm245
    %vm834 = vmand %vm826, %vm246
    %vm835 = vcmp.ge.s32.totalorder %v88, 56
    %vm836 = vmand %vm827, %vm835
    %vm837 = vmand %vm828, %vm835
    %vm838 = vmand %vm829, %vm835
    %vm839 = vmand %vm830, %vm835
    %vm840 = vmand %vm831, %vm835
    %vm841 = vmand %vm832, %vm835
    %vm842 = vmand %vm833, %vm835
    %vm843 = vmand %vm834, %vm835
    %vm844 = vcmp.lt.s32.totalorder %v88, 64
    %vm845 = vmand %vm836, %vm844
    %vm846 = vmand %vm837, %vm844
    %vm847 = vmand %vm838, %vm844
    %vm848 = vmand %vm839, %vm844
    %vm849 = vmand %vm840, %vm844
    %vm850 = vmand %vm841, %vm844
    %vm851 = vmand %vm842, %vm844
    %vm852 = vmand %vm843, %vm844
    %vm853 = vmor %vm811, %vm845
    %vm854 = vmor %vm812, %vm846
    %vm855 = vmor %vm813, %vm847
    %vm856 = vmor %vm814, %vm848
    %vm857 = vmor %vm815, %vm849
    %vm858 = vmor %vm816, %vm850
    %vm859 = vmor %vm817, %vm851
    %vm860 = vmor %vm818, %vm852
    %v861 = vsel %vm853, 0.0, -1e+30
    %v862 = vsel %vm854, 0.0, -1e+30
    %v863 = vsel %vm855, 0.0, -1e+30
    %v864 = vsel %vm856, 0.0, -1e+30
    %v865 = vsel %vm857, 0.0, -1e+30
    %v866 = vsel %vm858, 0.0, -1e+30
    %v867 = vsel %vm859, 0.0, -1e+30
    %v868 = vsel %vm860, 0.0, -1e+30
    %vm869 = vcmp.lt.s32.totalorder %v88, 12
    %vm870 = vmand %vm573, %vm869
    %vm871 = vmand %vm574, %vm869
    %vm872 = vmand %vm575, %vm869
    %vm873 = vmand %vm576, %vm869
    %vm874 = vmand %vm577, %vm869
    %vm875 = vmand %vm578, %vm869
    %vm876 = vmand %vm579, %vm869
    %vm877 = vmand %vm580, %vm869
    %vm878 = vcmp.ge.s32.totalorder %v88, 12
    %vm879 = vmand %vm597, %vm878
    %vm880 = vmand %vm598, %vm878
    %vm881 = vmand %vm599, %vm878
    %vm882 = vmand %vm600, %vm878
    %vm883 = vmand %vm601, %vm878
    %vm884 = vmand %vm602, %vm878
    %vm885 = vmand %vm603, %vm878
    %vm886 = vmand %vm604, %vm878
    %vm887 = vmand %vm879, %vm214
    %vm888 = vmand %vm880, %vm214
    %vm889 = vmand %vm881, %vm214
    %vm890 = vmand %vm882, %vm214
    %vm891 = vmand %vm883, %vm214
    %vm892 = vmand %vm884, %vm214
    %vm893 = vmand %vm885, %vm214
    %vm894 = vmand %vm886, %vm214
    %vm895 = vmor %vm870, %vm887
    %vm896 = vmor %vm871, %vm888
    %vm897 = vmor %vm872, %vm889
    %vm898 = vmor %vm873, %vm890
    %vm899 = vmor %vm874, %vm891
    %vm900 = vmor %vm875, %vm892
    %vm901 = vmor %vm876, %vm893
    %vm902 = vmor %vm877, %vm894
    %vm903 = vmand %vm629, %vm255
    %vm904 = vmand %vm630, %vm255
    %vm905 = vmand %vm631, %vm255
    %vm906 = vmand %vm632, %vm255
    %vm907 = vmand %vm633, %vm255
    %vm908 = vmand %vm634, %vm255
    %vm909 = vmand %vm635, %vm255
    %vm910 = vmand %vm636, %vm255
    %vm911 = vcmp.lt.s32.totalorder %v88, 36
    %vm912 = vmand %vm903, %vm911
    %vm913 = vmand %vm904, %vm911
    %vm914 = vmand %vm905, %vm911
    %vm915 = vmand %vm906, %vm911
    %vm916 = vmand %vm907, %vm911
    %vm917 = vmand %vm908, %vm911
    %vm918 = vmand %vm909, %vm911
    %vm919 = vmand %vm910, %vm911
    %vm920 = vmor %vm895, %vm912
    %vm921 = vmor %vm896, %vm913
    %vm922 = vmor %vm897, %vm914
    %vm923 = vmor %vm898, %vm915
    %vm924 = vmor %vm899, %vm916
    %vm925 = vmor %vm900, %vm917
    %vm926 = vmor %vm901, %vm918
    %vm927 = vmor %vm902, %vm919
    %vm928 = vcmp.ge.s32.totalorder %v88, 36
    %vm929 = vmand %vm661, %vm928
    %vm930 = vmand %vm662, %vm928
    %vm931 = vmand %vm663, %vm928
    %vm932 = vmand %vm664, %vm928
    %vm933 = vmand %vm665, %vm928
    %vm934 = vmand %vm666, %vm928
    %vm935 = vmand %vm667, %vm928
    %vm936 = vmand %vm668, %vm928
    %vm937 = vmand %vm929, %vm760
    %vm938 = vmand %vm930, %vm760
    %vm939 = vmand %vm931, %vm760
    %vm940 = vmand %vm932, %vm760
    %vm941 = vmand %vm933, %vm760
    %vm942 = vmand %vm934, %vm760
    %vm943 = vmand %vm935, %vm760
    %vm944 = vmand %vm936, %vm760
    %vm945 = vmor %vm920, %vm937
    %vm946 = vmor %vm921, %vm938
    %vm947 = vmor %vm922, %vm939
    %vm948 = vmor %vm923, %vm940
    %vm949 = vmor %vm924, %vm941
    %vm950 = vmor %vm925, %vm942
    %vm951 = vmor %vm926, %vm943
    %vm952 = vmor %vm927, %vm944
    %vm953 = vmand %vm701, %vm793
    %vm954 = vmand %vm702, %vm793
    %vm955 = vmand %vm703, %vm793
    %vm956 = vmand %vm704, %vm793
    %vm957 = vmand %vm705, %vm793
    %vm958 = vmand %vm706, %vm793
    %vm959 = vmand %vm707, %vm793
    %vm960 = vmand %vm708, %vm793
    %vm961 = vcmp.lt.s32.totalorder %v88, 60
    %vm962 = vmand %vm953, %vm961
    %vm963 = vmand %vm954, %vm961
    %vm964 = vmand %vm955, %vm961
    %vm965 = vmand %vm956, %vm961
    %vm966 = vmand %vm957, %vm961
    %vm967 = vmand %vm958, %vm961
    %vm968 = vmand %vm959, %vm961
    %vm969 = vmand %vm960, %vm961
    %vm970 = vmor %vm945, %vm962
    %vm971 = vmor %vm946, %vm963
    %vm972 = vmor %vm947, %vm964
    %vm973 = vmor %vm948, %vm965
    %vm974 = vmor %vm949, %vm966
    %vm975 = vmor %vm950, %vm967
    %vm976 = vmor %vm951, %vm968
    %vm977 = vmor %vm952, %vm969
    %vm978 = vcmp.ge.s32.totalorder %v88, 60
    %vm979 = vmand %vm743, %vm978
    %vm980 = vmand %vm744, %vm978
    %vm981 = vmand %vm745, %vm978
    %vm982 = vmand %vm746, %vm978
    %vm983 = vmand %vm747, %vm978
    %vm984 = vmand %vm748, %vm978
    %vm985 = vmand %vm749, %vm978
    %vm986 = vmand %vm750, %vm978
    %vm987 = vcmp.lt.s32.totalorder %v88, 72
    %vm988 = vmand %vm979, %vm987
    %vm989 = vmand %vm980, %vm987
    %vm990 = vmand %vm981, %vm987
    %vm991 = vmand %vm982, %vm987
    %vm992 = vmand %vm983, %vm987
    %vm993 = vmand %vm984, %vm987
    %vm994 = vmand %vm985, %vm987
    %vm995 = vmand %vm986, %vm987
    %vm996 = vmor %vm970, %vm988
    %vm997 = vmor %vm971, %vm989
    %vm998 = vmor %vm972, %vm990
    %vm999 = vmor %vm973, %vm991
    %vm1000 = vmor %vm974, %vm992
    %vm1001 = vmor %vm975, %vm993
    %vm1002 = vmor %vm976, %vm994
    %vm1003 = vmor %vm977, %vm995
    %vm1004 = vcmp.ge.s32.totalorder %v88, 72
    %vm1005 = vmand %vm785, %vm1004
    %vm1006 = vmand %vm786, %vm1004
    %vm1007 = vmand %vm787, %vm1004
    %vm1008 = vmand %vm788, %vm1004
    %vm1009 = vmand %vm789, %vm1004
    %vm1010 = vmand %vm790, %vm1004
    %vm1011 = vmand %vm791, %vm1004
    %vm1012 = vmand %vm792, %vm1004
    %vm1013 = vcmp.lt.s32.totalorder %v88, 84
    %vm1014 = vmand %vm1005, %vm1013
    %vm1015 = vmand %vm1006, %vm1013
    %vm1016 = vmand %vm1007, %vm1013
    %vm1017 = vmand %vm1008, %vm1013
    %vm1018 = vmand %vm1009, %vm1013
    %vm1019 = vmand %vm1010, %vm1013
    %vm1020 = vmand %vm1011, %vm1013
    %vm1021 = vmand %vm1012, %vm1013
    %vm1022 = vmor %vm996, %vm1014
    %vm1023 = vmor %vm997, %vm1015
    %vm1024 = vmor %vm998, %vm1016
    %vm1025 = vmor %vm999, %vm1017
    %vm1026 = vmor %vm1000, %vm1018
    %vm1027 = vmor %vm1001, %vm1019
    %vm1028 = vmor %vm1002, %vm1020
    %vm1029 = vmor %vm1003, %vm1021
    %vm1030 = vcmp.ge.s32.totalorder %v88, 84
    %vm1031 = vmand %vm827, %vm1030
    %vm1032 = vmand %vm828, %vm1030
    %vm1033 = vmand %vm829, %vm1030
    %vm1034 = vmand %vm830, %vm1030
    %vm1035 = vmand %vm831, %vm1030
    %vm1036 = vmand %vm832, %vm1030
    %vm1037 = vmand %vm833, %vm1030
    %vm1038 = vmand %vm834, %vm1030
    %vm1039 = vcmp.lt.s32.totalorder %v88, 96
    %vm1040 = vmand %vm1031, %vm1039
    %vm1041 = vmand %vm1032, %vm1039
    %vm1042 = vmand %vm1033, %vm1039
    %vm1043 = vmand %vm1034, %vm1039
    %vm1044 = vmand %vm1035, %vm1039
    %vm1045 = vmand %vm1036, %vm1039
    %vm1046 = vmand %vm1037, %vm1039
    %vm1047 = vmand %vm1038, %vm1039
    %vm1048 = vmor %vm1022, %vm1040
    %vm1049 = vmor %vm1023, %vm1041
    %vm1050 = vmor %vm1024, %vm1042
    %vm1051 = vmor %vm1025, %vm1043
    %vm1052 = vmor %vm1026, %vm1044
    %vm1053 = vmor %vm1027, %vm1045
    %vm1054 = vmor %vm1028, %vm1046
    %vm1055 = vmor %vm1029, %vm1047
    %v1056 = vsel %vm1048, 0.0, -1e+30
    %v1057 = vsel %vm1049, 0.0, -1e+30
    %v1058 = vsel %vm1050, 0.0, -1e+30
    %v1059 = vsel %vm1051, 0.0, -1e+30
    %v1060 = vsel %vm1052, 0.0, -1e+30
    %v1061 = vsel %vm1053, 0.0, -1e+30
    %v1062 = vsel %vm1054, 0.0, -1e+30
    %v1063 = vsel %vm1055, 0.0, -1e+30
    %v1064 = vld [vmem:[#allocation7] sm:$0xff]
    %v1065 = vld [vmem:[#allocation7 + $0x18] sm:$0xff]
    %v1066 = vld [vmem:[#allocation7 + $0x30] sm:$0xff]
    %v1067 = vld [vmem:[#allocation7 + $0x48] sm:$0xff]
    %v1068 = vld [vmem:[#allocation8] sm:$0x1]
    %v1070 = vlaneseq
    %v1071 = vshrl.u32 %v1070, 7
    %v1072 = vsub.s32 0, %v1071
    %v1073 = vrot.slane %v1068, %v1072
    %vm1075 = vcmask 261120
    %v1077 = vsel %vm1075, %v73, 0
    %v1080 = vsel %vm1075, %v74, 0
    %1082 = vmatprep.subr.mxu0 0.0
    %1083 = vmatpush1.msra.mxu0 0.0
    %1084 = vmatprep.subr.mxu0 0.0
    %1085 = vmatpush1.msra.mxu0 0.0
    %1086 = vmatprep.subr.mxu0 0.0
    %1087 = vmatpush1.msra.mxu0 0.0
    %1088 = vmatprep.subr.mxu0 0.0
    %1089 = vmatpush1.msra.mxu0 0.0
    %1090 = vmatprep.subr.mxu0 0.0
    %1091 = vmatpush1.msra.mxu0 0.0
    %1092 = vmatprep.subr.mxu0 0.0
    %1093 = vmatpush1.msra.mxu0 0.0
    %1094 = vmatprep.subr.mxu0 0.0
    %1095 = vmatpush1.msra.mxu0 0.0
    %1096 = vmatprep.subr.mxu0 0.0
    %1097 = vmatpush1.msra.mxu0 0.0
    %1098 = vmatprep.subr.mxu0 0.0
    %1099 = vmatpush1.msra.mxu0 0.0
    %1100 = vmatprep.subr.mxu0 0.0
    %1101 = vmatpush1.msra.mxu0 0.0
    %1102 = vmatprep.subr.mxu0 0.0
    %1103 = vmatpush1.msra.mxu0 0.0
    %1104 = vmatprep.subr.mxu0 0.0
    %1105 = vmatpush1.msra.mxu0 0.0
    %1106 = vmatprep.subr.mxu0 0.0
    %1107 = vmatpush1.msra.mxu0 %v1067
    %1108 = vmatprep.subr.mxu0 0.0
    %1109 = vmatpush1.msra.mxu0 %v1066
    %1110 = vmatprep.subr.mxu0 0.0
    %1111 = vmatpush1.msra.mxu0 %v1065
    %1112 = vmatprep.subr.mxu0 0.0
    %1113 = vmatpush1.msra.mxu0 %v1064
    %1114 = vmatprep.subr.mxu0 0.0
    %1115 = vmatpush2.msra.mxu0 0.0
    %1116 = vmatprep.subr.mxu0 0.0
    %1117 = vmatpush2.msra.mxu0 0.0
    %1118 = vmatprep.subr.mxu0 0.0
    %1119 = vmatpush2.msra.mxu0 0.0
    %1120 = vmatprep.subr.mxu0 0.0
    %1121 = vmatpush2.msra.mxu0 0.0
    %1122 = vmatprep.subr.mxu0 0.0
    %1123 = vmatpush2.msra.mxu0 0.0
    %1124 = vmatprep.subr.mxu0 0.0
    %1125 = vmatpush2.msra.mxu0 0.0
    %1126 = vmatprep.subr.mxu0 0.0
    %1127 = vmatpush2.msra.mxu0 0.0
    %1128 = vmatprep.subr.mxu0 0.0
    %1129 = vmatpush2.msra.mxu0 0.0
    %1130 = vmatprep.subr.mxu0 0.0
    %1131 = vmatpush2.msra.mxu0 0.0
    %1132 = vmatprep.subr.mxu0 0.0
    %1133 = vmatpush2.msra.mxu0 0.0
    %1134 = vmatprep.subr.mxu0 0.0
    %1135 = vmatpush2.msra.mxu0 0.0
    %1136 = vmatprep.subr.mxu0 0.0
    %1137 = vmatpush2.msra.mxu0 0.0
    %1138 = vmatprep.subr.mxu0 0.0
    %1139 = vmatpush2.msra.mxu0 0.0
    %1140 = vmatprep.subr.mxu0 0.0
    %1141 = vmatpush2.msra.mxu0 0.0
    %1142 = vmatprep.subr.mxu0 0.0
    %1143 = vmatpush2.msra.mxu0 0.0
    %1144 = vmatprep.subr.mxu0 0.0
    %1145 = vmatpush2.msra.mxu0 0.0
    %1146 = vmatprep.mubr.f32.mxu0 0.0
    %1147 = vmatmul.mubr.f32.gmra.mxu0 %v1077
    %v1148 = vpop.f32.mrf.mxu0
    %v1149 = vadd.f32 %v1073, %v1148
    %v1150 = vpop.f32.mrf.mxu0
    %1151 = vmatprep.mubr.f32.mxu0 0.0
    %1152 = vmatmul.mubr.f32.gmra.mxu0 %v1080
    %v1153 = vpop.f32.mrf.mxu0
    %v1154 = vadd.f32 %v1073, %v1153
    %v1155 = vpop.f32.mrf.mxu0
    %1156 = vdwg.mxu0
    %v1157 = vmul.f32 %v1149, %v281
    %v1158 = vmul.f32 %v1154, %v282
    %v1159 = vmul.f32 %v1149, %v283
    %v1160 = vmul.f32 %v1154, %v284
    %v1161 = vmul.f32 %v1149, %v285
    %v1162 = vmul.f32 %v1154, %v286
    %v1163 = vmul.f32 %v1149, %v287
    %v1164 = vmul.f32 %v1154, %v288
    %1173 = vrot.lane.b32.xlu0 %v281, 32
    %v1174 = vpop.permute.xlu0 %1173
    %1175 = vrot.lane.b32.xlu0 %v282, 32
    %v1176 = vpop.permute.xlu0 %1175
    %1177 = vrot.lane.b32.xlu0 %v283, 32
    %v1178 = vpop.permute.xlu0 %1177
    %1179 = vrot.lane.b32.xlu0 %v284, 32
    %v1180 = vpop.permute.xlu0 %1179
    %1181 = vrot.lane.b32.xlu0 %v285, 32
    %v1182 = vpop.permute.xlu0 %1181
    %1183 = vrot.lane.b32.xlu0 %v286, 32
    %v1184 = vpop.permute.xlu0 %1183
    %1185 = vrot.lane.b32.xlu0 %v287, 32
    %v1186 = vpop.permute.xlu0 %1185
    %1187 = vrot.lane.b32.xlu0 %v288, 32
    %v1188 = vpop.permute.xlu0 %1187
    %v1197 = vmul.f32 %v1149, %v1174
    %v1198 = vmul.f32 %v1154, %v1176
    %v1199 = vmul.f32 %v1149, %v1178
    %v1200 = vmul.f32 %v1154, %v1180
    %v1201 = vmul.f32 %v1149, %v1182
    %v1202 = vmul.f32 %v1154, %v1184
    %v1203 = vmul.f32 %v1149, %v1186
    %v1204 = vmul.f32 %v1154, %v1188
    %1205 = vrot.lane.b32.xlu0 %v281, 64
    %v1206 = vpop.permute.xlu0 %1205
    %1207 = vrot.lane.b32.xlu0 %v282, 64
    %v1208 = vpop.permute.xlu0 %1207
    %1209 = vrot.lane.b32.xlu0 %v283, 64
    %v1210 = vpop.permute.xlu0 %1209
    %1211 = vrot.lane.b32.xlu0 %v284, 64
    %v1212 = vpop.permute.xlu0 %1211
    %1213 = vrot.lane.b32.xlu0 %v285, 64
    %v1214 = vpop.permute.xlu0 %1213
    %1215 = vrot.lane.b32.xlu0 %v286, 64
    %v1216 = vpop.permute.xlu0 %1215
    %1217 = vrot.lane.b32.xlu0 %v287, 64
    %v1218 = vpop.permute.xlu0 %1217
    %1219 = vrot.lane.b32.xlu0 %v288, 64
    %v1220 = vpop.permute.xlu0 %1219
    %v1229 = vmul.f32 %v1149, %v1206
    %v1230 = vmul.f32 %v1154, %v1208
    %v1231 = vmul.f32 %v1149, %v1210
    %v1232 = vmul.f32 %v1154, %v1212
    %v1233 = vmul.f32 %v1149, %v1214
    %v1234 = vmul.f32 %v1154, %v1216
    %v1235 = vmul.f32 %v1149, %v1218
    %v1236 = vmul.f32 %v1154, %v1220
    %1245 = vrot.lane.b32.xlu0 %v1197, 96
    %v1246 = vpop.permute.xlu0 %1245
    %1247 = vrot.lane.b32.xlu0 %v1198, 96
    %v1248 = vpop.permute.xlu0 %1247
    %1249 = vrot.lane.b32.xlu0 %v1199, 96
    %v1250 = vpop.permute.xlu0 %1249
    %1251 = vrot.lane.b32.xlu0 %v1200, 96
    %v1252 = vpop.permute.xlu0 %1251
    %1253 = vrot.lane.b32.xlu0 %v1201, 96
    %v1254 = vpop.permute.xlu0 %1253
    %1255 = vrot.lane.b32.xlu0 %v1202, 96
    %v1256 = vpop.permute.xlu0 %1255
    %1257 = vrot.lane.b32.xlu0 %v1203, 96
    %v1258 = vpop.permute.xlu0 %1257
    %1259 = vrot.lane.b32.xlu0 %v1204, 96
    %v1260 = vpop.permute.xlu0 %1259
    %v1262 = vsel %vm1075, %v1157, 0
    %v1265 = vsel %vm1075, %v1158, 0
    %v1268 = vsel %vm1075, %v1159, 0
    %v1271 = vsel %vm1075, %v1160, 0
    %v1274 = vsel %vm1075, %v1161, 0
    %v1277 = vsel %vm1075, %v1162, 0
    %v1280 = vsel %vm1075, %v1163, 0
    %v1283 = vsel %vm1075, %v1164, 0
    %v1285 = vsel %vm1075, %v1246, 0
    %v1287 = vsel %vm1075, %v1248, 0
    %v1289 = vsel %vm1075, %v1250, 0
    %v1291 = vsel %vm1075, %v1252, 0
    %v1293 = vsel %vm1075, %v1254, 0
    %v1295 = vsel %vm1075, %v1256, 0
    %v1297 = vsel %vm1075, %v1258, 0
    %v1299 = vsel %vm1075, %v1260, 0
    %1301 = vmatprep.subr.mxu0 0.0
    %1302 = vmatpush1.xpose.msra.mxu0 0.0
    %1303 = vmatprep.subr.mxu0 0.0
    %1304 = vmatpush1.xpose.msra.mxu0 0.0
    %1305 = vmatprep.subr.mxu0 0.0
    %1306 = vmatpush1.xpose.msra.mxu0 0.0
    %1307 = vmatprep.subr.mxu0 0.0
    %1308 = vmatpush1.xpose.msra.mxu0 0.0
    %1309 = vmatprep.subr.mxu0 0.0
    %1310 = vmatpush1.xpose.msra.mxu0 0.0
    %1311 = vmatprep.subr.mxu0 0.0
    %1312 = vmatpush1.xpose.msra.mxu0 0.0
    %1313 = vmatprep.subr.mxu0 0.0
    %1314 = vmatpush1.xpose.msra.mxu0 0.0
    %1315 = vmatprep.subr.mxu0 0.0
    %1316 = vmatpush1.xpose.msra.mxu0 0.0
    %1317 = vmatprep.subr.mxu0 0.0
    %1318 = vmatpush1.xpose.msra.mxu0 %v1299
    %1319 = vmatprep.subr.mxu0 0.0
    %1320 = vmatpush1.xpose.msra.mxu0 %v1297
    %1321 = vmatprep.subr.mxu0 0.0
    %1322 = vmatpush1.xpose.msra.mxu0 %v1295
    %1323 = vmatprep.subr.mxu0 0.0
    %1324 = vmatpush1.xpose.msra.mxu0 %v1293
    %1325 = vmatprep.subr.mxu0 0.0
    %1326 = vmatpush1.xpose.msra.mxu0 %v1291
    %1327 = vmatprep.subr.mxu0 0.0
    %1328 = vmatpush1.xpose.msra.mxu0 %v1289
    %1329 = vmatprep.subr.mxu0 0.0
    %1330 = vmatpush1.xpose.msra.mxu0 %v1287
    %1331 = vmatprep.subr.mxu0 0.0
    %1332 = vmatpush1.xpose.msra.mxu0 %v1285
    %1333 = vmatprep.subr.mxu0 0.0
    %1334 = vmatpush2.xpose.msra.mxu0 0.0
    %1335 = vmatprep.subr.mxu0 0.0
    %1336 = vmatpush2.xpose.msra.mxu0 0.0
    %1337 = vmatprep.subr.mxu0 0.0
    %1338 = vmatpush2.xpose.msra.mxu0 0.0
    %1339 = vmatprep.subr.mxu0 0.0
    %1340 = vmatpush2.xpose.msra.mxu0 0.0
    %1341 = vmatprep.subr.mxu0 0.0
    %1342 = vmatpush2.xpose.msra.mxu0 0.0
    %1343 = vmatprep.subr.mxu0 0.0
    %1344 = vmatpush2.xpose.msra.mxu0 0.0
    %1345 = vmatprep.subr.mxu0 0.0
    %1346 = vmatpush2.xpose.msra.mxu0 0.0
    %1347 = vmatprep.subr.mxu0 0.0
    %1348 = vmatpush2.xpose.msra.mxu0 0.0
    %1349 = vmatprep.subr.mxu0 0.0
    %1350 = vmatpush2.xpose.msra.mxu0 0.0
    %1351 = vmatprep.subr.mxu0 0.0
    %1352 = vmatpush2.xpose.msra.mxu0 0.0
    %1353 = vmatprep.subr.mxu0 0.0
    %1354 = vmatpush2.xpose.msra.mxu0 0.0
    %1355 = vmatprep.subr.mxu0 0.0
    %1356 = vmatpush2.xpose.msra.mxu0 0.0
    %1357 = vmatprep.subr.mxu0 0.0
    %1358 = vmatpush2.xpose.msra.mxu0 0.0
    %1359 = vmatprep.subr.mxu0 0.0
    %1360 = vmatpush2.xpose.msra.mxu0 0.0
    %1361 = vmatprep.subr.mxu0 0.0
    %1362 = vmatpush2.xpose.msra.mxu0 0.0
    %1363 = vmatprep.subr.mxu0 0.0
    %1364 = vmatpush2.xpose.msra.mxu0 0.0
    %1365 = vmatprep.mubr.f32.mxu0 0.0
    %1366 = vmatmul.mubr.f32.gmra.mxu0 %v1262
    %v1367 = vpop.f32.mrf.mxu0
    %v1368 = vadd.f32 %v861, %v1367
    %v1369 = vpop.f32.mrf.mxu0
    %1370 = vmatprep.mubr.f32.mxu0 0.0
    %1371 = vmatmul.mubr.f32.gmra.mxu0 %v1265
    %v1372 = vpop.f32.mrf.mxu0
    %v1373 = vadd.f32 %v862, %v1372
    %v1374 = vpop.f32.mrf.mxu0
    %1375 = vmatprep.mubr.f32.mxu0 0.0
    %1376 = vmatmul.mubr.f32.gmra.mxu0 %v1268
    %v1377 = vpop.f32.mrf.mxu0
    %v1378 = vadd.f32 %v863, %v1377
    %v1379 = vpop.f32.mrf.mxu0
    %1380 = vmatprep.mubr.f32.mxu0 0.0
    %1381 = vmatmul.mubr.f32.gmra.mxu0 %v1271
    %v1382 = vpop.f32.mrf.mxu0
    %v1383 = vadd.f32 %v864, %v1382
    %v1384 = vpop.f32.mrf.mxu0
    %1385 = vmatprep.mubr.f32.mxu0 0.0
    %1386 = vmatmul.mubr.f32.gmra.mxu0 %v1274
    %v1387 = vpop.f32.mrf.mxu0
    %v1388 = vadd.f32 %v865, %v1387
    %v1389 = vpop.f32.mrf.mxu0
    %1390 = vmatprep.mubr.f32.mxu0 0.0
    %1391 = vmatmul.mubr.f32.gmra.mxu0 %v1277
    %v1392 = vpop.f32.mrf.mxu0
    %v1393 = vadd.f32 %v866, %v1392
    %v1394 = vpop.f32.mrf.mxu0
    %1395 = vmatprep.mubr.f32.mxu0 0.0
    %1396 = vmatmul.mubr.f32.gmra.mxu0 %v1280
    %v1397 = vpop.f32.mrf.mxu0
    %v1398 = vadd.f32 %v867, %v1397
    %v1399 = vpop.f32.mrf.mxu0
    %1400 = vmatprep.mubr.f32.mxu0 0.0
    %1401 = vmatmul.mubr.f32.gmra.mxu0 %v1283
    %v1402 = vpop.f32.mrf.mxu0
    %v1403 = vadd.f32 %v868, %v1402
    %v1404 = vpop.f32.mrf.mxu0
    %1405 = vdwg.mxu0
    %vm1406 = vcmask 523264
    %v1407 = vsel %vm1406, %v1368, -inf
    %1408 = vmax.xlane.f32.xlu0 %v1407
    %v1409 = vpop.xlane.xlu0 %1408
    %v1410 = vsel %vm1406, %v1373, -inf
    %1411 = vmax.xlane.f32.xlu0 %v1410
    %v1412 = vpop.xlane.xlu0 %1411
    %v1413 = vsel %vm1406, %v1378, -inf
    %1414 = vmax.xlane.f32.xlu0 %v1413
    %v1415 = vpop.xlane.xlu0 %1414
    %v1416 = vsel %vm1406, %v1383, -inf
    %1417 = vmax.xlane.f32.xlu0 %v1416
    %v1418 = vpop.xlane.xlu0 %1417
    %v1419 = vsel %vm1406, %v1388, -inf
    %1420 = vmax.xlane.f32.xlu0 %v1419
    %v1421 = vpop.xlane.xlu0 %1420
    %v1422 = vsel %vm1406, %v1393, -inf
    %1423 = vmax.xlane.f32.xlu0 %v1422
    %v1424 = vpop.xlane.xlu0 %1423
    %v1425 = vsel %vm1406, %v1398, -inf
    %1426 = vmax.xlane.f32.xlu0 %v1425
    %v1427 = vpop.xlane.xlu0 %1426
    %v1428 = vsel %vm1406, %v1403, -inf
    %1429 = vmax.xlane.f32.xlu0 %v1428
    %v1430 = vpop.xlane.xlu0 %1429
    %v1431 = vsub.f32 %v1368, %v1409
    %v1432 = vsub.f32 %v1373, %v1412
    %v1433 = vsub.f32 %v1378, %v1415
    %v1434 = vsub.f32 %v1383, %v1418
    %v1435 = vsub.f32 %v1388, %v1421
    %v1436 = vsub.f32 %v1393, %v1424
    %v1437 = vsub.f32 %v1398, %v1427
    %v1438 = vsub.f32 %v1403, %v1430
    %v1439 = vmul.f32 %v1431, 1.442695
    %v1440 = vpow.pop %v1439
    %v1441 = vmul.f32 %v1432, 1.442695
    %v1442 = vpow.pop %v1441
    %v1443 = vmul.f32 %v1433, 1.442695
    %v1444 = vpow.pop %v1443
    %v1445 = vmul.f32 %v1434, 1.442695
    %v1446 = vpow.pop %v1445
    %v1447 = vmul.f32 %v1435, 1.442695
    %v1448 = vpow.pop %v1447
    %v1449 = vmul.f32 %v1436, 1.442695
    %v1450 = vpow.pop %v1449
    %v1451 = vmul.f32 %v1437, 1.442695
    %v1452 = vpow.pop %v1451
    %v1453 = vmul.f32 %v1438, 1.442695
    %v1454 = vpow.pop %v1453
    %v1455 = vsel %vm1406, %v1440, 0.0
    %1456 = vadd.xlane.f32.xlu0 %v1455
    %v1457 = vpop.xlane.xlu0 %1456
    %v1458 = vsel %vm1406, %v1442, 0.0
    %1459 = vadd.xlane.f32.xlu0 %v1458
    %v1460 = vpop.xlane.xlu0 %1459
    %v1461 = vsel %vm1406, %v1444, 0.0
    %1462 = vadd.xlane.f32.xlu0 %v1461
    %v1463 = vpop.xlane.xlu0 %1462
    %v1464 = vsel %vm1406, %v1446, 0.0
    %1465 = vadd.xlane.f32.xlu0 %v1464
    %v1466 = vpop.xlane.xlu0 %1465
    %v1467 = vsel %vm1406, %v1448, 0.0
    %1468 = vadd.xlane.f32.xlu0 %v1467
    %v1469 = vpop.xlane.xlu0 %1468
    %v1470 = vsel %vm1406, %v1450, 0.0
    %1471 = vadd.xlane.f32.xlu0 %v1470
    %v1472 = vpop.xlane.xlu0 %1471
    %v1473 = vsel %vm1406, %v1452, 0.0
    %1474 = vadd.xlane.f32.xlu0 %v1473
    %v1475 = vpop.xlane.xlu0 %1474
    %v1476 = vsel %vm1406, %v1454, 0.0
    %1477 = vadd.xlane.f32.xlu0 %v1476
    %v1478 = vpop.xlane.xlu0 %1477
    %v1479 = vrcp.pop %v1457
    %v1480 = vrcp.pop %v1460
    %v1481 = vrcp.pop %v1463
    %v1482 = vrcp.pop %v1466
    %v1483 = vrcp.pop %v1469
    %v1484 = vrcp.pop %v1472
    %v1485 = vrcp.pop %v1475
    %v1486 = vrcp.pop %v1478
    %v1487 = vmul.f32 %v1440, %v1479
    %v1488 = vmul.f32 %v1442, %v1480
    %v1489 = vmul.f32 %v1444, %v1481
    %v1490 = vmul.f32 %v1446, %v1482
    %v1491 = vmul.f32 %v1448, %v1483
    %v1492 = vmul.f32 %v1450, %v1484
    %v1493 = vmul.f32 %v1452, %v1485
    %v1494 = vmul.f32 %v1454, %v1486
    %1503 = vrot.lane.b32.xlu0 %v1229, 64
    %v1504 = vpop.permute.xlu0 %1503
    %1505 = vrot.lane.b32.xlu0 %v1230, 64
    %v1506 = vpop.permute.xlu0 %1505
    %1507 = vrot.lane.b32.xlu0 %v1231, 64
    %v1508 = vpop.permute.xlu0 %1507
    %1509 = vrot.lane.b32.xlu0 %v1232, 64
    %v1510 = vpop.permute.xlu0 %1509
    %1511 = vrot.lane.b32.xlu0 %v1233, 64
    %v1512 = vpop.permute.xlu0 %1511
    %1513 = vrot.lane.b32.xlu0 %v1234, 64
    %v1514 = vpop.permute.xlu0 %1513
    %1515 = vrot.lane.b32.xlu0 %v1235, 64
    %v1516 = vpop.permute.xlu0 %1515
    %1517 = vrot.lane.b32.xlu0 %v1236, 64
    %v1518 = vpop.permute.xlu0 %1517
    %v1528 = vsel %vm1406, %v1487, 0
    %v1531 = vsel %vm1406, %v1488, 0
    %v1534 = vsel %vm1406, %v1489, 0
    %v1537 = vsel %vm1406, %v1490, 0
    %v1540 = vsel %vm1406, %v1491, 0
    %v1543 = vsel %vm1406, %v1492, 0
    %v1546 = vsel %vm1406, %v1493, 0
    %v1549 = vsel %vm1406, %v1494, 0
    %1551 = vmatprep.subr.mxu0 0.0
    %1552 = vmatpush1.msra.mxu0 0.0
    %1553 = vmatprep.subr.mxu0 0.0
    %1554 = vmatpush1.msra.mxu0 0.0
    %1555 = vmatprep.subr.mxu0 0.0
    %1556 = vmatpush1.msra.mxu0 0.0
    %1557 = vmatprep.subr.mxu0 0.0
    %1558 = vmatpush1.msra.mxu0 0.0
    %1559 = vmatprep.subr.mxu0 0.0
    %1560 = vmatpush1.msra.mxu0 0.0
    %1561 = vmatprep.subr.mxu0 0.0
    %1562 = vmatpush1.msra.mxu0 0.0
    %1563 = vmatprep.subr.mxu0 0.0
    %1564 = vmatpush1.msra.mxu0 0.0
    %1565 = vmatprep.subr.mxu0 0.0
    %1566 = vmatpush1.msra.mxu0 0.0
    %1567 = vmatprep.subr.mxu0 0.0
    %1568 = vmatpush1.msra.mxu0 %v1518
    %1569 = vmatprep.subr.mxu0 0.0
    %1570 = vmatpush1.msra.mxu0 %v1516
    %1571 = vmatprep.subr.mxu0 0.0
    %1572 = vmatpush1.msra.mxu0 %v1514
    %1573 = vmatprep.subr.mxu0 0.0
    %1574 = vmatpush1.msra.mxu0 %v1512
    %1575 = vmatprep.subr.mxu0 0.0
    %1576 = vmatpush1.msra.mxu0 %v1510
    %1577 = vmatprep.subr.mxu0 0.0
    %1578 = vmatpush1.msra.mxu0 %v1508
    %1579 = vmatprep.subr.mxu0 0.0
    %1580 = vmatpush1.msra.mxu0 %v1506
    %1581 = vmatprep.subr.mxu0 0.0
    %1582 = vmatpush1.msra.mxu0 %v1504
    %1583 = vmatprep.subr.mxu0 0.0
    %1584 = vmatpush2.msra.mxu0 0.0
    %1585 = vmatprep.subr.mxu0 0.0
    %1586 = vmatpush2.msra.mxu0 0.0
    %1587 = vmatprep.subr.mxu0 0.0
    %1588 = vmatpush2.msra.mxu0 0.0
    %1589 = vmatprep.subr.mxu0 0.0
    %1590 = vmatpush2.msra.mxu0 0.0
    %1591 = vmatprep.subr.mxu0 0.0
    %1592 = vmatpush2.msra.mxu0 0.0
    %1593 = vmatprep.subr.mxu0 0.0
    %1594 = vmatpush2.msra.mxu0 0.0
    %1595 = vmatprep.subr.mxu0 0.0
    %1596 = vmatpush2.msra.mxu0 0.0
    %1597 = vmatprep.subr.mxu0 0.0
    %1598 = vmatpush2.msra.mxu0 0.0
    %1599 = vmatprep.subr.mxu0 0.0
    %1600 = vmatpush2.msra.mxu0 0.0
    %1601 = vmatprep.subr.mxu0 0.0
    %1602 = vmatpush2.msra.mxu0 0.0
    %1603 = vmatprep.subr.mxu0 0.0
    %1604 = vmatpush2.msra.mxu0 0.0
    %1605 = vmatprep.subr.mxu0 0.0
    %1606 = vmatpush2.msra.mxu0 0.0
    %1607 = vmatprep.subr.mxu0 0.0
    %1608 = vmatpush2.msra.mxu0 0.0
    %1609 = vmatprep.subr.mxu0 0.0
    %1610 = vmatpush2.msra.mxu0 0.0
    %1611 = vmatprep.subr.mxu0 0.0
    %1612 = vmatpush2.msra.mxu0 0.0
    %1613 = vmatprep.subr.mxu0 0.0
    %1614 = vmatpush2.msra.mxu0 0.0
    %1615 = vmatprep.mubr.f32.mxu0 0.0
    %1616 = vmatmul.mubr.f32.gmra.mxu0 %v1528
    %v1617 = vpop.f32.mrf.mxu0
    %v1618 = vadd.f32 0.0, %v1617
    %v1619 = vpop.f32.mrf.mxu0
    %1620 = vmatprep.mubr.f32.mxu0 0.0
    %1621 = vmatmul.mubr.f32.gmra.mxu0 %v1531
    %v1622 = vpop.f32.mrf.mxu0
    %v1623 = vadd.f32 0.0, %v1622
    %v1624 = vpop.f32.mrf.mxu0
    %1625 = vmatprep.mubr.f32.mxu0 0.0
    %1626 = vmatmul.mubr.f32.gmra.mxu0 %v1534
    %v1627 = vpop.f32.mrf.mxu0
    %v1628 = vadd.f32 0.0, %v1627
    %v1629 = vpop.f32.mrf.mxu0
    %1630 = vmatprep.mubr.f32.mxu0 0.0
    %1631 = vmatmul.mubr.f32.gmra.mxu0 %v1537
    %v1632 = vpop.f32.mrf.mxu0
    %v1633 = vadd.f32 0.0, %v1632
    %v1634 = vpop.f32.mrf.mxu0
    %1635 = vmatprep.mubr.f32.mxu0 0.0
    %1636 = vmatmul.mubr.f32.gmra.mxu0 %v1540
    %v1637 = vpop.f32.mrf.mxu0
    %v1638 = vadd.f32 0.0, %v1637
    %v1639 = vpop.f32.mrf.mxu0
    %1640 = vmatprep.mubr.f32.mxu0 0.0
    %1641 = vmatmul.mubr.f32.gmra.mxu0 %v1543
    %v1642 = vpop.f32.mrf.mxu0
    %v1643 = vadd.f32 0.0, %v1642
    %v1644 = vpop.f32.mrf.mxu0
    %1645 = vmatprep.mubr.f32.mxu0 0.0
    %1646 = vmatmul.mubr.f32.gmra.mxu0 %v1546
    %v1647 = vpop.f32.mrf.mxu0
    %v1648 = vadd.f32 0.0, %v1647
    %v1649 = vpop.f32.mrf.mxu0
    %1650 = vmatprep.mubr.f32.mxu0 0.0
    %1651 = vmatmul.mubr.f32.gmra.mxu0 %v1549
    %v1652 = vpop.f32.mrf.mxu0
    %v1653 = vadd.f32 0.0, %v1652
    %v1654 = vpop.f32.mrf.mxu0
    %1655 = vdwg.mxu0
    %v1656 = vadd.f32 %v1618, %v1628
    %v1657 = vadd.f32 %v1623, %v1633
    %v1658 = vadd.f32 %v1656, %v1638
    %v1659 = vadd.f32 %v1657, %v1643
    %v1660 = vadd.f32 %v1658, %v1648
    %v1661 = vadd.f32 %v1659, %v1653
    %1666 = vrot.lane.b32.xlu0 %v1064, 32
    %v1667 = vpop.permute.xlu0 %1666
    %1668 = vrot.lane.b32.xlu0 %v1065, 32
    %v1669 = vpop.permute.xlu0 %1668
    %1670 = vrot.lane.b32.xlu0 %v1066, 32
    %v1671 = vpop.permute.xlu0 %1670
    %1672 = vrot.lane.b32.xlu0 %v1067, 32
    %v1673 = vpop.permute.xlu0 %1672
    %1678 = vrot.lane.b32.xlu0 %v1073, 32
    %v1679 = vpop.permute.xlu0 %1678
    %v1682 = vsel %vm1075, %v1660, 0
    %v1685 = vsel %vm1075, %v1661, 0
    %1687 = vmatprep.subr.mxu0 0.0
    %1688 = vmatpush1.msra.mxu0 0.0
    %1689 = vmatprep.subr.mxu0 0.0
    %1690 = vmatpush1.msra.mxu0 0.0
    %1691 = vmatprep.subr.mxu0 0.0
    %1692 = vmatpush1.msra.mxu0 0.0
    %1693 = vmatprep.subr.mxu0 0.0
    %1694 = vmatpush1.msra.mxu0 0.0
    %1695 = vmatprep.subr.mxu0 0.0
    %1696 = vmatpush1.msra.mxu0 0.0
    %1697 = vmatprep.subr.mxu0 0.0
    %1698 = vmatpush1.msra.mxu0 0.0
    %1699 = vmatprep.subr.mxu0 0.0
    %1700 = vmatpush1.msra.mxu0 0.0
    %1701 = vmatprep.subr.mxu0 0.0
    %1702 = vmatpush1.msra.mxu0 0.0
    %1703 = vmatprep.subr.mxu0 0.0
    %1704 = vmatpush1.msra.mxu0 0.0
    %1705 = vmatprep.subr.mxu0 0.0
    %1706 = vmatpush1.msra.mxu0 0.0
    %1707 = vmatprep.subr.mxu0 0.0
    %1708 = vmatpush1.msra.mxu0 0.0
    %1709 = vmatprep.subr.mxu0 0.0
    %1710 = vmatpush1.msra.mxu0 0.0
    %1711 = vmatprep.subr.mxu0 0.0
    %1712 = vmatpush1.msra.mxu0 %v1673
    %1713 = vmatprep.subr.mxu0 0.0
    %1714 = vmatpush1.msra.mxu0 %v1671
    %1715 = vmatprep.subr.mxu0 0.0
    %1716 = vmatpush1.msra.mxu0 %v1669
    %1717 = vmatprep.subr.mxu0 0.0
    %1718 = vmatpush1.msra.mxu0 %v1667
    %1719 = vmatprep.subr.mxu0 0.0
    %1720 = vmatpush2.msra.mxu0 0.0
    %1721 = vmatprep.subr.mxu0 0.0
    %1722 = vmatpush2.msra.mxu0 0.0
    %1723 = vmatprep.subr.mxu0 0.0
    %1724 = vmatpush2.msra.mxu0 0.0
    %1725 = vmatprep.subr.mxu0 0.0
    %1726 = vmatpush2.msra.mxu0 0.0
    %1727 = vmatprep.subr.mxu0 0.0
    %1728 = vmatpush2.msra.mxu0 0.0
    %1729 = vmatprep.subr.mxu0 0.0
    %1730 = vmatpush2.msra.mxu0 0.0
    %1731 = vmatprep.subr.mxu0 0.0
    %1732 = vmatpush2.msra.mxu0 0.0
    %1733 = vmatprep.subr.mxu0 0.0
    %1734 = vmatpush2.msra.mxu0 0.0
    %1735 = vmatprep.subr.mxu0 0.0
    %1736 = vmatpush2.msra.mxu0 0.0
    %1737 = vmatprep.subr.mxu0 0.0
    %1738 = vmatpush2.msra.mxu0 0.0
    %1739 = vmatprep.subr.mxu0 0.0
    %1740 = vmatpush2.msra.mxu0 0.0
    %1741 = vmatprep.subr.mxu0 0.0
    %1742 = vmatpush2.msra.mxu0 0.0
    %1743 = vmatprep.subr.mxu0 0.0
    %1744 = vmatpush2.msra.mxu0 0.0
    %1745 = vmatprep.subr.mxu0 0.0
    %1746 = vmatpush2.msra.mxu0 0.0
    %1747 = vmatprep.subr.mxu0 0.0
    %1748 = vmatpush2.msra.mxu0 0.0
    %1749 = vmatprep.subr.mxu0 0.0
    %1750 = vmatpush2.msra.mxu0 0.0
    %1751 = vmatprep.mubr.f32.mxu0 0.0
    %1752 = vmatmul.mubr.f32.gmra.mxu0 %v1682
    %v1753 = vpop.f32.mrf.mxu0
    %v1754 = vadd.f32 %v1679, %v1753
    %v1755 = vpop.f32.mrf.mxu0
    %1756 = vmatprep.mubr.f32.mxu0 0.0
    %1757 = vmatmul.mubr.f32.gmra.mxu0 %v1685
    %v1758 = vpop.f32.mrf.mxu0
    %v1759 = vadd.f32 %v1679, %v1758
    %v1760 = vpop.f32.mrf.mxu0
    %1761 = vdwg.mxu0
    %v1762 = vadd.f32 %v73, %v1754
    %v1763 = vadd.f32 %v74, %v1759
    %v1764 = vld [vmem:[#allocation8 + $0x1] sm:$0x1]
    %v1765 = vsel %vm1075, %v1762, 0.0
    %1766 = vadd.xlane.f32.xlu0 %v1765
    %v1767 = vpop.xlane.xlu0 %1766
    %v1768 = vsel %vm1075, %v1763, 0.0
    %1769 = vadd.xlane.f32.xlu0 %v1768
    %v1770 = vpop.xlane.xlu0 %1769
    %v1771 = vrcp.pop 32.0
    %v1772 = vmul.f32 %v1767, %v1771
    %v1773 = vmul.f32 %v1770, %v1771
    %v1774 = vsub.f32 %v1762, %v1772
    %v1775 = vsub.f32 %v1763, %v1773
    %v1776 = vmul.f32 %v1774, %v1774
    %v1777 = vmul.f32 %v1775, %v1775
    %v1778 = vsel %vm1075, %v1776, 0.0
    %1779 = vadd.xlane.f32.xlu0 %v1778
    %v1780 = vpop.xlane.xlu0 %1779
    %v1781 = vsel %vm1075, %v1777, 0.0
    %1782 = vadd.xlane.f32.xlu0 %v1781
    %v1783 = vpop.xlane.xlu0 %1782
    %v1784 = vmul.f32 %v1780, %v1771
    %v1785 = vmul.f32 %v1783, %v1771
    %v1786 = vadd.f32 %v1784, 1e-05
    %v1787 = vadd.f32 %v1785, 1e-05
    %v1788 = vrsqrt.pop %v1786
    %v1789 = vrsqrt.pop %v1787
    %v1790 = vmul.f32 %v1774, %v1788
    %v1791 = vmul.f32 %v1775, %v1789
    %v1793 = vlaneseq
    %v1794 = vshrl.u32 %v1793, 7
    %v1795 = vsub.s32 0, %v1794
    %v1796 = vrot.slane %v1764, %v1795
    %v1798 = vmul.f32 %v1790, %v1796
    %v1799 = vmul.f32 %v1791, %v1796
    %1800 = vrot.lane.b32.xlu0 %v1796, 96
    %v1801 = vpop.permute.xlu0 %1800
    %v1803 = vadd.f32 %v1798, %v1801
    %v1804 = vadd.f32 %v1799, %v1801
    %v1805 = vld [vmem:[#allocation7 + $0x8] sm:$0xff]
    %v1806 = vld [vmem:[#allocation7 + $0x20] sm:$0xff]
    %v1807 = vld [vmem:[#allocation7 + $0x38] sm:$0xff]
    %v1808 = vld [vmem:[#allocation7 + $0x50] sm:$0xff]
    %1809 = vrot.lane.b32.xlu0 %v1796, 64
    %v1810 = vpop.permute.xlu0 %1809
    %v1813 = vsel %vm1075, %v1803, 0
    %v1816 = vsel %vm1075, %v1804, 0
    %1818 = vmatprep.subr.mxu0 0.0
    %1819 = vmatpush1.msra.mxu0 0.0
    %1820 = vmatprep.subr.mxu0 0.0
    %1821 = vmatpush1.msra.mxu0 0.0
    %1822 = vmatprep.subr.mxu0 0.0
    %1823 = vmatpush1.msra.mxu0 0.0
    %1824 = vmatprep.subr.mxu0 0.0
    %1825 = vmatpush1.msra.mxu0 0.0
    %1826 = vmatprep.subr.mxu0 0.0
    %1827 = vmatpush1.msra.mxu0 0.0
    %1828 = vmatprep.subr.mxu0 0.0
    %1829 = vmatpush1.msra.mxu0 0.0
    %1830 = vmatprep.subr.mxu0 0.0
    %1831 = vmatpush1.msra.mxu0 0.0
    %1832 = vmatprep.subr.mxu0 0.0
    %1833 = vmatpush1.msra.mxu0 0.0
    %1834 = vmatprep.subr.mxu0 0.0
    %1835 = vmatpush1.msra.mxu0 0.0
    %1836 = vmatprep.subr.mxu0 0.0
    %1837 = vmatpush1.msra.mxu0 0.0
    %1838 = vmatprep.subr.mxu0 0.0
    %1839 = vmatpush1.msra.mxu0 0.0
    %1840 = vmatprep.subr.mxu0 0.0
    %1841 = vmatpush1.msra.mxu0 0.0
    %1842 = vmatprep.subr.mxu0 0.0
    %1843 = vmatpush1.msra.mxu0 %v1808
    %1844 = vmatprep.subr.mxu0 0.0
    %1845 = vmatpush1.msra.mxu0 %v1807
    %1846 = vmatprep.subr.mxu0 0.0
    %1847 = vmatpush1.msra.mxu0 %v1806
    %1848 = vmatprep.subr.mxu0 0.0
    %1849 = vmatpush1.msra.mxu0 %v1805
    %1850 = vmatprep.subr.mxu0 0.0
    %1851 = vmatpush2.msra.mxu0 0.0
    %1852 = vmatprep.subr.mxu0 0.0
    %1853 = vmatpush2.msra.mxu0 0.0
    %1854 = vmatprep.subr.mxu0 0.0
    %1855 = vmatpush2.msra.mxu0 0.0
    %1856 = vmatprep.subr.mxu0 0.0
    %1857 = vmatpush2.msra.mxu0 0.0
    %1858 = vmatprep.subr.mxu0 0.0
    %1859 = vmatpush2.msra.mxu0 0.0
    %1860 = vmatprep.subr.mxu0 0.0
    %1861 = vmatpush2.msra.mxu0 0.0
    %1862 = vmatprep.subr.mxu0 0.0
    %1863 = vmatpush2.msra.mxu0 0.0
    %1864 = vmatprep.subr.mxu0 0.0
    %1865 = vmatpush2.msra.mxu0 0.0
    %1866 = vmatprep.subr.mxu0 0.0
    %1867 = vmatpush2.msra.mxu0 0.0
    %1868 = vmatprep.subr.mxu0 0.0
    %1869 = vmatpush2.msra.mxu0 0.0
    %1870 = vmatprep.subr.mxu0 0.0
    %1871 = vmatpush2.msra.mxu0 0.0
    %1872 = vmatprep.subr.mxu0 0.0
    %1873 = vmatpush2.msra.mxu0 0.0
    %1874 = vmatprep.subr.mxu0 0.0
    %1875 = vmatpush2.msra.mxu0 0.0
    %1876 = vmatprep.subr.mxu0 0.0
    %1877 = vmatpush2.msra.mxu0 0.0
    %1878 = vmatprep.subr.mxu0 0.0
    %1879 = vmatpush2.msra.mxu0 0.0
    %1880 = vmatprep.subr.mxu0 0.0
    %1881 = vmatpush2.msra.mxu0 0.0
    %1882 = vmatprep.mubr.f32.mxu0 0.0
    %1883 = vmatmul.mubr.f32.gmra.mxu0 %v1813
    %v1884 = vpop.f32.mrf.mxu0
    %v1885 = vadd.f32 %v1810, %v1884
    %v1886 = vpop.f32.mrf.mxu0
    %1887 = vmatprep.mubr.f32.mxu0 0.0
    %1888 = vmatmul.mubr.f32.gmra.mxu0 %v1816
    %v1889 = vpop.f32.mrf.mxu0
    %v1890 = vadd.f32 %v1810, %v1889
    %v1891 = vpop.f32.mrf.mxu0
    %1892 = vdwg.mxu0
    %v1893 = vld [vmem:[#allocation8 + $0x1] sm:$0x3]
    %v1895 = vlaneseq
    %v1896 = vshrl.u32 %v1895, 7
    %v1897 = vsub.s32 0, %v1896
    %v1898 = vrot.slane %v1893, %v1897
    %v1899 = vlaneseq
    %v1900 = vshrl.u32 %v1899, 7
    %v1901 = vsub.s32 1, %v1900
    %v1902 = vrot.slane %v1893, %v1901
    %1907 = vrot.lane.b32.xlu0 %v1805, 96
    %v1908 = vpop.permute.xlu0 %1907
    %1909 = vrot.lane.b32.xlu0 %v1806, 96
    %v1910 = vpop.permute.xlu0 %1909
    %1911 = vrot.lane.b32.xlu0 %v1807, 96
    %v1912 = vpop.permute.xlu0 %1911
    %1913 = vrot.lane.b32.xlu0 %v1808, 96
    %v1914 = vpop.permute.xlu0 %1913
    %1919 = vrot.lane.b32.xlu0 %v1898, 32
    %v1920 = vpop.permute.xlu0 %1919
    %1921 = vrot.lane.b32.xlu0 %v1902, 32
    %v1922 = vpop.permute.xlu0 %1921
    %v1923 = vsel %vm1075, %v1920, %v1922
    %v1926 = vsel %vm1075, %v75, 0
    %v1929 = vsel %vm1075, %v76, 0
    %v1932 = vsel %vm1075, %v77, 0
    %1934 = vmatprep.subr.mxu0 0.0
    %1935 = vmatpush1.msra.mxu0 0.0
    %1936 = vmatprep.subr.mxu0 0.0
    %1937 = vmatpush1.msra.mxu0 0.0
    %1938 = vmatprep.subr.mxu0 0.0
    %1939 = vmatpush1.msra.mxu0 0.0
    %1940 = vmatprep.subr.mxu0 0.0
    %1941 = vmatpush1.msra.mxu0 0.0
    %1942 = vmatprep.subr.mxu0 0.0
    %1943 = vmatpush1.msra.mxu0 0.0
    %1944 = vmatprep.subr.mxu0 0.0
    %1945 = vmatpush1.msra.mxu0 0.0
    %1946 = vmatprep.subr.mxu0 0.0
    %1947 = vmatpush1.msra.mxu0 0.0
    %1948 = vmatprep.subr.mxu0 0.0
    %1949 = vmatpush1.msra.mxu0 0.0
    %1950 = vmatprep.subr.mxu0 0.0
    %1951 = vmatpush1.msra.mxu0 0.0
    %1952 = vmatprep.subr.mxu0 0.0
    %1953 = vmatpush1.msra.mxu0 0.0
    %1954 = vmatprep.subr.mxu0 0.0
    %1955 = vmatpush1.msra.mxu0 0.0
    %1956 = vmatprep.subr.mxu0 0.0
    %1957 = vmatpush1.msra.mxu0 0.0
    %1958 = vmatprep.subr.mxu0 0.0
    %1959 = vmatpush1.msra.mxu0 %v1914
    %1960 = vmatprep.subr.mxu0 0.0
    %1961 = vmatpush1.msra.mxu0 %v1912
    %1962 = vmatprep.subr.mxu0 0.0
    %1963 = vmatpush1.msra.mxu0 %v1910
    %1964 = vmatprep.subr.mxu0 0.0
    %1965 = vmatpush1.msra.mxu0 %v1908
    %1966 = vmatprep.subr.mxu0 0.0
    %1967 = vmatpush2.msra.mxu0 0.0
    %1968 = vmatprep.subr.mxu0 0.0
    %1969 = vmatpush2.msra.mxu0 0.0
    %1970 = vmatprep.subr.mxu0 0.0
    %1971 = vmatpush2.msra.mxu0 0.0
    %1972 = vmatprep.subr.mxu0 0.0
    %1973 = vmatpush2.msra.mxu0 0.0
    %1974 = vmatprep.subr.mxu0 0.0
    %1975 = vmatpush2.msra.mxu0 0.0
    %1976 = vmatprep.subr.mxu0 0.0
    %1977 = vmatpush2.msra.mxu0 0.0
    %1978 = vmatprep.subr.mxu0 0.0
    %1979 = vmatpush2.msra.mxu0 0.0
    %1980 = vmatprep.subr.mxu0 0.0
    %1981 = vmatpush2.msra.mxu0 0.0
    %1982 = vmatprep.subr.mxu0 0.0
    %1983 = vmatpush2.msra.mxu0 0.0
    %1984 = vmatprep.subr.mxu0 0.0
    %1985 = vmatpush2.msra.mxu0 0.0
    %1986 = vmatprep.subr.mxu0 0.0
    %1987 = vmatpush2.msra.mxu0 0.0
    %1988 = vmatprep.subr.mxu0 0.0
    %1989 = vmatpush2.msra.mxu0 0.0
    %1990 = vmatprep.subr.mxu0 0.0
    %1991 = vmatpush2.msra.mxu0 0.0
    %1992 = vmatprep.subr.mxu0 0.0
    %1993 = vmatpush2.msra.mxu0 0.0
    %1994 = vmatprep.subr.mxu0 0.0
    %1995 = vmatpush2.msra.mxu0 0.0
    %1996 = vmatprep.subr.mxu0 0.0
    %1997 = vmatpush2.msra.mxu0 0.0
    %1998 = vmatprep.mubr.f32.mxu0 0.0
    %1999 = vmatmul.mubr.f32.gmra.mxu0 %v1926
    %v2000 = vpop.f32.mrf.mxu0
    %v2001 = vadd.f32 %v1923, %v2000
    %v2002 = vpop.f32.mrf.mxu0
    %2003 = vmatprep.mubr.f32.mxu0 0.0
    %2004 = vmatmul.mubr.f32.gmra.mxu0 %v1929
    %v2005 = vpop.f32.mrf.mxu0
    %v2006 = vadd.f32 %v1923, %v2005
    %v2007 = vpop.f32.mrf.mxu0
    %2008 = vmatprep.mubr.f32.mxu0 0.0
    %2009 = vmatmul.mubr.f32.gmra.mxu0 %v1932
    %v2010 = vpop.f32.mrf.mxu0
    %v2011 = vadd.f32 %v1923, %v2010
    %v2012 = vpop.f32.mrf.mxu0
    %2013 = vdwg.mxu0
    %v2014 = vld [vmem:[#allocation8 + $0x2] sm:$0x1]
    %v2015 = vmul.f32 %v1885, %v281
    %v2016 = vmul.f32 %v1890, %v282
    %v2017 = vmul.f32 %v1885, %v283
    %v2018 = vmul.f32 %v1890, %v284
    %v2019 = vmul.f32 %v1885, %v285
    %v2020 = vmul.f32 %v1890, %v286
    %v2021 = vmul.f32 %v1885, %v287
    %v2022 = vmul.f32 %v1890, %v288
    %v2023 = vmul.f32 %v2001, %v545
    %v2024 = vmul.f32 %v2006, %v546
    %v2025 = vmul.f32 %v2011, %v547
    %v2026 = vmul.f32 %v2001, %v548
    %v2027 = vmul.f32 %v2006, %v549
    %v2028 = vmul.f32 %v2011, %v550
    %v2029 = vmul.f32 %v2001, %v551
    %v2030 = vmul.f32 %v2006, %v552
    %v2031 = vmul.f32 %v2011, %v553
    %v2032 = vmul.f32 %v2001, %v554
    %v2033 = vmul.f32 %v2006, %v555
    %v2034 = vmul.f32 %v2011, %v556
    %2047 = vrot.lane.b32.xlu0 %v545, 32
    %v2048 = vpop.permute.xlu0 %2047
    %2049 = vrot.lane.b32.xlu0 %v546, 32
    %v2050 = vpop.permute.xlu0 %2049
    %2051 = vrot.lane.b32.xlu0 %v547, 32
    %v2052 = vpop.permute.xlu0 %2051
    %2053 = vrot.lane.b32.xlu0 %v548, 32
    %v2054 = vpop.permute.xlu0 %2053
    %2055 = vrot.lane.b32.xlu0 %v549, 32
    %v2056 = vpop.permute.xlu0 %2055
    %2057 = vrot.lane.b32.xlu0 %v550, 32
    %v2058 = vpop.permute.xlu0 %2057
    %2059 = vrot.lane.b32.xlu0 %v551, 32
    %v2060 = vpop.permute.xlu0 %2059
    %2061 = vrot.lane.b32.xlu0 %v552, 32
    %v2062 = vpop.permute.xlu0 %2061
    %2063 = vrot.lane.b32.xlu0 %v553, 32
    %v2064 = vpop.permute.xlu0 %2063
    %2065 = vrot.lane.b32.xlu0 %v554, 32
    %v2066 = vpop.permute.xlu0 %2065
    %2067 = vrot.lane.b32.xlu0 %v555, 32
    %v2068 = vpop.permute.xlu0 %2067
    %2069 = vrot.lane.b32.xlu0 %v556, 32
    %v2070 = vpop.permute.xlu0 %2069
    %v2083 = vmul.f32 %v2001, %v2048
    %v2084 = vmul.f32 %v2006, %v2050
    %v2085 = vmul.f32 %v2011, %v2052
    %v2086 = vmul.f32 %v2001, %v2054
    %v2087 = vmul.f32 %v2006, %v2056
    %v2088 = vmul.f32 %v2011, %v2058
    %v2089 = vmul.f32 %v2001, %v2060
    %v2090 = vmul.f32 %v2006, %v2062
    %v2091 = vmul.f32 %v2011, %v2064
    %v2092 = vmul.f32 %v2001, %v2066
    %v2093 = vmul.f32 %v2006, %v2068
    %v2094 = vmul.f32 %v2011, %v2070
    %v2096 = vsel %vm1075, %v2015, 0
    %v2099 = vsel %vm1075, %v2016, 0
    %v2102 = vsel %vm1075, %v2017, 0
    %v2105 = vsel %vm1075, %v2018, 0
    %v2108 = vsel %vm1075, %v2019, 0
    %v2111 = vsel %vm1075, %v2020, 0
    %v2114 = vsel %vm1075, %v2021, 0
    %v2117 = vsel %vm1075, %v2022, 0
    %v2120 = vsel %vm1075, %v2023, 0
    %v2123 = vsel %vm1075, %v2024, 0
    %v2126 = vsel %vm1075, %v2025, 0
    %v2129 = vsel %vm1075, %v2026, 0
    %v2132 = vsel %vm1075, %v2027, 0
    %v2135 = vsel %vm1075, %v2028, 0
    %v2138 = vsel %vm1075, %v2029, 0
    %v2141 = vsel %vm1075, %v2030, 0
    %v2144 = vsel %vm1075, %v2031, 0
    %v2147 = vsel %vm1075, %v2032, 0
    %v2150 = vsel %vm1075, %v2033, 0
    %v2153 = vsel %vm1075, %v2034, 0
    %2155 = vmatprep.subr.mxu0 0.0
    %2156 = vmatpush1.xpose.msra.mxu0 0.0
    %2157 = vmatprep.subr.mxu0 0.0
    %2158 = vmatpush1.xpose.msra.mxu0 0.0
    %2159 = vmatprep.subr.mxu0 0.0
    %2160 = vmatpush1.xpose.msra.mxu0 0.0
    %2161 = vmatprep.subr.mxu0 0.0
    %2162 = vmatpush1.xpose.msra.mxu0 0.0
    %2163 = vmatprep.subr.mxu0 0.0
    %2164 = vmatpush1.xpose.msra.mxu0 %v2153
    %2165 = vmatprep.subr.mxu0 0.0
    %2166 = vmatpush1.xpose.msra.mxu0 %v2150
    %2167 = vmatprep.subr.mxu0 0.0
    %2168 = vmatpush1.xpose.msra.mxu0 %v2147
    %2169 = vmatprep.subr.mxu0 0.0
    %2170 = vmatpush1.xpose.msra.mxu0 %v2144
    %2171 = vmatprep.subr.mxu0 0.0
    %2172 = vmatpush1.xpose.msra.mxu0 %v2141
    %2173 = vmatprep.subr.mxu0 0.0
    %2174 = vmatpush1.xpose.msra.mxu0 %v2138
    %2175 = vmatprep.subr.mxu0 0.0
    %2176 = vmatpush1.xpose.msra.mxu0 %v2135
    %2177 = vmatprep.subr.mxu0 0.0
    %2178 = vmatpush1.xpose.msra.mxu0 %v2132
    %2179 = vmatprep.subr.mxu0 0.0
    %2180 = vmatpush1.xpose.msra.mxu0 %v2129
    %2181 = vmatprep.subr.mxu0 0.0
    %2182 = vmatpush1.xpose.msra.mxu0 %v2126
    %2183 = vmatprep.subr.mxu0 0.0
    %2184 = vmatpush1.xpose.msra.mxu0 %v2123
    %2185 = vmatprep.subr.mxu0 0.0
    %2186 = vmatpush1.xpose.msra.mxu0 %v2120
    %2187 = vmatprep.subr.mxu0 0.0
    %2188 = vmatpush2.xpose.msra.mxu0 0.0
    %2189 = vmatprep.subr.mxu0 0.0
    %2190 = vmatpush2.xpose.msra.mxu0 0.0
    %2191 = vmatprep.subr.mxu0 0.0
    %2192 = vmatpush2.xpose.msra.mxu0 0.0
    %2193 = vmatprep.subr.mxu0 0.0
    %2194 = vmatpush2.xpose.msra.mxu0 0.0
    %2195 = vmatprep.subr.mxu0 0.0
    %2196 = vmatpush2.xpose.msra.mxu0 0.0
    %2197 = vmatprep.subr.mxu0 0.0
    %2198 = vmatpush2.xpose.msra.mxu0 0.0
    %2199 = vmatprep.subr.mxu0 0.0
    %2200 = vmatpush2.xpose.msra.mxu0 0.0
    %2201 = vmatprep.subr.mxu0 0.0
    %2202 = vmatpush2.xpose.msra.mxu0 0.0
    %2203 = vmatprep.subr.mxu0 0.0
    %2204 = vmatpush2.xpose.msra.mxu0 0.0
    %2205 = vmatprep.subr.mxu0 0.0
    %2206 = vmatpush2.xpose.msra.mxu0 0.0
    %2207 = vmatprep.subr.mxu0 0.0
    %2208 = vmatpush2.xpose.msra.mxu0 0.0
    %2209 = vmatprep.subr.mxu0 0.0
    %2210 = vmatpush2.xpose.msra.mxu0 0.0
    %2211 = vmatprep.subr.mxu0 0.0
    %2212 = vmatpush2.xpose.msra.mxu0 0.0
    %2213 = vmatprep.subr.mxu0 0.0
    %2214 = vmatpush2.xpose.msra.mxu0 0.0
    %2215 = vmatprep.subr.mxu0 0.0
    %2216 = vmatpush2.xpose.msra.mxu0 0.0
    %2217 = vmatprep.subr.mxu0 0.0
    %2218 = vmatpush2.xpose.msra.mxu0 0.0
    %2219 = vmatprep.mubr.f32.mxu0 0.0
    %2220 = vmatmul.mubr.f32.gmra.mxu0 %v2096
    %v2221 = vpop.f32.mrf.mxu0
    %v2222 = vadd.f32 %v1056, %v2221
    %v2223 = vpop.f32.mrf.mxu0
    %2224 = vmatprep.mubr.f32.mxu0 0.0
    %2225 = vmatmul.mubr.f32.gmra.mxu0 %v2099
    %v2226 = vpop.f32.mrf.mxu0
    %v2227 = vadd.f32 %v1057, %v2226
    %v2228 = vpop.f32.mrf.mxu0
    %2229 = vmatprep.mubr.f32.mxu0 0.0
    %2230 = vmatmul.mubr.f32.gmra.mxu0 %v2102
    %v2231 = vpop.f32.mrf.mxu0
    %v2232 = vadd.f32 %v1058, %v2231
    %v2233 = vpop.f32.mrf.mxu0
    %2234 = vmatprep.mubr.f32.mxu0 0.0
    %2235 = vmatmul.mubr.f32.gmra.mxu0 %v2105
    %v2236 = vpop.f32.mrf.mxu0
    %v2237 = vadd.f32 %v1059, %v2236
    %v2238 = vpop.f32.mrf.mxu0
    %2239 = vmatprep.mubr.f32.mxu0 0.0
    %2240 = vmatmul.mubr.f32.gmra.mxu0 %v2108
    %v2241 = vpop.f32.mrf.mxu0
    %v2242 = vadd.f32 %v1060, %v2241
    %v2243 = vpop.f32.mrf.mxu0
    %2244 = vmatprep.mubr.f32.mxu0 0.0
    %2245 = vmatmul.mubr.f32.gmra.mxu0 %v2111
    %v2246 = vpop.f32.mrf.mxu0
    %v2247 = vadd.f32 %v1061, %v2246
    %v2248 = vpop.f32.mrf.mxu0
    %2249 = vmatprep.mubr.f32.mxu0 0.0
    %2250 = vmatmul.mubr.f32.gmra.mxu0 %v2114
    %v2251 = vpop.f32.mrf.mxu0
    %v2252 = vadd.f32 %v1062, %v2251
    %v2253 = vpop.f32.mrf.mxu0
    %2254 = vmatprep.mubr.f32.mxu0 0.0
    %2255 = vmatmul.mubr.f32.gmra.mxu0 %v2117
    %v2256 = vpop.f32.mrf.mxu0
    %v2257 = vadd.f32 %v1063, %v2256
    %v2258 = vpop.f32.mrf.mxu0
    %2259 = vdwg.mxu0
    %vm2260 = vcmask 785408
    %v2261 = vsel %vm2260, %v2222, -inf
    %2262 = vmax.xlane.f32.xlu0 %v2261
    %v2263 = vpop.xlane.xlu0 %2262
    %v2264 = vsel %vm2260, %v2227, -inf
    %2265 = vmax.xlane.f32.xlu0 %v2264
    %v2266 = vpop.xlane.xlu0 %2265
    %v2267 = vsel %vm2260, %v2232, -inf
    %2268 = vmax.xlane.f32.xlu0 %v2267
    %v2269 = vpop.xlane.xlu0 %2268
    %v2270 = vsel %vm2260, %v2237, -inf
    %2271 = vmax.xlane.f32.xlu0 %v2270
    %v2272 = vpop.xlane.xlu0 %2271
    %v2273 = vsel %vm2260, %v2242, -inf
    %2274 = vmax.xlane.f32.xlu0 %v2273
    %v2275 = vpop.xlane.xlu0 %2274
    %v2276 = vsel %vm2260, %v2247, -inf
    %2277 = vmax.xlane.f32.xlu0 %v2276
    %v2278 = vpop.xlane.xlu0 %2277
    %v2279 = vsel %vm2260, %v2252, -inf
    %2280 = vmax.xlane.f32.xlu0 %v2279
    %v2281 = vpop.xlane.xlu0 %2280
    %v2282 = vsel %vm2260, %v2257, -inf
    %2283 = vmax.xlane.f32.xlu0 %v2282
    %v2284 = vpop.xlane.xlu0 %2283
    %v2285 = vsub.f32 %v2222, %v2263
    %v2286 = vsub.f32 %v2227, %v2266
    %v2287 = vsub.f32 %v2232, %v2269
    %v2288 = vsub.f32 %v2237, %v2272
    %v2289 = vsub.f32 %v2242, %v2275
    %v2290 = vsub.f32 %v2247, %v2278
    %v2291 = vsub.f32 %v2252, %v2281
    %v2292 = vsub.f32 %v2257, %v2284
    %v2293 = vmul.f32 %v2285, 1.442695
    %v2294 = vpow.pop %v2293
    %v2295 = vmul.f32 %v2286, 1.442695
    %v2296 = vpow.pop %v2295
    %v2297 = vmul.f32 %v2287, 1.442695
    %v2298 = vpow.pop %v2297
    %v2299 = vmul.f32 %v2288, 1.442695
    %v2300 = vpow.pop %v2299
    %v2301 = vmul.f32 %v2289, 1.442695
    %v2302 = vpow.pop %v2301
    %v2303 = vmul.f32 %v2290, 1.442695
    %v2304 = vpow.pop %v2303
    %v2305 = vmul.f32 %v2291, 1.442695
    %v2306 = vpow.pop %v2305
    %v2307 = vmul.f32 %v2292, 1.442695
    %v2308 = vpow.pop %v2307
    %v2309 = vsel %vm2260, %v2294, 0.0
    %2310 = vadd.xlane.f32.xlu0 %v2309
    %v2311 = vpop.xlane.xlu0 %2310
    %v2312 = vsel %vm2260, %v2296, 0.0
    %2313 = vadd.xlane.f32.xlu0 %v2312
    %v2314 = vpop.xlane.xlu0 %2313
    %v2315 = vsel %vm2260, %v2298, 0.0
    %2316 = vadd.xlane.f32.xlu0 %v2315
    %v2317 = vpop.xlane.xlu0 %2316
    %v2318 = vsel %vm2260, %v2300, 0.0
    %2319 = vadd.xlane.f32.xlu0 %v2318
    %v2320 = vpop.xlane.xlu0 %2319
    %v2321 = vsel %vm2260, %v2302, 0.0
    %2322 = vadd.xlane.f32.xlu0 %v2321
    %v2323 = vpop.xlane.xlu0 %2322
    %v2324 = vsel %vm2260, %v2304, 0.0
    %2325 = vadd.xlane.f32.xlu0 %v2324
    %v2326 = vpop.xlane.xlu0 %2325
    %v2327 = vsel %vm2260, %v2306, 0.0
    %2328 = vadd.xlane.f32.xlu0 %v2327
    %v2329 = vpop.xlane.xlu0 %2328
    %v2330 = vsel %vm2260, %v2308, 0.0
    %2331 = vadd.xlane.f32.xlu0 %v2330
    %v2332 = vpop.xlane.xlu0 %2331
    %v2333 = vrcp.pop %v2311
    %v2334 = vrcp.pop %v2314
    %v2335 = vrcp.pop %v2317
    %v2336 = vrcp.pop %v2320
    %v2337 = vrcp.pop %v2323
    %v2338 = vrcp.pop %v2326
    %v2339 = vrcp.pop %v2329
    %v2340 = vrcp.pop %v2332
    %v2341 = vmul.f32 %v2294, %v2333
    %v2342 = vmul.f32 %v2296, %v2334
    %v2343 = vmul.f32 %v2298, %v2335
    %v2344 = vmul.f32 %v2300, %v2336
    %v2345 = vmul.f32 %v2302, %v2337
    %v2346 = vmul.f32 %v2304, %v2338
    %v2347 = vmul.f32 %v2306, %v2339
    %v2348 = vmul.f32 %v2308, %v2340
    %2361 = vrot.lane.b32.xlu0 %v2083, 96
    %v2362 = vpop.permute.xlu0 %2361
    %2363 = vrot.lane.b32.xlu0 %v2084, 96
    %v2364 = vpop.permute.xlu0 %2363
    %2365 = vrot.lane.b32.xlu0 %v2085, 96
    %v2366 = vpop.permute.xlu0 %2365
    %2367 = vrot.lane.b32.xlu0 %v2086, 96
    %v2368 = vpop.permute.xlu0 %2367
    %2369 = vrot.lane.b32.xlu0 %v2087, 96
    %v2370 = vpop.permute.xlu0 %2369
    %2371 = vrot.lane.b32.xlu0 %v2088, 96
    %v2372 = vpop.permute.xlu0 %2371
    %2373 = vrot.lane.b32.xlu0 %v2089, 96
    %v2374 = vpop.permute.xlu0 %2373
    %2375 = vrot.lane.b32.xlu0 %v2090, 96
    %v2376 = vpop.permute.xlu0 %2375
    %2377 = vrot.lane.b32.xlu0 %v2091, 96
    %v2378 = vpop.permute.xlu0 %2377
    %2379 = vrot.lane.b32.xlu0 %v2092, 96
    %v2380 = vpop.permute.xlu0 %2379
    %2381 = vrot.lane.b32.xlu0 %v2093, 96
    %v2382 = vpop.permute.xlu0 %2381
    %2383 = vrot.lane.b32.xlu0 %v2094, 96
    %v2384 = vpop.permute.xlu0 %2383
    %v2398 = vsel %vm2260, %v2341, 0
    %v2401 = vsel %vm2260, %v2342, 0
    %v2404 = vsel %vm2260, %v2343, 0
    %v2407 = vsel %vm2260, %v2344, 0
    %v2410 = vsel %vm2260, %v2345, 0
    %v2413 = vsel %vm2260, %v2346, 0
    %v2416 = vsel %vm2260, %v2347, 0
    %v2419 = vsel %vm2260, %v2348, 0
    %2421 = vmatprep.subr.mxu0 0.0
    %2422 = vmatpush1.msra.mxu0 0.0
    %2423 = vmatprep.subr.mxu0 0.0
    %2424 = vmatpush1.msra.mxu0 0.0
    %2425 = vmatprep.subr.mxu0 0.0
    %2426 = vmatpush1.msra.mxu0 0.0
    %2427 = vmatprep.subr.mxu0 0.0
    %2428 = vmatpush1.msra.mxu0 0.0
    %2429 = vmatprep.subr.mxu0 0.0
    %2430 = vmatpush1.msra.mxu0 %v2384
    %2431 = vmatprep.subr.mxu0 0.0
    %2432 = vmatpush1.msra.mxu0 %v2382
    %2433 = vmatprep.subr.mxu0 0.0
    %2434 = vmatpush1.msra.mxu0 %v2380
    %2435 = vmatprep.subr.mxu0 0.0
    %2436 = vmatpush1.msra.mxu0 %v2378
    %2437 = vmatprep.subr.mxu0 0.0
    %2438 = vmatpush1.msra.mxu0 %v2376
    %2439 = vmatprep.subr.mxu0 0.0
    %2440 = vmatpush1.msra.mxu0 %v2374
    %2441 = vmatprep.subr.mxu0 0.0
    %2442 = vmatpush1.msra.mxu0 %v2372
    %2443 = vmatprep.subr.mxu0 0.0
    %2444 = vmatpush1.msra.mxu0 %v2370
    %2445 = vmatprep.subr.mxu0 0.0
    %2446 = vmatpush1.msra.mxu0 %v2368
    %2447 = vmatprep.subr.mxu0 0.0
    %2448 = vmatpush1.msra.mxu0 %v2366
    %2449 = vmatprep.subr.mxu0 0.0
    %2450 = vmatpush1.msra.mxu0 %v2364
    %2451 = vmatprep.subr.mxu0 0.0
    %2452 = vmatpush1.msra.mxu0 %v2362
    %2453 = vmatprep.subr.mxu0 0.0
    %2454 = vmatpush2.msra.mxu0 0.0
    %2455 = vmatprep.subr.mxu0 0.0
    %2456 = vmatpush2.msra.mxu0 0.0
    %2457 = vmatprep.subr.mxu0 0.0
    %2458 = vmatpush2.msra.mxu0 0.0
    %2459 = vmatprep.subr.mxu0 0.0
    %2460 = vmatpush2.msra.mxu0 0.0
    %2461 = vmatprep.subr.mxu0 0.0
    %2462 = vmatpush2.msra.mxu0 0.0
    %2463 = vmatprep.subr.mxu0 0.0
    %2464 = vmatpush2.msra.mxu0 0.0
    %2465 = vmatprep.subr.mxu0 0.0
    %2466 = vmatpush2.msra.mxu0 0.0
    %2467 = vmatprep.subr.mxu0 0.0
    %2468 = vmatpush2.msra.mxu0 0.0
    %2469 = vmatprep.subr.mxu0 0.0
    %2470 = vmatpush2.msra.mxu0 0.0
    %2471 = vmatprep.subr.mxu0 0.0
    %2472 = vmatpush2.msra.mxu0 0.0
    %2473 = vmatprep.subr.mxu0 0.0
    %2474 = vmatpush2.msra.mxu0 0.0
    %2475 = vmatprep.subr.mxu0 0.0
    %2476 = vmatpush2.msra.mxu0 0.0
    %2477 = vmatprep.subr.mxu0 0.0
    %2478 = vmatpush2.msra.mxu0 0.0
    %2479 = vmatprep.subr.mxu0 0.0
    %2480 = vmatpush2.msra.mxu0 0.0
    %2481 = vmatprep.subr.mxu0 0.0
    %2482 = vmatpush2.msra.mxu0 0.0
    %2483 = vmatprep.subr.mxu0 0.0
    %2484 = vmatpush2.msra.mxu0 0.0
    %2485 = vmatprep.mubr.f32.mxu0 0.0
    %2486 = vmatmul.mubr.f32.gmra.mxu0 %v2398
    %v2487 = vpop.f32.mrf.mxu0
    %v2488 = vadd.f32 0.0, %v2487
    %v2489 = vpop.f32.mrf.mxu0
    %2490 = vmatprep.mubr.f32.mxu0 0.0
    %2491 = vmatmul.mubr.f32.gmra.mxu0 %v2401
    %v2492 = vpop.f32.mrf.mxu0
    %v2493 = vadd.f32 0.0, %v2492
    %v2494 = vpop.f32.mrf.mxu0
    %2495 = vmatprep.mubr.f32.mxu0 0.0
    %2496 = vmatmul.mubr.f32.gmra.mxu0 %v2404
    %v2497 = vpop.f32.mrf.mxu0
    %v2498 = vadd.f32 0.0, %v2497
    %v2499 = vpop.f32.mrf.mxu0
    %2500 = vmatprep.mubr.f32.mxu0 0.0
    %2501 = vmatmul.mubr.f32.gmra.mxu0 %v2407
    %v2502 = vpop.f32.mrf.mxu0
    %v2503 = vadd.f32 0.0, %v2502
    %v2504 = vpop.f32.mrf.mxu0
    %2505 = vmatprep.mubr.f32.mxu0 0.0
    %2506 = vmatmul.mubr.f32.gmra.mxu0 %v2410
    %v2507 = vpop.f32.mrf.mxu0
    %v2508 = vadd.f32 0.0, %v2507
    %v2509 = vpop.f32.mrf.mxu0
    %2510 = vmatprep.mubr.f32.mxu0 0.0
    %2511 = vmatmul.mubr.f32.gmra.mxu0 %v2413
    %v2512 = vpop.f32.mrf.mxu0
    %v2513 = vadd.f32 0.0, %v2512
    %v2514 = vpop.f32.mrf.mxu0
    %2515 = vmatprep.mubr.f32.mxu0 0.0
    %2516 = vmatmul.mubr.f32.gmra.mxu0 %v2416
    %v2517 = vpop.f32.mrf.mxu0
    %v2518 = vadd.f32 0.0, %v2517
    %v2519 = vpop.f32.mrf.mxu0
    %2520 = vmatprep.mubr.f32.mxu0 0.0
    %2521 = vmatmul.mubr.f32.gmra.mxu0 %v2419
    %v2522 = vpop.f32.mrf.mxu0
    %v2523 = vadd.f32 0.0, %v2522
    %v2524 = vpop.f32.mrf.mxu0
    %2525 = vdwg.mxu0
    %v2526 = vadd.f32 %v2488, %v2498
    %v2527 = vadd.f32 %v2493, %v2503
    %v2528 = vadd.f32 %v2526, %v2508
    %v2529 = vadd.f32 %v2527, %v2513
    %v2530 = vadd.f32 %v2528, %v2518
    %v2531 = vadd.f32 %v2529, %v2523
    %v2533 = vlaneseq
    %v2534 = vshrl.u32 %v2533, 7
    %v2535 = vsub.s32 0, %v2534
    %v2536 = vrot.slane %v2014, %v2535
    %2537 = vrot.lane.b32.xlu0 %v1805, 32
    %v2538 = vpop.permute.xlu0 %2537
    %2539 = vrot.lane.b32.xlu0 %v1806, 32
    %v2540 = vpop.permute.xlu0 %2539
    %2541 = vrot.lane.b32.xlu0 %v1807, 32
    %v2542 = vpop.permute.xlu0 %2541
    %2543 = vrot.lane.b32.xlu0 %v1808, 32
    %v2544 = vpop.permute.xlu0 %2543
    %2549 = vrot.lane.b32.xlu0 %v2536, 96
    %v2550 = vpop.permute.xlu0 %2549
    %v2553 = vsel %vm1075, %v2530, 0
    %v2556 = vsel %vm1075, %v2531, 0
    %2558 = vmatprep.subr.mxu0 0.0
    %2559 = vmatpush1.msra.mxu0 0.0
    %2560 = vmatprep.subr.mxu0 0.0
    %2561 = vmatpush1.msra.mxu0 0.0
    %2562 = vmatprep.subr.mxu0 0.0
    %2563 = vmatpush1.msra.mxu0 0.0
    %2564 = vmatprep.subr.mxu0 0.0
    %2565 = vmatpush1.msra.mxu0 0.0
    %2566 = vmatprep.subr.mxu0 0.0
    %2567 = vmatpush1.msra.mxu0 0.0
    %2568 = vmatprep.subr.mxu0 0.0
    %2569 = vmatpush1.msra.mxu0 0.0
    %2570 = vmatprep.subr.mxu0 0.0
    %2571 = vmatpush1.msra.mxu0 0.0
    %2572 = vmatprep.subr.mxu0 0.0
    %2573 = vmatpush1.msra.mxu0 0.0
    %2574 = vmatprep.subr.mxu0 0.0
    %2575 = vmatpush1.msra.mxu0 0.0
    %2576 = vmatprep.subr.mxu0 0.0
    %2577 = vmatpush1.msra.mxu0 0.0
    %2578 = vmatprep.subr.mxu0 0.0
    %2579 = vmatpush1.msra.mxu0 0.0
    %2580 = vmatprep.subr.mxu0 0.0
    %2581 = vmatpush1.msra.mxu0 0.0
    %2582 = vmatprep.subr.mxu0 0.0
    %2583 = vmatpush1.msra.mxu0 %v2544
    %2584 = vmatprep.subr.mxu0 0.0
    %2585 = vmatpush1.msra.mxu0 %v2542
    %2586 = vmatprep.subr.mxu0 0.0
    %2587 = vmatpush1.msra.mxu0 %v2540
    %2588 = vmatprep.subr.mxu0 0.0
    %2589 = vmatpush1.msra.mxu0 %v2538
    %2590 = vmatprep.subr.mxu0 0.0
    %2591 = vmatpush2.msra.mxu0 0.0
    %2592 = vmatprep.subr.mxu0 0.0
    %2593 = vmatpush2.msra.mxu0 0.0
    %2594 = vmatprep.subr.mxu0 0.0
    %2595 = vmatpush2.msra.mxu0 0.0
    %2596 = vmatprep.subr.mxu0 0.0
    %2597 = vmatpush2.msra.mxu0 0.0
    %2598 = vmatprep.subr.mxu0 0.0
    %2599 = vmatpush2.msra.mxu0 0.0
    %2600 = vmatprep.subr.mxu0 0.0
    %2601 = vmatpush2.msra.mxu0 0.0
    %2602 = vmatprep.subr.mxu0 0.0
    %2603 = vmatpush2.msra.mxu0 0.0
    %2604 = vmatprep.subr.mxu0 0.0
    %2605 = vmatpush2.msra.mxu0 0.0
    %2606 = vmatprep.subr.mxu0 0.0
    %2607 = vmatpush2.msra.mxu0 0.0
    %2608 = vmatprep.subr.mxu0 0.0
    %2609 = vmatpush2.msra.mxu0 0.0
    %2610 = vmatprep.subr.mxu0 0.0
    %2611 = vmatpush2.msra.mxu0 0.0
    %2612 = vmatprep.subr.mxu0 0.0
    %2613 = vmatpush2.msra.mxu0 0.0
    %2614 = vmatprep.subr.mxu0 0.0
    %2615 = vmatpush2.msra.mxu0 0.0
    %2616 = vmatprep.subr.mxu0 0.0
    %2617 = vmatpush2.msra.mxu0 0.0
    %2618 = vmatprep.subr.mxu0 0.0
    %2619 = vmatpush2.msra.mxu0 0.0
    %2620 = vmatprep.subr.mxu0 0.0
    %2621 = vmatpush2.msra.mxu0 0.0
    %2622 = vmatprep.mubr.f32.mxu0 0.0
    %2623 = vmatmul.mubr.f32.gmra.mxu0 %v2553
    %v2624 = vpop.f32.mrf.mxu0
    %v2625 = vadd.f32 %v2550, %v2624
    %v2626 = vpop.f32.mrf.mxu0
    %2627 = vmatprep.mubr.f32.mxu0 0.0
    %2628 = vmatmul.mubr.f32.gmra.mxu0 %v2556
    %v2629 = vpop.f32.mrf.mxu0
    %v2630 = vadd.f32 %v2550, %v2629
    %v2631 = vpop.f32.mrf.mxu0
    %2632 = vdwg.mxu0
    %v2633 = vadd.f32 %v1803, %v2625
    %v2634 = vadd.f32 %v1804, %v2630
    %v2635 = vsel %vm1075, %v2633, 0.0
    %2636 = vadd.xlane.f32.xlu0 %v2635
    %v2637 = vpop.xlane.xlu0 %2636
    %v2638 = vsel %vm1075, %v2634, 0.0
    %2639 = vadd.xlane.f32.xlu0 %v2638
    %v2640 = vpop.xlane.xlu0 %2639
    %v2641 = vmul.f32 %v2637, %v1771
    %v2642 = vmul.f32 %v2640, %v1771
    %v2643 = vsub.f32 %v2633, %v2641
    %v2644 = vsub.f32 %v2634, %v2642
    %v2645 = vmul.f32 %v2643, %v2643
    %v2646 = vmul.f32 %v2644, %v2644
    %v2647 = vsel %vm1075, %v2645, 0.0
    %2648 = vadd.xlane.f32.xlu0 %v2647
    %v2649 = vpop.xlane.xlu0 %2648
    %v2650 = vsel %vm1075, %v2646, 0.0
    %2651 = vadd.xlane.f32.xlu0 %v2650
    %v2652 = vpop.xlane.xlu0 %2651
    %v2653 = vmul.f32 %v2649, %v1771
    %v2654 = vmul.f32 %v2652, %v1771
    %v2655 = vadd.f32 %v2653, 1e-05
    %v2656 = vadd.f32 %v2654, 1e-05
    %v2657 = vrsqrt.pop %v2655
    %v2658 = vrsqrt.pop %v2656
    %v2659 = vmul.f32 %v2643, %v2657
    %v2660 = vmul.f32 %v2644, %v2658
    %2661 = vrot.lane.b32.xlu0 %v2536, 64
    %v2662 = vpop.permute.xlu0 %2661
    %v2664 = vmul.f32 %v2659, %v2662
    %v2665 = vmul.f32 %v2660, %v2662
    %2666 = vrot.lane.b32.xlu0 %v2536, 32
    %v2667 = vpop.permute.xlu0 %2666
    %v2669 = vadd.f32 %v2664, %v2667
    %v2670 = vadd.f32 %v2665, %v2667
    %v2671 = vld [vmem:[#allocation7 + $0x10] sm:$0xff]
    %v2672 = vld [vmem:[#allocation7 + $0x28] sm:$0xff]
    %v2673 = vld [vmem:[#allocation7 + $0x40] sm:$0xff]
    %v2674 = vld [vmem:[#allocation7 + $0x58] sm:$0xff]
    %v2675 = vld [vmem:[#allocation8 + $0x3] sm:$0x1]
    %v2677 = vlaneseq
    %v2678 = vshrl.u32 %v2677, 7
    %v2679 = vsub.s32 0, %v2678
    %v2680 = vrot.slane %v2675, %v2679
    %v2683 = vsel %vm1075, %v2669, 0
    %v2686 = vsel %vm1075, %v2670, 0
    %2688 = vmatprep.subr.mxu0 0.0
    %2689 = vmatpush1.msra.mxu0 0.0
    %2690 = vmatprep.subr.mxu0 0.0
    %2691 = vmatpush1.msra.mxu0 0.0
    %2692 = vmatprep.subr.mxu0 0.0
    %2693 = vmatpush1.msra.mxu0 0.0
    %2694 = vmatprep.subr.mxu0 0.0
    %2695 = vmatpush1.msra.mxu0 0.0
    %2696 = vmatprep.subr.mxu0 0.0
    %2697 = vmatpush1.msra.mxu0 0.0
    %2698 = vmatprep.subr.mxu0 0.0
    %2699 = vmatpush1.msra.mxu0 0.0
    %2700 = vmatprep.subr.mxu0 0.0
    %2701 = vmatpush1.msra.mxu0 0.0
    %2702 = vmatprep.subr.mxu0 0.0
    %2703 = vmatpush1.msra.mxu0 0.0
    %2704 = vmatprep.subr.mxu0 0.0
    %2705 = vmatpush1.msra.mxu0 0.0
    %2706 = vmatprep.subr.mxu0 0.0
    %2707 = vmatpush1.msra.mxu0 0.0
    %2708 = vmatprep.subr.mxu0 0.0
    %2709 = vmatpush1.msra.mxu0 0.0
    %2710 = vmatprep.subr.mxu0 0.0
    %2711 = vmatpush1.msra.mxu0 0.0
    %2712 = vmatprep.subr.mxu0 0.0
    %2713 = vmatpush1.msra.mxu0 %v2674
    %2714 = vmatprep.subr.mxu0 0.0
    %2715 = vmatpush1.msra.mxu0 %v2673
    %2716 = vmatprep.subr.mxu0 0.0
    %2717 = vmatpush1.msra.mxu0 %v2672
    %2718 = vmatprep.subr.mxu0 0.0
    %2719 = vmatpush1.msra.mxu0 %v2671
    %2720 = vmatprep.subr.mxu0 0.0
    %2721 = vmatpush2.msra.mxu0 0.0
    %2722 = vmatprep.subr.mxu0 0.0
    %2723 = vmatpush2.msra.mxu0 0.0
    %2724 = vmatprep.subr.mxu0 0.0
    %2725 = vmatpush2.msra.mxu0 0.0
    %2726 = vmatprep.subr.mxu0 0.0
    %2727 = vmatpush2.msra.mxu0 0.0
    %2728 = vmatprep.subr.mxu0 0.0
    %2729 = vmatpush2.msra.mxu0 0.0
    %2730 = vmatprep.subr.mxu0 0.0
    %2731 = vmatpush2.msra.mxu0 0.0
    %2732 = vmatprep.subr.mxu0 0.0
    %2733 = vmatpush2.msra.mxu0 0.0
    %2734 = vmatprep.subr.mxu0 0.0
    %2735 = vmatpush2.msra.mxu0 0.0
    %2736 = vmatprep.subr.mxu0 0.0
    %2737 = vmatpush2.msra.mxu0 0.0
    %2738 = vmatprep.subr.mxu0 0.0
    %2739 = vmatpush2.msra.mxu0 0.0
    %2740 = vmatprep.subr.mxu0 0.0
    %2741 = vmatpush2.msra.mxu0 0.0
    %2742 = vmatprep.subr.mxu0 0.0
    %2743 = vmatpush2.msra.mxu0 0.0
    %2744 = vmatprep.subr.mxu0 0.0
    %2745 = vmatpush2.msra.mxu0 0.0
    %2746 = vmatprep.subr.mxu0 0.0
    %2747 = vmatpush2.msra.mxu0 0.0
    %2748 = vmatprep.subr.mxu0 0.0
    %2749 = vmatpush2.msra.mxu0 0.0
    %2750 = vmatprep.subr.mxu0 0.0
    %2751 = vmatpush2.msra.mxu0 0.0
    %2752 = vmatprep.mubr.f32.mxu0 0.0
    %2753 = vmatmul.mubr.f32.gmra.mxu0 %v2683
    %v2754 = vpop.f32.mrf.mxu0
    %v2755 = vadd.f32 %v2680, %v2754
    %v2756 = vpop.f32.mrf.mxu0
    %2757 = vmatprep.mubr.f32.mxu0 0.0
    %2758 = vmatmul.mubr.f32.gmra.mxu0 %v2686
    %v2759 = vpop.f32.mrf.mxu0
    %v2760 = vadd.f32 %v2680, %v2759
    %v2761 = vpop.f32.mrf.mxu0
    %2762 = vdwg.mxu0
    %v2763 = vmax.f32 %v2755, 0.0
    %v2764 = vmax.f32 %v2760, 0.0
    %2769 = vrot.lane.b32.xlu0 %v2671, 64
    %v2770 = vpop.permute.xlu0 %2769
    %2771 = vrot.lane.b32.xlu0 %v2672, 64
    %v2772 = vpop.permute.xlu0 %2771
    %2773 = vrot.lane.b32.xlu0 %v2673, 64
    %v2774 = vpop.permute.xlu0 %2773
    %2775 = vrot.lane.b32.xlu0 %v2674, 64
    %v2776 = vpop.permute.xlu0 %2775
    %2777 = vrot.lane.b32.xlu0 %v2680, 64
    %v2778 = vpop.permute.xlu0 %2777
    %v2781 = vsel %vm1406, %v2763, 0
    %v2784 = vsel %vm1406, %v2764, 0
    %v2786 = vsel %vm1406, %v2770, 0
    %v2788 = vsel %vm1406, %v2772, 0
    %v2790 = vsel %vm1406, %v2774, 0
    %v2792 = vsel %vm1406, %v2776, 0
    %2794 = vmatprep.subr.mxu0 0.0
    %2795 = vmatpush1.xpose.msra.mxu0 0.0
    %2796 = vmatprep.subr.mxu0 0.0
    %2797 = vmatpush1.xpose.msra.mxu0 0.0
    %2798 = vmatprep.subr.mxu0 0.0
    %2799 = vmatpush1.xpose.msra.mxu0 0.0
    %2800 = vmatprep.subr.mxu0 0.0
    %2801 = vmatpush1.xpose.msra.mxu0 0.0
    %2802 = vmatprep.subr.mxu0 0.0
    %2803 = vmatpush1.xpose.msra.mxu0 0.0
    %2804 = vmatprep.subr.mxu0 0.0
    %2805 = vmatpush1.xpose.msra.mxu0 0.0
    %2806 = vmatprep.subr.mxu0 0.0
    %2807 = vmatpush1.xpose.msra.mxu0 0.0
    %2808 = vmatprep.subr.mxu0 0.0
    %2809 = vmatpush1.xpose.msra.mxu0 0.0
    %2810 = vmatprep.subr.mxu0 0.0
    %2811 = vmatpush1.xpose.msra.mxu0 0.0
    %2812 = vmatprep.subr.mxu0 0.0
    %2813 = vmatpush1.xpose.msra.mxu0 0.0
    %2814 = vmatprep.subr.mxu0 0.0
    %2815 = vmatpush1.xpose.msra.mxu0 0.0
    %2816 = vmatprep.subr.mxu0 0.0
    %2817 = vmatpush1.xpose.msra.mxu0 0.0
    %2818 = vmatprep.subr.mxu0 0.0
    %2819 = vmatpush1.xpose.msra.mxu0 %v2792
    %2820 = vmatprep.subr.mxu0 0.0
    %2821 = vmatpush1.xpose.msra.mxu0 %v2790
    %2822 = vmatprep.subr.mxu0 0.0
    %2823 = vmatpush1.xpose.msra.mxu0 %v2788
    %2824 = vmatprep.subr.mxu0 0.0
    %2825 = vmatpush1.xpose.msra.mxu0 %v2786
    %2826 = vmatprep.subr.mxu0 0.0
    %2827 = vmatpush2.xpose.msra.mxu0 0.0
    %2828 = vmatprep.subr.mxu0 0.0
    %2829 = vmatpush2.xpose.msra.mxu0 0.0
    %2830 = vmatprep.subr.mxu0 0.0
    %2831 = vmatpush2.xpose.msra.mxu0 0.0
    %2832 = vmatprep.subr.mxu0 0.0
    %2833 = vmatpush2.xpose.msra.mxu0 0.0
    %2834 = vmatprep.subr.mxu0 0.0
    %2835 = vmatpush2.xpose.msra.mxu0 0.0
    %2836 = vmatprep.subr.mxu0 0.0
    %2837 = vmatpush2.xpose.msra.mxu0 0.0
    %2838 = vmatprep.subr.mxu0 0.0
    %2839 = vmatpush2.xpose.msra.mxu0 0.0
    %2840 = vmatprep.subr.mxu0 0.0
    %2841 = vmatpush2.xpose.msra.mxu0 0.0
    %2842 = vmatprep.subr.mxu0 0.0
    %2843 = vmatpush2.xpose.msra.mxu0 0.0
    %2844 = vmatprep.subr.mxu0 0.0
    %2845 = vmatpush2.xpose.msra.mxu0 0.0
    %2846 = vmatprep.subr.mxu0 0.0
    %2847 = vmatpush2.xpose.msra.mxu0 0.0
    %2848 = vmatprep.subr.mxu0 0.0
    %2849 = vmatpush2.xpose.msra.mxu0 0.0
    %2850 = vmatprep.subr.mxu0 0.0
    %2851 = vmatpush2.xpose.msra.mxu0 0.0
    %2852 = vmatprep.subr.mxu0 0.0
    %2853 = vmatpush2.xpose.msra.mxu0 0.0
    %2854 = vmatprep.subr.mxu0 0.0
    %2855 = vmatpush2.xpose.msra.mxu0 0.0
    %2856 = vmatprep.subr.mxu0 0.0
    %2857 = vmatpush2.xpose.msra.mxu0 0.0
    %2858 = vmatprep.mubr.f32.mxu0 0.0
    %2859 = vmatmul.mubr.f32.gmra.mxu0 %v2781
    %v2860 = vpop.f32.mrf.mxu0
    %v2861 = vadd.f32 %v2778, %v2860
    %v2862 = vpop.f32.mrf.mxu0
    %2863 = vmatprep.mubr.f32.mxu0 0.0
    %2864 = vmatmul.mubr.f32.gmra.mxu0 %v2784
    %v2865 = vpop.f32.mrf.mxu0
    %v2866 = vadd.f32 %v2778, %v2865
    %v2867 = vpop.f32.mrf.mxu0
    %2868 = vdwg.mxu0
    %v2869 = vadd.f32 %v2669, %v2861
    %v2870 = vadd.f32 %v2670, %v2866
    %v2871 = vld [vmem:[#allocation8 + $0x4] sm:$0x1]
    %v2872 = vsel %vm1075, %v2869, 0.0
    %2873 = vadd.xlane.f32.xlu0 %v2872
    %v2874 = vpop.xlane.xlu0 %2873
    %v2875 = vsel %vm1075, %v2870, 0.0
    %2876 = vadd.xlane.f32.xlu0 %v2875
    %v2877 = vpop.xlane.xlu0 %2876
    %v2878 = vmul.f32 %v2874, %v1771
    %v2879 = vmul.f32 %v2877, %v1771
    %v2880 = vsub.f32 %v2869, %v2878
    %v2881 = vsub.f32 %v2870, %v2879
    %v2882 = vmul.f32 %v2880, %v2880
    %v2883 = vmul.f32 %v2881, %v2881
    %v2884 = vsel %vm1075, %v2882, 0.0
    %2885 = vadd.xlane.f32.xlu0 %v2884
    %v2886 = vpop.xlane.xlu0 %2885
    %v2887 = vsel %vm1075, %v2883, 0.0
    %2888 = vadd.xlane.f32.xlu0 %v2887
    %v2889 = vpop.xlane.xlu0 %2888
    %v2890 = vmul.f32 %v2886, %v1771
    %v2891 = vmul.f32 %v2889, %v1771
    %v2892 = vadd.f32 %v2890, 1e-05
    %v2893 = vadd.f32 %v2891, 1e-05
    %v2894 = vrsqrt.pop %v2892
    %v2895 = vrsqrt.pop %v2893
    %v2896 = vmul.f32 %v2880, %v2894
    %v2897 = vmul.f32 %v2881, %v2895
    %2898 = vrot.lane.b32.xlu0 %v2680, 32
    %v2899 = vpop.permute.xlu0 %2898
    %v2901 = vmul.f32 %v2896, %v2899
    %v2902 = vmul.f32 %v2897, %v2899
    %v2904 = vlaneseq
    %v2905 = vshrl.u32 %v2904, 7
    %v2906 = vsub.s32 0, %v2905
    %v2907 = vrot.slane %v2871, %v2906
    %v2909 = vadd.f32 %v2901, %v2907
    %v2910 = vadd.f32 %v2902, %v2907
    %s2911 = scalar_lea.vmem [#allocation7], 96
    %v2912 = vld [vmem:[%s2911] sm:$0xff]
    %v2913 = vld [vmem:[%s2911 + $0x18] sm:$0xff]
    %v2914 = vld [vmem:[%s2911 + $0x30] sm:$0xff]
    %v2915 = vld [vmem:[%s2911 + $0x48] sm:$0xff]
    %s2916 = scalar_lea.vmem [#allocation8], 5
    %v2917 = vld [vmem:[%s2916] sm:$0x1]
    %v2919 = vlaneseq
    %v2920 = vshrl.u32 %v2919, 7
    %v2921 = vsub.s32 0, %v2920
    %v2922 = vrot.slane %v2917, %v2921
    %v2925 = vsel %vm1075, %v2909, 0
    %v2928 = vsel %vm1075, %v2910, 0
    %2930 = vmatprep.subr.mxu0 0.0
    %2931 = vmatpush1.msra.mxu0 0.0
    %2932 = vmatprep.subr.mxu0 0.0
    %2933 = vmatpush1.msra.mxu0 0.0
    %2934 = vmatprep.subr.mxu0 0.0
    %2935 = vmatpush1.msra.mxu0 0.0
    %2936 = vmatprep.subr.mxu0 0.0
    %2937 = vmatpush1.msra.mxu0 0.0
    %2938 = vmatprep.subr.mxu0 0.0
    %2939 = vmatpush1.msra.mxu0 0.0
    %2940 = vmatprep.subr.mxu0 0.0
    %2941 = vmatpush1.msra.mxu0 0.0
    %2942 = vmatprep.subr.mxu0 0.0
    %2943 = vmatpush1.msra.mxu0 0.0
    %2944 = vmatprep.subr.mxu0 0.0
    %2945 = vmatpush1.msra.mxu0 0.0
    %2946 = vmatprep.subr.mxu0 0.0
    %2947 = vmatpush1.msra.mxu0 0.0
    %2948 = vmatprep.subr.mxu0 0.0
    %2949 = vmatpush1.msra.mxu0 0.0
    %2950 = vmatprep.subr.mxu0 0.0
    %2951 = vmatpush1.msra.mxu0 0.0
    %2952 = vmatprep.subr.mxu0 0.0
    %2953 = vmatpush1.msra.mxu0 0.0
    %2954 = vmatprep.subr.mxu0 0.0
    %2955 = vmatpush1.msra.mxu0 %v2915
    %2956 = vmatprep.subr.mxu0 0.0
    %2957 = vmatpush1.msra.mxu0 %v2914
    %2958 = vmatprep.subr.mxu0 0.0
    %2959 = vmatpush1.msra.mxu0 %v2913
    %2960 = vmatprep.subr.mxu0 0.0
    %2961 = vmatpush1.msra.mxu0 %v2912
    %2962 = vmatprep.subr.mxu0 0.0
    %2963 = vmatpush2.msra.mxu0 0.0
    %2964 = vmatprep.subr.mxu0 0.0
    %2965 = vmatpush2.msra.mxu0 0.0
    %2966 = vmatprep.subr.mxu0 0.0
    %2967 = vmatpush2.msra.mxu0 0.0
    %2968 = vmatprep.subr.mxu0 0.0
    %2969 = vmatpush2.msra.mxu0 0.0
    %2970 = vmatprep.subr.mxu0 0.0
    %2971 = vmatpush2.msra.mxu0 0.0
    %2972 = vmatprep.subr.mxu0 0.0
    %2973 = vmatpush2.msra.mxu0 0.0
    %2974 = vmatprep.subr.mxu0 0.0
    %2975 = vmatpush2.msra.mxu0 0.0
    %2976 = vmatprep.subr.mxu0 0.0
    %2977 = vmatpush2.msra.mxu0 0.0
    %2978 = vmatprep.subr.mxu0 0.0
    %2979 = vmatpush2.msra.mxu0 0.0
    %2980 = vmatprep.subr.mxu0 0.0
    %2981 = vmatpush2.msra.mxu0 0.0
    %2982 = vmatprep.subr.mxu0 0.0
    %2983 = vmatpush2.msra.mxu0 0.0
    %2984 = vmatprep.subr.mxu0 0.0
    %2985 = vmatpush2.msra.mxu0 0.0
    %2986 = vmatprep.subr.mxu0 0.0
    %2987 = vmatpush2.msra.mxu0 0.0
    %2988 = vmatprep.subr.mxu0 0.0
    %2989 = vmatpush2.msra.mxu0 0.0
    %2990 = vmatprep.subr.mxu0 0.0
    %2991 = vmatpush2.msra.mxu0 0.0
    %2992 = vmatprep.subr.mxu0 0.0
    %2993 = vmatpush2.msra.mxu0 0.0
    %2994 = vmatprep.mubr.f32.mxu0 0.0
    %2995 = vmatmul.mubr.f32.gmra.mxu0 %v2925
    %v2996 = vpop.f32.mrf.mxu0
    %v2997 = vadd.f32 %v2922, %v2996
    %v2998 = vpop.f32.mrf.mxu0
    %2999 = vmatprep.mubr.f32.mxu0 0.0
    %3000 = vmatmul.mubr.f32.gmra.mxu0 %v2928
    %v3001 = vpop.f32.mrf.mxu0
    %v3002 = vadd.f32 %v2922, %v3001
    %v3003 = vpop.f32.mrf.mxu0
    %3004 = vdwg.mxu0
    %v3005 = vmul.f32 %v2997, %v281
    %v3006 = vmul.f32 %v3002, %v282
    %v3007 = vmul.f32 %v2997, %v283
    %v3008 = vmul.f32 %v3002, %v284
    %v3009 = vmul.f32 %v2997, %v285
    %v3010 = vmul.f32 %v3002, %v286
    %v3011 = vmul.f32 %v2997, %v287
    %v3012 = vmul.f32 %v3002, %v288
    %v3013 = vmul.f32 %v2997, %v1174
    %v3014 = vmul.f32 %v3002, %v1176
    %v3015 = vmul.f32 %v2997, %v1178
    %v3016 = vmul.f32 %v3002, %v1180
    %v3017 = vmul.f32 %v2997, %v1182
    %v3018 = vmul.f32 %v3002, %v1184
    %v3019 = vmul.f32 %v2997, %v1186
    %v3020 = vmul.f32 %v3002, %v1188
    %v3021 = vmul.f32 %v2997, %v1206
    %v3022 = vmul.f32 %v3002, %v1208
    %v3023 = vmul.f32 %v2997, %v1210
    %v3024 = vmul.f32 %v3002, %v1212
    %v3025 = vmul.f32 %v2997, %v1214
    %v3026 = vmul.f32 %v3002, %v1216
    %v3027 = vmul.f32 %v2997, %v1218
    %v3028 = vmul.f32 %v3002, %v1220
    %3037 = vrot.lane.b32.xlu0 %v3013, 96
    %v3038 = vpop.permute.xlu0 %3037
    %3039 = vrot.lane.b32.xlu0 %v3014, 96
    %v3040 = vpop.permute.xlu0 %3039
    %3041 = vrot.lane.b32.xlu0 %v3015, 96
    %v3042 = vpop.permute.xlu0 %3041
    %3043 = vrot.lane.b32.xlu0 %v3016, 96
    %v3044 = vpop.permute.xlu0 %3043
    %3045 = vrot.lane.b32.xlu0 %v3017, 96
    %v3046 = vpop.permute.xlu0 %3045
    %3047 = vrot.lane.b32.xlu0 %v3018, 96
    %v3048 = vpop.permute.xlu0 %3047
    %3049 = vrot.lane.b32.xlu0 %v3019, 96
    %v3050 = vpop.permute.xlu0 %3049
    %3051 = vrot.lane.b32.xlu0 %v3020, 96
    %v3052 = vpop.permute.xlu0 %3051
    %v3054 = vsel %vm1075, %v3005, 0
    %v3057 = vsel %vm1075, %v3006, 0
    %v3060 = vsel %vm1075, %v3007, 0
    %v3063 = vsel %vm1075, %v3008, 0
    %v3066 = vsel %vm1075, %v3009, 0
    %v3069 = vsel %vm1075, %v3010, 0
    %v3072 = vsel %vm1075, %v3011, 0
    %v3075 = vsel %vm1075, %v3012, 0
    %v3077 = vsel %vm1075, %v3038, 0
    %v3079 = vsel %vm1075, %v3040, 0
    %v3081 = vsel %vm1075, %v3042, 0
    %v3083 = vsel %vm1075, %v3044, 0
    %v3085 = vsel %vm1075, %v3046, 0
    %v3087 = vsel %vm1075, %v3048, 0
    %v3089 = vsel %vm1075, %v3050, 0
    %v3091 = vsel %vm1075, %v3052, 0
    %3093 = vmatprep.subr.mxu0 0.0
    %3094 = vmatpush1.xpose.msra.mxu0 0.0
    %3095 = vmatprep.subr.mxu0 0.0
    %3096 = vmatpush1.xpose.msra.mxu0 0.0
    %3097 = vmatprep.subr.mxu0 0.0
    %3098 = vmatpush1.xpose.msra.mxu0 0.0
    %3099 = vmatprep.subr.mxu0 0.0
    %3100 = vmatpush1.xpose.msra.mxu0 0.0
    %3101 = vmatprep.subr.mxu0 0.0
    %3102 = vmatpush1.xpose.msra.mxu0 0.0
    %3103 = vmatprep.subr.mxu0 0.0
    %3104 = vmatpush1.xpose.msra.mxu0 0.0
    %3105 = vmatprep.subr.mxu0 0.0
    %3106 = vmatpush1.xpose.msra.mxu0 0.0
    %3107 = vmatprep.subr.mxu0 0.0
    %3108 = vmatpush1.xpose.msra.mxu0 0.0
    %3109 = vmatprep.subr.mxu0 0.0
    %3110 = vmatpush1.xpose.msra.mxu0 %v3091
    %3111 = vmatprep.subr.mxu0 0.0
    %3112 = vmatpush1.xpose.msra.mxu0 %v3089
    %3113 = vmatprep.subr.mxu0 0.0
    %3114 = vmatpush1.xpose.msra.mxu0 %v3087
    %3115 = vmatprep.subr.mxu0 0.0
    %3116 = vmatpush1.xpose.msra.mxu0 %v3085
    %3117 = vmatprep.subr.mxu0 0.0
    %3118 = vmatpush1.xpose.msra.mxu0 %v3083
    %3119 = vmatprep.subr.mxu0 0.0
    %3120 = vmatpush1.xpose.msra.mxu0 %v3081
    %3121 = vmatprep.subr.mxu0 0.0
    %3122 = vmatpush1.xpose.msra.mxu0 %v3079
    %3123 = vmatprep.subr.mxu0 0.0
    %3124 = vmatpush1.xpose.msra.mxu0 %v3077
    %3125 = vmatprep.subr.mxu0 0.0
    %3126 = vmatpush2.xpose.msra.mxu0 0.0
    %3127 = vmatprep.subr.mxu0 0.0
    %3128 = vmatpush2.xpose.msra.mxu0 0.0
    %3129 = vmatprep.subr.mxu0 0.0
    %3130 = vmatpush2.xpose.msra.mxu0 0.0
    %3131 = vmatprep.subr.mxu0 0.0
    %3132 = vmatpush2.xpose.msra.mxu0 0.0
    %3133 = vmatprep.subr.mxu0 0.0
    %3134 = vmatpush2.xpose.msra.mxu0 0.0
    %3135 = vmatprep.subr.mxu0 0.0
    %3136 = vmatpush2.xpose.msra.mxu0 0.0
    %3137 = vmatprep.subr.mxu0 0.0
    %3138 = vmatpush2.xpose.msra.mxu0 0.0
    %3139 = vmatprep.subr.mxu0 0.0
    %3140 = vmatpush2.xpose.msra.mxu0 0.0
    %3141 = vmatprep.subr.mxu0 0.0
    %3142 = vmatpush2.xpose.msra.mxu0 0.0
    %3143 = vmatprep.subr.mxu0 0.0
    %3144 = vmatpush2.xpose.msra.mxu0 0.0
    %3145 = vmatprep.subr.mxu0 0.0
    %3146 = vmatpush2.xpose.msra.mxu0 0.0
    %3147 = vmatprep.subr.mxu0 0.0
    %3148 = vmatpush2.xpose.msra.mxu0 0.0
    %3149 = vmatprep.subr.mxu0 0.0
    %3150 = vmatpush2.xpose.msra.mxu0 0.0
    %3151 = vmatprep.subr.mxu0 0.0
    %3152 = vmatpush2.xpose.msra.mxu0 0.0
    %3153 = vmatprep.subr.mxu0 0.0
    %3154 = vmatpush2.xpose.msra.mxu0 0.0
    %3155 = vmatprep.subr.mxu0 0.0
    %3156 = vmatpush2.xpose.msra.mxu0 0.0
    %3157 = vmatprep.mubr.f32.mxu0 0.0
    %3158 = vmatmul.mubr.f32.gmra.mxu0 %v3054
    %v3159 = vpop.f32.mrf.mxu0
    %v3160 = vadd.f32 %v861, %v3159
    %v3161 = vpop.f32.mrf.mxu0
    %3162 = vmatprep.mubr.f32.mxu0 0.0
    %3163 = vmatmul.mubr.f32.gmra.mxu0 %v3057
    %v3164 = vpop.f32.mrf.mxu0
    %v3165 = vadd.f32 %v862, %v3164
    %v3166 = vpop.f32.mrf.mxu0
    %3167 = vmatprep.mubr.f32.mxu0 0.0
    %3168 = vmatmul.mubr.f32.gmra.mxu0 %v3060
    %v3169 = vpop.f32.mrf.mxu0
    %v3170 = vadd.f32 %v863, %v3169
    %v3171 = vpop.f32.mrf.mxu0
    %3172 = vmatprep.mubr.f32.mxu0 0.0
    %3173 = vmatmul.mubr.f32.gmra.mxu0 %v3063
    %v3174 = vpop.f32.mrf.mxu0
    %v3175 = vadd.f32 %v864, %v3174
    %v3176 = vpop.f32.mrf.mxu0
    %3177 = vmatprep.mubr.f32.mxu0 0.0
    %3178 = vmatmul.mubr.f32.gmra.mxu0 %v3066
    %v3179 = vpop.f32.mrf.mxu0
    %v3180 = vadd.f32 %v865, %v3179
    %v3181 = vpop.f32.mrf.mxu0
    %3182 = vmatprep.mubr.f32.mxu0 0.0
    %3183 = vmatmul.mubr.f32.gmra.mxu0 %v3069
    %v3184 = vpop.f32.mrf.mxu0
    %v3185 = vadd.f32 %v866, %v3184
    %v3186 = vpop.f32.mrf.mxu0
    %3187 = vmatprep.mubr.f32.mxu0 0.0
    %3188 = vmatmul.mubr.f32.gmra.mxu0 %v3072
    %v3189 = vpop.f32.mrf.mxu0
    %v3190 = vadd.f32 %v867, %v3189
    %v3191 = vpop.f32.mrf.mxu0
    %3192 = vmatprep.mubr.f32.mxu0 0.0
    %3193 = vmatmul.mubr.f32.gmra.mxu0 %v3075
    %v3194 = vpop.f32.mrf.mxu0
    %v3195 = vadd.f32 %v868, %v3194
    %v3196 = vpop.f32.mrf.mxu0
    %3197 = vdwg.mxu0
    %v3198 = vsel %vm1406, %v3160, -inf
    %3199 = vmax.xlane.f32.xlu0 %v3198
    %v3200 = vpop.xlane.xlu0 %3199
    %v3201 = vsel %vm1406, %v3165, -inf
    %3202 = vmax.xlane.f32.xlu0 %v3201
    %v3203 = vpop.xlane.xlu0 %3202
    %v3204 = vsel %vm1406, %v3170, -inf
    %3205 = vmax.xlane.f32.xlu0 %v3204
    %v3206 = vpop.xlane.xlu0 %3205
    %v3207 = vsel %vm1406, %v3175, -inf
    %3208 = vmax.xlane.f32.xlu0 %v3207
    %v3209 = vpop.xlane.xlu0 %3208
    %v3210 = vsel %vm1406, %v3180, -inf
    %3211 = vmax.xlane.f32.xlu0 %v3210
    %v3212 = vpop.xlane.xlu0 %3211
    %v3213 = vsel %vm1406, %v3185, -inf
    %3214 = vmax.xlane.f32.xlu0 %v3213
    %v3215 = vpop.xlane.xlu0 %3214
    %v3216 = vsel %vm1406, %v3190, -inf
    %3217 = vmax.xlane.f32.xlu0 %v3216
    %v3218 = vpop.xlane.xlu0 %3217
    %v3219 = vsel %vm1406, %v3195, -inf
    %3220 = vmax.xlane.f32.xlu0 %v3219
    %v3221 = vpop.xlane.xlu0 %3220
    %v3222 = vsub.f32 %v3160, %v3200
    %v3223 = vsub.f32 %v3165, %v3203
    %v3224 = vsub.f32 %v3170, %v3206
    %v3225 = vsub.f32 %v3175, %v3209
    %v3226 = vsub.f32 %v3180, %v3212
    %v3227 = vsub.f32 %v3185, %v3215
    %v3228 = vsub.f32 %v3190, %v3218
    %v3229 = vsub.f32 %v3195, %v3221
    %v3230 = vmul.f32 %v3222, 1.442695
    %v3231 = vpow.pop %v3230
    %v3232 = vmul.f32 %v3223, 1.442695
    %v3233 = vpow.pop %v3232
    %v3234 = vmul.f32 %v3224, 1.442695
    %v3235 = vpow.pop %v3234
    %v3236 = vmul.f32 %v3225, 1.442695
    %v3237 = vpow.pop %v3236
    %v3238 = vmul.f32 %v3226, 1.442695
    %v3239 = vpow.pop %v3238
    %v3240 = vmul.f32 %v3227, 1.442695
    %v3241 = vpow.pop %v3240
    %v3242 = vmul.f32 %v3228, 1.442695
    %v3243 = vpow.pop %v3242
    %v3244 = vmul.f32 %v3229, 1.442695
    %v3245 = vpow.pop %v3244
    %v3246 = vsel %vm1406, %v3231, 0.0
    %3247 = vadd.xlane.f32.xlu0 %v3246
    %v3248 = vpop.xlane.xlu0 %3247
    %v3249 = vsel %vm1406, %v3233, 0.0
    %3250 = vadd.xlane.f32.xlu0 %v3249
    %v3251 = vpop.xlane.xlu0 %3250
    %v3252 = vsel %vm1406, %v3235, 0.0
    %3253 = vadd.xlane.f32.xlu0 %v3252
    %v3254 = vpop.xlane.xlu0 %3253
    %v3255 = vsel %vm1406, %v3237, 0.0
    %3256 = vadd.xlane.f32.xlu0 %v3255
    %v3257 = vpop.xlane.xlu0 %3256
    %v3258 = vsel %vm1406, %v3239, 0.0
    %3259 = vadd.xlane.f32.xlu0 %v3258
    %v3260 = vpop.xlane.xlu0 %3259
    %v3261 = vsel %vm1406, %v3241, 0.0
    %3262 = vadd.xlane.f32.xlu0 %v3261
    %v3263 = vpop.xlane.xlu0 %3262
    %v3264 = vsel %vm1406, %v3243, 0.0
    %3265 = vadd.xlane.f32.xlu0 %v3264
    %v3266 = vpop.xlane.xlu0 %3265
    %v3267 = vsel %vm1406, %v3245, 0.0
    %3268 = vadd.xlane.f32.xlu0 %v3267
    %v3269 = vpop.xlane.xlu0 %3268
    %v3270 = vrcp.pop %v3248
    %v3271 = vrcp.pop %v3251
    %v3272 = vrcp.pop %v3254
    %v3273 = vrcp.pop %v3257
    %v3274 = vrcp.pop %v3260
    %v3275 = vrcp.pop %v3263
    %v3276 = vrcp.pop %v3266
    %v3277 = vrcp.pop %v3269
    %v3278 = vmul.f32 %v3231, %v3270
    %v3279 = vmul.f32 %v3233, %v3271
    %v3280 = vmul.f32 %v3235, %v3272
    %v3281 = vmul.f32 %v3237, %v3273
    %v3282 = vmul.f32 %v3239, %v3274
    %v3283 = vmul.f32 %v3241, %v3275
    %v3284 = vmul.f32 %v3243, %v3276
    %v3285 = vmul.f32 %v3245, %v3277
    %3294 = vrot.lane.b32.xlu0 %v3021, 64
    %v3295 = vpop.permute.xlu0 %3294
    %3296 = vrot.lane.b32.xlu0 %v3022, 64
    %v3297 = vpop.permute.xlu0 %3296
    %3298 = vrot.lane.b32.xlu0 %v3023, 64
    %v3299 = vpop.permute.xlu0 %3298
    %3300 = vrot.lane.b32.xlu0 %v3024, 64
    %v3301 = vpop.permute.xlu0 %3300
    %3302 = vrot.lane.b32.xlu0 %v3025, 64
    %v3303 = vpop.permute.xlu0 %3302
    %3304 = vrot.lane.b32.xlu0 %v3026, 64
    %v3305 = vpop.permute.xlu0 %3304
    %3306 = vrot.lane.b32.xlu0 %v3027, 64
    %v3307 = vpop.permute.xlu0 %3306
    %3308 = vrot.lane.b32.xlu0 %v3028, 64
    %v3309 = vpop.permute.xlu0 %3308
    %v3319 = vsel %vm1406, %v3278, 0
    %v3322 = vsel %vm1406, %v3279, 0
    %v3325 = vsel %vm1406, %v3280, 0
    %v3328 = vsel %vm1406, %v3281, 0
    %v3331 = vsel %vm1406, %v3282, 0
    %v3334 = vsel %vm1406, %v3283, 0
    %v3337 = vsel %vm1406, %v3284, 0
    %v3340 = vsel %vm1406, %v3285, 0
    %3342 = vmatprep.subr.mxu0 0.0
    %3343 = vmatpush1.msra.mxu0 0.0
    %3344 = vmatprep.subr.mxu0 0.0
    %3345 = vmatpush1.msra.mxu0 0.0
    %3346 = vmatprep.subr.mxu0 0.0
    %3347 = vmatpush1.msra.mxu0 0.0
    %3348 = vmatprep.subr.mxu0 0.0
    %3349 = vmatpush1.msra.mxu0 0.0
    %3350 = vmatprep.subr.mxu0 0.0
    %3351 = vmatpush1.msra.mxu0 0.0
    %3352 = vmatprep.subr.mxu0 0.0
    %3353 = vmatpush1.msra.mxu0 0.0
    %3354 = vmatprep.subr.mxu0 0.0
    %3355 = vmatpush1.msra.mxu0 0.0
    %3356 = vmatprep.subr.mxu0 0.0
    %3357 = vmatpush1.msra.mxu0 0.0
    %3358 = vmatprep.subr.mxu0 0.0
    %3359 = vmatpush1.msra.mxu0 %v3309
    %3360 = vmatprep.subr.mxu0 0.0
    %3361 = vmatpush1.msra.mxu0 %v3307
    %3362 = vmatprep.subr.mxu0 0.0
    %3363 = vmatpush1.msra.mxu0 %v3305
    %3364 = vmatprep.subr.mxu0 0.0
    %3365 = vmatpush1.msra.mxu0 %v3303
    %3366 = vmatprep.subr.mxu0 0.0
    %3367 = vmatpush1.msra.mxu0 %v3301
    %3368 = vmatprep.subr.mxu0 0.0
    %3369 = vmatpush1.msra.mxu0 %v3299
    %3370 = vmatprep.subr.mxu0 0.0
    %3371 = vmatpush1.msra.mxu0 %v3297
    %3372 = vmatprep.subr.mxu0 0.0
    %3373 = vmatpush1.msra.mxu0 %v3295
    %3374 = vmatprep.subr.mxu0 0.0
    %3375 = vmatpush2.msra.mxu0 0.0
    %3376 = vmatprep.subr.mxu0 0.0
    %3377 = vmatpush2.msra.mxu0 0.0
    %3378 = vmatprep.subr.mxu0 0.0
    %3379 = vmatpush2.msra.mxu0 0.0
    %3380 = vmatprep.subr.mxu0 0.0
    %3381 = vmatpush2.msra.mxu0 0.0
    %3382 = vmatprep.subr.mxu0 0.0
    %3383 = vmatpush2.msra.mxu0 0.0
    %3384 = vmatprep.subr.mxu0 0.0
    %3385 = vmatpush2.msra.mxu0 0.0
    %3386 = vmatprep.subr.mxu0 0.0
    %3387 = vmatpush2.msra.mxu0 0.0
    %3388 = vmatprep.subr.mxu0 0.0
    %3389 = vmatpush2.msra.mxu0 0.0
    %3390 = vmatprep.subr.mxu0 0.0
    %3391 = vmatpush2.msra.mxu0 0.0
    %3392 = vmatprep.subr.mxu0 0.0
    %3393 = vmatpush2.msra.mxu0 0.0
    %3394 = vmatprep.subr.mxu0 0.0
    %3395 = vmatpush2.msra.mxu0 0.0
    %3396 = vmatprep.subr.mxu0 0.0
    %3397 = vmatpush2.msra.mxu0 0.0
    %3398 = vmatprep.subr.mxu0 0.0
    %3399 = vmatpush2.msra.mxu0 0.0
    %3400 = vmatprep.subr.mxu0 0.0
    %3401 = vmatpush2.msra.mxu0 0.0
    %3402 = vmatprep.subr.mxu0 0.0
    %3403 = vmatpush2.msra.mxu0 0.0
    %3404 = vmatprep.subr.mxu0 0.0
    %3405 = vmatpush2.msra.mxu0 0.0
    %3406 = vmatprep.mubr.f32.mxu0 0.0
    %3407 = vmatmul.mubr.f32.gmra.mxu0 %v3319
    %v3408 = vpop.f32.mrf.mxu0
    %v3409 = vadd.f32 0.0, %v3408
    %v3410 = vpop.f32.mrf.mxu0
    %3411 = vmatprep.mubr.f32.mxu0 0.0
    %3412 = vmatmul.mubr.f32.gmra.mxu0 %v3322
    %v3413 = vpop.f32.mrf.mxu0
    %v3414 = vadd.f32 0.0, %v3413
    %v3415 = vpop.f32.mrf.mxu0
    %3416 = vmatprep.mubr.f32.mxu0 0.0
    %3417 = vmatmul.mubr.f32.gmra.mxu0 %v3325
    %v3418 = vpop.f32.mrf.mxu0
    %v3419 = vadd.f32 0.0, %v3418
    %v3420 = vpop.f32.mrf.mxu0
    %3421 = vmatprep.mubr.f32.mxu0 0.0
    %3422 = vmatmul.mubr.f32.gmra.mxu0 %v3328
    %v3423 = vpop.f32.mrf.mxu0
    %v3424 = vadd.f32 0.0, %v3423
    %v3425 = vpop.f32.mrf.mxu0
    %3426 = vmatprep.mubr.f32.mxu0 0.0
    %3427 = vmatmul.mubr.f32.gmra.mxu0 %v3331
    %v3428 = vpop.f32.mrf.mxu0
    %v3429 = vadd.f32 0.0, %v3428
    %v3430 = vpop.f32.mrf.mxu0
    %3431 = vmatprep.mubr.f32.mxu0 0.0
    %3432 = vmatmul.mubr.f32.gmra.mxu0 %v3334
    %v3433 = vpop.f32.mrf.mxu0
    %v3434 = vadd.f32 0.0, %v3433
    %v3435 = vpop.f32.mrf.mxu0
    %3436 = vmatprep.mubr.f32.mxu0 0.0
    %3437 = vmatmul.mubr.f32.gmra.mxu0 %v3337
    %v3438 = vpop.f32.mrf.mxu0
    %v3439 = vadd.f32 0.0, %v3438
    %v3440 = vpop.f32.mrf.mxu0
    %3441 = vmatprep.mubr.f32.mxu0 0.0
    %3442 = vmatmul.mubr.f32.gmra.mxu0 %v3340
    %v3443 = vpop.f32.mrf.mxu0
    %v3444 = vadd.f32 0.0, %v3443
    %v3445 = vpop.f32.mrf.mxu0
    %3446 = vdwg.mxu0
    %v3447 = vadd.f32 %v3409, %v3419
    %v3448 = vadd.f32 %v3414, %v3424
    %v3449 = vadd.f32 %v3447, %v3429
    %v3450 = vadd.f32 %v3448, %v3434
    %v3451 = vadd.f32 %v3449, %v3439
    %v3452 = vadd.f32 %v3450, %v3444
    %3457 = vrot.lane.b32.xlu0 %v2912, 32
    %v3458 = vpop.permute.xlu0 %3457
    %3459 = vrot.lane.b32.xlu0 %v2913, 32
    %v3460 = vpop.permute.xlu0 %3459
    %3461 = vrot.lane.b32.xlu0 %v2914, 32
    %v3462 = vpop.permute.xlu0 %3461
    %3463 = vrot.lane.b32.xlu0 %v2915, 32
    %v3464 = vpop.permute.xlu0 %3463
    %3469 = vrot.lane.b32.xlu0 %v2922, 32
    %v3470 = vpop.permute.xlu0 %3469
    %v3473 = vsel %vm1075, %v3451, 0
    %v3476 = vsel %vm1075, %v3452, 0
    %3478 = vmatprep.subr.mxu0 0.0
    %3479 = vmatpush1.msra.mxu0 0.0
    %3480 = vmatprep.subr.mxu0 0.0
    %3481 = vmatpush1.msra.mxu0 0.0
    %3482 = vmatprep.subr.mxu0 0.0
    %3483 = vmatpush1.msra.mxu0 0.0
    %3484 = vmatprep.subr.mxu0 0.0
    %3485 = vmatpush1.msra.mxu0 0.0
    %3486 = vmatprep.subr.mxu0 0.0
    %3487 = vmatpush1.msra.mxu0 0.0
    %3488 = vmatprep.subr.mxu0 0.0
    %3489 = vmatpush1.msra.mxu0 0.0
    %3490 = vmatprep.subr.mxu0 0.0
    %3491 = vmatpush1.msra.mxu0 0.0
    %3492 = vmatprep.subr.mxu0 0.0
    %3493 = vmatpush1.msra.mxu0 0.0
    %3494 = vmatprep.subr.mxu0 0.0
    %3495 = vmatpush1.msra.mxu0 0.0
    %3496 = vmatprep.subr.mxu0 0.0
    %3497 = vmatpush1.msra.mxu0 0.0
    %3498 = vmatprep.subr.mxu0 0.0
    %3499 = vmatpush1.msra.mxu0 0.0
    %3500 = vmatprep.subr.mxu0 0.0
    %3501 = vmatpush1.msra.mxu0 0.0
    %3502 = vmatprep.subr.mxu0 0.0
    %3503 = vmatpush1.msra.mxu0 %v3464
    %3504 = vmatprep.subr.mxu0 0.0
    %3505 = vmatpush1.msra.mxu0 %v3462
    %3506 = vmatprep.subr.mxu0 0.0
    %3507 = vmatpush1.msra.mxu0 %v3460
    %3508 = vmatprep.subr.mxu0 0.0
    %3509 = vmatpush1.msra.mxu0 %v3458
    %3510 = vmatprep.subr.mxu0 0.0
    %3511 = vmatpush2.msra.mxu0 0.0
    %3512 = vmatprep.subr.mxu0 0.0
    %3513 = vmatpush2.msra.mxu0 0.0
    %3514 = vmatprep.subr.mxu0 0.0
    %3515 = vmatpush2.msra.mxu0 0.0
    %3516 = vmatprep.subr.mxu0 0.0
    %3517 = vmatpush2.msra.mxu0 0.0
    %3518 = vmatprep.subr.mxu0 0.0
    %3519 = vmatpush2.msra.mxu0 0.0
    %3520 = vmatprep.subr.mxu0 0.0
    %3521 = vmatpush2.msra.mxu0 0.0
    %3522 = vmatprep.subr.mxu0 0.0
    %3523 = vmatpush2.msra.mxu0 0.0
    %3524 = vmatprep.subr.mxu0 0.0
    %3525 = vmatpush2.msra.mxu0 0.0
    %3526 = vmatprep.subr.mxu0 0.0
    %3527 = vmatpush2.msra.mxu0 0.0
    %3528 = vmatprep.subr.mxu0 0.0
    %3529 = vmatpush2.msra.mxu0 0.0
    %3530 = vmatprep.subr.mxu0 0.0
    %3531 = vmatpush2.msra.mxu0 0.0
    %3532 = vmatprep.subr.mxu0 0.0
    %3533 = vmatpush2.msra.mxu0 0.0
    %3534 = vmatprep.subr.mxu0 0.0
    %3535 = vmatpush2.msra.mxu0 0.0
    %3536 = vmatprep.subr.mxu0 0.0
    %3537 = vmatpush2.msra.mxu0 0.0
    %3538 = vmatprep.subr.mxu0 0.0
    %3539 = vmatpush2.msra.mxu0 0.0
    %3540 = vmatprep.subr.mxu0 0.0
    %3541 = vmatpush2.msra.mxu0 0.0
    %3542 = vmatprep.mubr.f32.mxu0 0.0
    %3543 = vmatmul.mubr.f32.gmra.mxu0 %v3473
    %v3544 = vpop.f32.mrf.mxu0
    %v3545 = vadd.f32 %v3470, %v3544
    %v3546 = vpop.f32.mrf.mxu0
    %3547 = vmatprep.mubr.f32.mxu0 0.0
    %3548 = vmatmul.mubr.f32.gmra.mxu0 %v3476
    %v3549 = vpop.f32.mrf.mxu0
    %v3550 = vadd.f32 %v3470, %v3549
    %v3551 = vpop.f32.mrf.mxu0
    %3552 = vdwg.mxu0
    %v3553 = vadd.f32 %v2909, %v3545
    %v3554 = vadd.f32 %v2910, %v3550
    %v3555 = vld [vmem:[%s2916 + $0x1] sm:$0x1]
    %v3556 = vsel %vm1075, %v3553, 0.0
    %3557 = vadd.xlane.f32.xlu0 %v3556
    %v3558 = vpop.xlane.xlu0 %3557
    %v3559 = vsel %vm1075, %v3554, 0.0
    %3560 = vadd.xlane.f32.xlu0 %v3559
    %v3561 = vpop.xlane.xlu0 %3560
    %v3562 = vmul.f32 %v3558, %v1771
    %v3563 = vmul.f32 %v3561, %v1771
    %v3564 = vsub.f32 %v3553, %v3562
    %v3565 = vsub.f32 %v3554, %v3563
    %v3566 = vmul.f32 %v3564, %v3564
    %v3567 = vmul.f32 %v3565, %v3565
    %v3568 = vsel %vm1075, %v3566, 0.0
    %3569 = vadd.xlane.f32.xlu0 %v3568
    %v3570 = vpop.xlane.xlu0 %3569
    %v3571 = vsel %vm1075, %v3567, 0.0
    %3572 = vadd.xlane.f32.xlu0 %v3571
    %v3573 = vpop.xlane.xlu0 %3572
    %v3574 = vmul.f32 %v3570, %v1771
    %v3575 = vmul.f32 %v3573, %v1771
    %v3576 = vadd.f32 %v3574, 1e-05
    %v3577 = vadd.f32 %v3575, 1e-05
    %v3578 = vrsqrt.pop %v3576
    %v3579 = vrsqrt.pop %v3577
    %v3580 = vmul.f32 %v3564, %v3578
    %v3581 = vmul.f32 %v3565, %v3579
    %v3583 = vlaneseq
    %v3584 = vshrl.u32 %v3583, 7
    %v3585 = vsub.s32 0, %v3584
    %v3586 = vrot.slane %v3555, %v3585
    %v3588 = vmul.f32 %v3580, %v3586
    %v3589 = vmul.f32 %v3581, %v3586
    %3590 = vrot.lane.b32.xlu0 %v3586, 96
    %v3591 = vpop.permute.xlu0 %3590
    %v3593 = vadd.f32 %v3588, %v3591
    %v3594 = vadd.f32 %v3589, %v3591
    %v3595 = vld [vmem:[%s2911 + $0x8] sm:$0xff]
    %v3596 = vld [vmem:[%s2911 + $0x20] sm:$0xff]
    %v3597 = vld [vmem:[%s2911 + $0x38] sm:$0xff]
    %v3598 = vld [vmem:[%s2911 + $0x50] sm:$0xff]
    %3599 = vrot.lane.b32.xlu0 %v3586, 64
    %v3600 = vpop.permute.xlu0 %3599
    %v3603 = vsel %vm1075, %v3593, 0
    %v3606 = vsel %vm1075, %v3594, 0
    %3608 = vmatprep.subr.mxu0 0.0
    %3609 = vmatpush1.msra.mxu0 0.0
    %3610 = vmatprep.subr.mxu0 0.0
    %3611 = vmatpush1.msra.mxu0 0.0
    %3612 = vmatprep.subr.mxu0 0.0
    %3613 = vmatpush1.msra.mxu0 0.0
    %3614 = vmatprep.subr.mxu0 0.0
    %3615 = vmatpush1.msra.mxu0 0.0
    %3616 = vmatprep.subr.mxu0 0.0
    %3617 = vmatpush1.msra.mxu0 0.0
    %3618 = vmatprep.subr.mxu0 0.0
    %3619 = vmatpush1.msra.mxu0 0.0
    %3620 = vmatprep.subr.mxu0 0.0
    %3621 = vmatpush1.msra.mxu0 0.0
    %3622 = vmatprep.subr.mxu0 0.0
    %3623 = vmatpush1.msra.mxu0 0.0
    %3624 = vmatprep.subr.mxu0 0.0
    %3625 = vmatpush1.msra.mxu0 0.0
    %3626 = vmatprep.subr.mxu0 0.0
    %3627 = vmatpush1.msra.mxu0 0.0
    %3628 = vmatprep.subr.mxu0 0.0
    %3629 = vmatpush1.msra.mxu0 0.0
    %3630 = vmatprep.subr.mxu0 0.0
    %3631 = vmatpush1.msra.mxu0 0.0
    %3632 = vmatprep.subr.mxu0 0.0
    %3633 = vmatpush1.msra.mxu0 %v3598
    %3634 = vmatprep.subr.mxu0 0.0
    %3635 = vmatpush1.msra.mxu0 %v3597
    %3636 = vmatprep.subr.mxu0 0.0
    %3637 = vmatpush1.msra.mxu0 %v3596
    %3638 = vmatprep.subr.mxu0 0.0
    %3639 = vmatpush1.msra.mxu0 %v3595
    %3640 = vmatprep.subr.mxu0 0.0
    %3641 = vmatpush2.msra.mxu0 0.0
    %3642 = vmatprep.subr.mxu0 0.0
    %3643 = vmatpush2.msra.mxu0 0.0
    %3644 = vmatprep.subr.mxu0 0.0
    %3645 = vmatpush2.msra.mxu0 0.0
    %3646 = vmatprep.subr.mxu0 0.0
    %3647 = vmatpush2.msra.mxu0 0.0
    %3648 = vmatprep.subr.mxu0 0.0
    %3649 = vmatpush2.msra.mxu0 0.0
    %3650 = vmatprep.subr.mxu0 0.0
    %3651 = vmatpush2.msra.mxu0 0.0
    %3652 = vmatprep.subr.mxu0 0.0
    %3653 = vmatpush2.msra.mxu0 0.0
    %3654 = vmatprep.subr.mxu0 0.0
    %3655 = vmatpush2.msra.mxu0 0.0
    %3656 = vmatprep.subr.mxu0 0.0
    %3657 = vmatpush2.msra.mxu0 0.0
    %3658 = vmatprep.subr.mxu0 0.0
    %3659 = vmatpush2.msra.mxu0 0.0
    %3660 = vmatprep.subr.mxu0 0.0
    %3661 = vmatpush2.msra.mxu0 0.0
    %3662 = vmatprep.subr.mxu0 0.0
    %3663 = vmatpush2.msra.mxu0 0.0
    %3664 = vmatprep.subr.mxu0 0.0
    %3665 = vmatpush2.msra.mxu0 0.0
    %3666 = vmatprep.subr.mxu0 0.0
    %3667 = vmatpush2.msra.mxu0 0.0
    %3668 = vmatprep.subr.mxu0 0.0
    %3669 = vmatpush2.msra.mxu0 0.0
    %3670 = vmatprep.subr.mxu0 0.0
    %3671 = vmatpush2.msra.mxu0 0.0
    %3672 = vmatprep.mubr.f32.mxu0 0.0
    %3673 = vmatmul.mubr.f32.gmra.mxu0 %v3603
    %v3674 = vpop.f32.mrf.mxu0
    %v3675 = vadd.f32 %v3600, %v3674
    %v3676 = vpop.f32.mrf.mxu0
    %3677 = vmatprep.mubr.f32.mxu0 0.0
    %3678 = vmatmul.mubr.f32.gmra.mxu0 %v3606
    %v3679 = vpop.f32.mrf.mxu0
    %v3680 = vadd.f32 %v3600, %v3679
    %v3681 = vpop.f32.mrf.mxu0
    %3682 = vdwg.mxu0
    %v3683 = vld [vmem:[%s2916 + $0x1] sm:$0x3]
    %v3685 = vlaneseq
    %v3686 = vshrl.u32 %v3685, 7
    %v3687 = vsub.s32 0, %v3686
    %v3688 = vrot.slane %v3683, %v3687
    %v3689 = vlaneseq
    %v3690 = vshrl.u32 %v3689, 7
    %v3691 = vsub.s32 1, %v3690
    %v3692 = vrot.slane %v3683, %v3691
    %3697 = vrot.lane.b32.xlu0 %v3595, 96
    %v3698 = vpop.permute.xlu0 %3697
    %3699 = vrot.lane.b32.xlu0 %v3596, 96
    %v3700 = vpop.permute.xlu0 %3699
    %3701 = vrot.lane.b32.xlu0 %v3597, 96
    %v3702 = vpop.permute.xlu0 %3701
    %3703 = vrot.lane.b32.xlu0 %v3598, 96
    %v3704 = vpop.permute.xlu0 %3703
    %3709 = vrot.lane.b32.xlu0 %v3688, 32
    %v3710 = vpop.permute.xlu0 %3709
    %3711 = vrot.lane.b32.xlu0 %v3692, 32
    %v3712 = vpop.permute.xlu0 %3711
    %v3713 = vsel %vm1075, %v3710, %v3712
    %3715 = vmatprep.subr.mxu0 0.0
    %3716 = vmatpush1.msra.mxu0 0.0
    %3717 = vmatprep.subr.mxu0 0.0
    %3718 = vmatpush1.msra.mxu0 0.0
    %3719 = vmatprep.subr.mxu0 0.0
    %3720 = vmatpush1.msra.mxu0 0.0
    %3721 = vmatprep.subr.mxu0 0.0
    %3722 = vmatpush1.msra.mxu0 0.0
    %3723 = vmatprep.subr.mxu0 0.0
    %3724 = vmatpush1.msra.mxu0 0.0
    %3725 = vmatprep.subr.mxu0 0.0
    %3726 = vmatpush1.msra.mxu0 0.0
    %3727 = vmatprep.subr.mxu0 0.0
    %3728 = vmatpush1.msra.mxu0 0.0
    %3729 = vmatprep.subr.mxu0 0.0
    %3730 = vmatpush1.msra.mxu0 0.0
    %3731 = vmatprep.subr.mxu0 0.0
    %3732 = vmatpush1.msra.mxu0 0.0
    %3733 = vmatprep.subr.mxu0 0.0
    %3734 = vmatpush1.msra.mxu0 0.0
    %3735 = vmatprep.subr.mxu0 0.0
    %3736 = vmatpush1.msra.mxu0 0.0
    %3737 = vmatprep.subr.mxu0 0.0
    %3738 = vmatpush1.msra.mxu0 0.0
    %3739 = vmatprep.subr.mxu0 0.0
    %3740 = vmatpush1.msra.mxu0 %v3704
    %3741 = vmatprep.subr.mxu0 0.0
    %3742 = vmatpush1.msra.mxu0 %v3702
    %3743 = vmatprep.subr.mxu0 0.0
    %3744 = vmatpush1.msra.mxu0 %v3700
    %3745 = vmatprep.subr.mxu0 0.0
    %3746 = vmatpush1.msra.mxu0 %v3698
    %3747 = vmatprep.subr.mxu0 0.0
    %3748 = vmatpush2.msra.mxu0 0.0
    %3749 = vmatprep.subr.mxu0 0.0
    %3750 = vmatpush2.msra.mxu0 0.0
    %3751 = vmatprep.subr.mxu0 0.0
    %3752 = vmatpush2.msra.mxu0 0.0
    %3753 = vmatprep.subr.mxu0 0.0
    %3754 = vmatpush2.msra.mxu0 0.0
    %3755 = vmatprep.subr.mxu0 0.0
    %3756 = vmatpush2.msra.mxu0 0.0
    %3757 = vmatprep.subr.mxu0 0.0
    %3758 = vmatpush2.msra.mxu0 0.0
    %3759 = vmatprep.subr.mxu0 0.0
    %3760 = vmatpush2.msra.mxu0 0.0
    %3761 = vmatprep.subr.mxu0 0.0
    %3762 = vmatpush2.msra.mxu0 0.0
    %3763 = vmatprep.subr.mxu0 0.0
    %3764 = vmatpush2.msra.mxu0 0.0
    %3765 = vmatprep.subr.mxu0 0.0
    %3766 = vmatpush2.msra.mxu0 0.0
    %3767 = vmatprep.subr.mxu0 0.0
    %3768 = vmatpush2.msra.mxu0 0.0
    %3769 = vmatprep.subr.mxu0 0.0
    %3770 = vmatpush2.msra.mxu0 0.0
    %3771 = vmatprep.subr.mxu0 0.0
    %3772 = vmatpush2.msra.mxu0 0.0
    %3773 = vmatprep.subr.mxu0 0.0
    %3774 = vmatpush2.msra.mxu0 0.0
    %3775 = vmatprep.subr.mxu0 0.0
    %3776 = vmatpush2.msra.mxu0 0.0
    %3777 = vmatprep.subr.mxu0 0.0
    %3778 = vmatpush2.msra.mxu0 0.0
    %3779 = vmatprep.mubr.f32.mxu0 0.0
    %3780 = vmatmul.mubr.f32.gmra.mxu0 %v1926
    %v3781 = vpop.f32.mrf.mxu0
    %v3782 = vadd.f32 %v3713, %v3781
    %v3783 = vpop.f32.mrf.mxu0
    %3784 = vmatprep.mubr.f32.mxu0 0.0
    %3785 = vmatmul.mubr.f32.gmra.mxu0 %v1929
    %v3786 = vpop.f32.mrf.mxu0
    %v3787 = vadd.f32 %v3713, %v3786
    %v3788 = vpop.f32.mrf.mxu0
    %3789 = vmatprep.mubr.f32.mxu0 0.0
    %3790 = vmatmul.mubr.f32.gmra.mxu0 %v1932
    %v3791 = vpop.f32.mrf.mxu0
    %v3792 = vadd.f32 %v3713, %v3791
    %v3793 = vpop.f32.mrf.mxu0
    %3794 = vdwg.mxu0
    %v3795 = vld [vmem:[%s2916 + $0x2] sm:$0x1]
    %v3796 = vmul.f32 %v3675, %v281
    %v3797 = vmul.f32 %v3680, %v282
    %v3798 = vmul.f32 %v3675, %v283
    %v3799 = vmul.f32 %v3680, %v284
    %v3800 = vmul.f32 %v3675, %v285
    %v3801 = vmul.f32 %v3680, %v286
    %v3802 = vmul.f32 %v3675, %v287
    %v3803 = vmul.f32 %v3680, %v288
    %v3804 = vmul.f32 %v3782, %v545
    %v3805 = vmul.f32 %v3787, %v546
    %v3806 = vmul.f32 %v3792, %v547
    %v3807 = vmul.f32 %v3782, %v548
    %v3808 = vmul.f32 %v3787, %v549
    %v3809 = vmul.f32 %v3792, %v550
    %v3810 = vmul.f32 %v3782, %v551
    %v3811 = vmul.f32 %v3787, %v552
    %v3812 = vmul.f32 %v3792, %v553
    %v3813 = vmul.f32 %v3782, %v554
    %v3814 = vmul.f32 %v3787, %v555
    %v3815 = vmul.f32 %v3792, %v556
    %v3816 = vmul.f32 %v3782, %v2048
    %v3817 = vmul.f32 %v3787, %v2050
    %v3818 = vmul.f32 %v3792, %v2052
    %v3819 = vmul.f32 %v3782, %v2054
    %v3820 = vmul.f32 %v3787, %v2056
    %v3821 = vmul.f32 %v3792, %v2058
    %v3822 = vmul.f32 %v3782, %v2060
    %v3823 = vmul.f32 %v3787, %v2062
    %v3824 = vmul.f32 %v3792, %v2064
    %v3825 = vmul.f32 %v3782, %v2066
    %v3826 = vmul.f32 %v3787, %v2068
    %v3827 = vmul.f32 %v3792, %v2070
    %v3829 = vsel %vm1075, %v3796, 0
    %v3832 = vsel %vm1075, %v3797, 0
    %v3835 = vsel %vm1075, %v3798, 0
    %v3838 = vsel %vm1075, %v3799, 0
    %v3841 = vsel %vm1075, %v3800, 0
    %v3844 = vsel %vm1075, %v3801, 0
    %v3847 = vsel %vm1075, %v3802, 0
    %v3850 = vsel %vm1075, %v3803, 0
    %v3853 = vsel %vm1075, %v3804, 0
    %v3856 = vsel %vm1075, %v3805, 0
    %v3859 = vsel %vm1075, %v3806, 0
    %v3862 = vsel %vm1075, %v3807, 0
    %v3865 = vsel %vm1075, %v3808, 0
    %v3868 = vsel %vm1075, %v3809, 0
    %v3871 = vsel %vm1075, %v3810, 0
    %v3874 = vsel %vm1075, %v3811, 0
    %v3877 = vsel %vm1075, %v3812, 0
    %v3880 = vsel %vm1075, %v3813, 0
    %v3883 = vsel %vm1075, %v3814, 0
    %v3886 = vsel %vm1075, %v3815, 0
    %3888 = vmatprep.subr.mxu0 0.0
    %3889 = vmatpush1.xpose.msra.mxu0 0.0
    %3890 = vmatprep.subr.mxu0 0.0
    %3891 = vmatpush1.xpose.msra.mxu0 0.0
    %3892 = vmatprep.subr.mxu0 0.0
    %3893 = vmatpush1.xpose.msra.mxu0 0.0
    %3894 = vmatprep.subr.mxu0 0.0
    %3895 = vmatpush1.xpose.msra.mxu0 0.0
    %3896 = vmatprep.subr.mxu0 0.0
    %3897 = vmatpush1.xpose.msra.mxu0 %v3886
    %3898 = vmatprep.subr.mxu0 0.0
    %3899 = vmatpush1.xpose.msra.mxu0 %v3883
    %3900 = vmatprep.subr.mxu0 0.0
    %3901 = vmatpush1.xpose.msra.mxu0 %v3880
    %3902 = vmatprep.subr.mxu0 0.0
    %3903 = vmatpush1.xpose.msra.mxu0 %v3877
    %3904 = vmatprep.subr.mxu0 0.0
    %3905 = vmatpush1.xpose.msra.mxu0 %v3874
    %3906 = vmatprep.subr.mxu0 0.0
    %3907 = vmatpush1.xpose.msra.mxu0 %v3871
    %3908 = vmatprep.subr.mxu0 0.0
    %3909 = vmatpush1.xpose.msra.mxu0 %v3868
    %3910 = vmatprep.subr.mxu0 0.0
    %3911 = vmatpush1.xpose.msra.mxu0 %v3865
    %3912 = vmatprep.subr.mxu0 0.0
    %3913 = vmatpush1.xpose.msra.mxu0 %v3862
    %3914 = vmatprep.subr.mxu0 0.0
    %3915 = vmatpush1.xpose.msra.mxu0 %v3859
    %3916 = vmatprep.subr.mxu0 0.0
    %3917 = vmatpush1.xpose.msra.mxu0 %v3856
    %3918 = vmatprep.subr.mxu0 0.0
    %3919 = vmatpush1.xpose.msra.mxu0 %v3853
    %3920 = vmatprep.subr.mxu0 0.0
    %3921 = vmatpush2.xpose.msra.mxu0 0.0
    %3922 = vmatprep.subr.mxu0 0.0
    %3923 = vmatpush2.xpose.msra.mxu0 0.0
    %3924 = vmatprep.subr.mxu0 0.0
    %3925 = vmatpush2.xpose.msra.mxu0 0.0
    %3926 = vmatprep.subr.mxu0 0.0
    %3927 = vmatpush2.xpose.msra.mxu0 0.0
    %3928 = vmatprep.subr.mxu0 0.0
    %3929 = vmatpush2.xpose.msra.mxu0 0.0
    %3930 = vmatprep.subr.mxu0 0.0
    %3931 = vmatpush2.xpose.msra.mxu0 0.0
    %3932 = vmatprep.subr.mxu0 0.0
    %3933 = vmatpush2.xpose.msra.mxu0 0.0
    %3934 = vmatprep.subr.mxu0 0.0
    %3935 = vmatpush2.xpose.msra.mxu0 0.0
    %3936 = vmatprep.subr.mxu0 0.0
    %3937 = vmatpush2.xpose.msra.mxu0 0.0
    %3938 = vmatprep.subr.mxu0 0.0
    %3939 = vmatpush2.xpose.msra.mxu0 0.0
    %3940 = vmatprep.subr.mxu0 0.0
    %3941 = vmatpush2.xpose.msra.mxu0 0.0
    %3942 = vmatprep.subr.mxu0 0.0
    %3943 = vmatpush2.xpose.msra.mxu0 0.0
    %3944 = vmatprep.subr.mxu0 0.0
    %3945 = vmatpush2.xpose.msra.mxu0 0.0
    %3946 = vmatprep.subr.mxu0 0.0
    %3947 = vmatpush2.xpose.msra.mxu0 0.0
    %3948 = vmatprep.subr.mxu0 0.0
    %3949 = vmatpush2.xpose.msra.mxu0 0.0
    %3950 = vmatprep.subr.mxu0 0.0
    %3951 = vmatpush2.xpose.msra.mxu0 0.0
    %3952 = vmatprep.mubr.f32.mxu0 0.0
    %3953 = vmatmul.mubr.f32.gmra.mxu0 %v3829
    %v3954 = vpop.f32.mrf.mxu0
    %v3955 = vadd.f32 %v1056, %v3954
    %v3956 = vpop.f32.mrf.mxu0
    %3957 = vmatprep.mubr.f32.mxu0 0.0
    %3958 = vmatmul.mubr.f32.gmra.mxu0 %v3832
    %v3959 = vpop.f32.mrf.mxu0
    %v3960 = vadd.f32 %v1057, %v3959
    %v3961 = vpop.f32.mrf.mxu0
    %3962 = vmatprep.mubr.f32.mxu0 0.0
    %3963 = vmatmul.mubr.f32.gmra.mxu0 %v3835
    %v3964 = vpop.f32.mrf.mxu0
    %v3965 = vadd.f32 %v1058, %v3964
    %v3966 = vpop.f32.mrf.mxu0
    %3967 = vmatprep.mubr.f32.mxu0 0.0
    %3968 = vmatmul.mubr.f32.gmra.mxu0 %v3838
    %v3969 = vpop.f32.mrf.mxu0
    %v3970 = vadd.f32 %v1059, %v3969
    %v3971 = vpop.f32.mrf.mxu0
    %3972 = vmatprep.mubr.f32.mxu0 0.0
    %3973 = vmatmul.mubr.f32.gmra.mxu0 %v3841
    %v3974 = vpop.f32.mrf.mxu0
    %v3975 = vadd.f32 %v1060, %v3974
    %v3976 = vpop.f32.mrf.mxu0
    %3977 = vmatprep.mubr.f32.mxu0 0.0
    %3978 = vmatmul.mubr.f32.gmra.mxu0 %v3844
    %v3979 = vpop.f32.mrf.mxu0
    %v3980 = vadd.f32 %v1061, %v3979
    %v3981 = vpop.f32.mrf.mxu0
    %3982 = vmatprep.mubr.f32.mxu0 0.0
    %3983 = vmatmul.mubr.f32.gmra.mxu0 %v3847
    %v3984 = vpop.f32.mrf.mxu0
    %v3985 = vadd.f32 %v1062, %v3984
    %v3986 = vpop.f32.mrf.mxu0
    %3987 = vmatprep.mubr.f32.mxu0 0.0
    %3988 = vmatmul.mubr.f32.gmra.mxu0 %v3850
    %v3989 = vpop.f32.mrf.mxu0
    %v3990 = vadd.f32 %v1063, %v3989
    %v3991 = vpop.f32.mrf.mxu0
    %3992 = vdwg.mxu0
    %v3993 = vsel %vm2260, %v3955, -inf
    %3994 = vmax.xlane.f32.xlu0 %v3993
    %v3995 = vpop.xlane.xlu0 %3994
    %v3996 = vsel %vm2260, %v3960, -inf
    %3997 = vmax.xlane.f32.xlu0 %v3996
    %v3998 = vpop.xlane.xlu0 %3997
    %v3999 = vsel %vm2260, %v3965, -inf
    %4000 = vmax.xlane.f32.xlu0 %v3999
    %v4001 = vpop.xlane.xlu0 %4000
    %v4002 = vsel %vm2260, %v3970, -inf
    %4003 = vmax.xlane.f32.xlu0 %v4002
    %v4004 = vpop.xlane.xlu0 %4003
    %v4005 = vsel %vm2260, %v3975, -inf
    %4006 = vmax.xlane.f32.xlu0 %v4005
    %v4007 = vpop.xlane.xlu0 %4006
    %v4008 = vsel %vm2260, %v3980, -inf
    %4009 = vmax.xlane.f32.xlu0 %v4008
    %v4010 = vpop.xlane.xlu0 %4009
    %v4011 = vsel %vm2260, %v3985, -inf
    %4012 = vmax.xlane.f32.xlu0 %v4011
    %v4013 = vpop.xlane.xlu0 %4012
    %v4014 = vsel %vm2260, %v3990, -inf
    %4015 = vmax.xlane.f32.xlu0 %v4014
    %v4016 = vpop.xlane.xlu0 %4015
    %v4017 = vsub.f32 %v3955, %v3995
    %v4018 = vsub.f32 %v3960, %v3998
    %v4019 = vsub.f32 %v3965, %v4001
    %v4020 = vsub.f32 %v3970, %v4004
    %v4021 = vsub.f32 %v3975, %v4007
    %v4022 = vsub.f32 %v3980, %v4010
    %v4023 = vsub.f32 %v3985, %v4013
    %v4024 = vsub.f32 %v3990, %v4016
    %v4025 = vmul.f32 %v4017, 1.442695
    %v4026 = vpow.pop %v4025
    %v4027 = vmul.f32 %v4018, 1.442695
    %v4028 = vpow.pop %v4027
    %v4029 = vmul.f32 %v4019, 1.442695
    %v4030 = vpow.pop %v4029
    %v4031 = vmul.f32 %v4020, 1.442695
    %v4032 = vpow.pop %v4031
    %v4033 = vmul.f32 %v4021, 1.442695
    %v4034 = vpow.pop %v4033
    %v4035 = vmul.f32 %v4022, 1.442695
    %v4036 = vpow.pop %v4035
    %v4037 = vmul.f32 %v4023, 1.442695
    %v4038 = vpow.pop %v4037
    %v4039 = vmul.f32 %v4024, 1.442695
    %v4040 = vpow.pop %v4039
    %v4041 = vsel %vm2260, %v4026, 0.0
    %4042 = vadd.xlane.f32.xlu0 %v4041
    %v4043 = vpop.xlane.xlu0 %4042
    %v4044 = vsel %vm2260, %v4028, 0.0
    %4045 = vadd.xlane.f32.xlu0 %v4044
    %v4046 = vpop.xlane.xlu0 %4045
    %v4047 = vsel %vm2260, %v4030, 0.0
    %4048 = vadd.xlane.f32.xlu0 %v4047
    %v4049 = vpop.xlane.xlu0 %4048
    %v4050 = vsel %vm2260, %v4032, 0.0
    %4051 = vadd.xlane.f32.xlu0 %v4050
    %v4052 = vpop.xlane.xlu0 %4051
    %v4053 = vsel %vm2260, %v4034, 0.0
    %4054 = vadd.xlane.f32.xlu0 %v4053
    %v4055 = vpop.xlane.xlu0 %4054
    %v4056 = vsel %vm2260, %v4036, 0.0
    %4057 = vadd.xlane.f32.xlu0 %v4056
    %v4058 = vpop.xlane.xlu0 %4057
    %v4059 = vsel %vm2260, %v4038, 0.0
    %4060 = vadd.xlane.f32.xlu0 %v4059
    %v4061 = vpop.xlane.xlu0 %4060
    %v4062 = vsel %vm2260, %v4040, 0.0
    %4063 = vadd.xlane.f32.xlu0 %v4062
    %v4064 = vpop.xlane.xlu0 %4063
    %v4065 = vrcp.pop %v4043
    %v4066 = vrcp.pop %v4046
    %v4067 = vrcp.pop %v4049
    %v4068 = vrcp.pop %v4052
    %v4069 = vrcp.pop %v4055
    %v4070 = vrcp.pop %v4058
    %v4071 = vrcp.pop %v4061
    %v4072 = vrcp.pop %v4064
    %v4073 = vmul.f32 %v4026, %v4065
    %v4074 = vmul.f32 %v4028, %v4066
    %v4075 = vmul.f32 %v4030, %v4067
    %v4076 = vmul.f32 %v4032, %v4068
    %v4077 = vmul.f32 %v4034, %v4069
    %v4078 = vmul.f32 %v4036, %v4070
    %v4079 = vmul.f32 %v4038, %v4071
    %v4080 = vmul.f32 %v4040, %v4072
    %4093 = vrot.lane.b32.xlu0 %v3816, 96
    %v4094 = vpop.permute.xlu0 %4093
    %4095 = vrot.lane.b32.xlu0 %v3817, 96
    %v4096 = vpop.permute.xlu0 %4095
    %4097 = vrot.lane.b32.xlu0 %v3818, 96
    %v4098 = vpop.permute.xlu0 %4097
    %4099 = vrot.lane.b32.xlu0 %v3819, 96
    %v4100 = vpop.permute.xlu0 %4099
    %4101 = vrot.lane.b32.xlu0 %v3820, 96
    %v4102 = vpop.permute.xlu0 %4101
    %4103 = vrot.lane.b32.xlu0 %v3821, 96
    %v4104 = vpop.permute.xlu0 %4103
    %4105 = vrot.lane.b32.xlu0 %v3822, 96
    %v4106 = vpop.permute.xlu0 %4105
    %4107 = vrot.lane.b32.xlu0 %v3823, 96
    %v4108 = vpop.permute.xlu0 %4107
    %4109 = vrot.lane.b32.xlu0 %v3824, 96
    %v4110 = vpop.permute.xlu0 %4109
    %4111 = vrot.lane.b32.xlu0 %v3825, 96
    %v4112 = vpop.permute.xlu0 %4111
    %4113 = vrot.lane.b32.xlu0 %v3826, 96
    %v4114 = vpop.permute.xlu0 %4113
    %4115 = vrot.lane.b32.xlu0 %v3827, 96
    %v4116 = vpop.permute.xlu0 %4115
    %v4130 = vsel %vm2260, %v4073, 0
    %v4133 = vsel %vm2260, %v4074, 0
    %v4136 = vsel %vm2260, %v4075, 0
    %v4139 = vsel %vm2260, %v4076, 0
    %v4142 = vsel %vm2260, %v4077, 0
    %v4145 = vsel %vm2260, %v4078, 0
    %v4148 = vsel %vm2260, %v4079, 0
    %v4151 = vsel %vm2260, %v4080, 0
    %4153 = vmatprep.subr.mxu0 0.0
    %4154 = vmatpush1.msra.mxu0 0.0
    %4155 = vmatprep.subr.mxu0 0.0
    %4156 = vmatpush1.msra.mxu0 0.0
    %4157 = vmatprep.subr.mxu0 0.0
    %4158 = vmatpush1.msra.mxu0 0.0
    %4159 = vmatprep.subr.mxu0 0.0
    %4160 = vmatpush1.msra.mxu0 0.0
    %4161 = vmatprep.subr.mxu0 0.0
    %4162 = vmatpush1.msra.mxu0 %v4116
    %4163 = vmatprep.subr.mxu0 0.0
    %4164 = vmatpush1.msra.mxu0 %v4114
    %4165 = vmatprep.subr.mxu0 0.0
    %4166 = vmatpush1.msra.mxu0 %v4112
    %4167 = vmatprep.subr.mxu0 0.0
    %4168 = vmatpush1.msra.mxu0 %v4110
    %4169 = vmatprep.subr.mxu0 0.0
    %4170 = vmatpush1.msra.mxu0 %v4108
    %4171 = vmatprep.subr.mxu0 0.0
    %4172 = vmatpush1.msra.mxu0 %v4106
    %4173 = vmatprep.subr.mxu0 0.0
    %4174 = vmatpush1.msra.mxu0 %v4104
    %4175 = vmatprep.subr.mxu0 0.0
    %4176 = vmatpush1.msra.mxu0 %v4102
    %4177 = vmatprep.subr.mxu0 0.0
    %4178 = vmatpush1.msra.mxu0 %v4100
    %4179 = vmatprep.subr.mxu0 0.0
    %4180 = vmatpush1.msra.mxu0 %v4098
    %4181 = vmatprep.subr.mxu0 0.0
    %4182 = vmatpush1.msra.mxu0 %v4096
    %4183 = vmatprep.subr.mxu0 0.0
    %4184 = vmatpush1.msra.mxu0 %v4094
    %4185 = vmatprep.subr.mxu0 0.0
    %4186 = vmatpush2.msra.mxu0 0.0
    %4187 = vmatprep.subr.mxu0 0.0
    %4188 = vmatpush2.msra.mxu0 0.0
    %4189 = vmatprep.subr.mxu0 0.0
    %4190 = vmatpush2.msra.mxu0 0.0
    %4191 = vmatprep.subr.mxu0 0.0
    %4192 = vmatpush2.msra.mxu0 0.0
    %4193 = vmatprep.subr.mxu0 0.0
    %4194 = vmatpush2.msra.mxu0 0.0
    %4195 = vmatprep.subr.mxu0 0.0
    %4196 = vmatpush2.msra.mxu0 0.0
    %4197 = vmatprep.subr.mxu0 0.0
    %4198 = vmatpush2.msra.mxu0 0.0
    %4199 = vmatprep.subr.mxu0 0.0
    %4200 = vmatpush2.msra.mxu0 0.0
    %4201 = vmatprep.subr.mxu0 0.0
    %4202 = vmatpush2.msra.mxu0 0.0
    %4203 = vmatprep.subr.mxu0 0.0
    %4204 = vmatpush2.msra.mxu0 0.0
    %4205 = vmatprep.subr.mxu0 0.0
    %4206 = vmatpush2.msra.mxu0 0.0
    %4207 = vmatprep.subr.mxu0 0.0
    %4208 = vmatpush2.msra.mxu0 0.0
    %4209 = vmatprep.subr.mxu0 0.0
    %4210 = vmatpush2.msra.mxu0 0.0
    %4211 = vmatprep.subr.mxu0 0.0
    %4212 = vmatpush2.msra.mxu0 0.0
    %4213 = vmatprep.subr.mxu0 0.0
    %4214 = vmatpush2.msra.mxu0 0.0
    %4215 = vmatprep.subr.mxu0 0.0
    %4216 = vmatpush2.msra.mxu0 0.0
    %4217 = vmatprep.mubr.f32.mxu0 0.0
    %4218 = vmatmul.mubr.f32.gmra.mxu0 %v4130
    %v4219 = vpop.f32.mrf.mxu0
    %v4220 = vadd.f32 0.0, %v4219
    %v4221 = vpop.f32.mrf.mxu0
    %4222 = vmatprep.mubr.f32.mxu0 0.0
    %4223 = vmatmul.mubr.f32.gmra.mxu0 %v4133
    %v4224 = vpop.f32.mrf.mxu0
    %v4225 = vadd.f32 0.0, %v4224
    %v4226 = vpop.f32.mrf.mxu0
    %4227 = vmatprep.mubr.f32.mxu0 0.0
    %4228 = vmatmul.mubr.f32.gmra.mxu0 %v4136
    %v4229 = vpop.f32.mrf.mxu0
    %v4230 = vadd.f32 0.0, %v4229
    %v4231 = vpop.f32.mrf.mxu0
    %4232 = vmatprep.mubr.f32.mxu0 0.0
    %4233 = vmatmul.mubr.f32.gmra.mxu0 %v4139
    %v4234 = vpop.f32.mrf.mxu0
    %v4235 = vadd.f32 0.0, %v4234
    %v4236 = vpop.f32.mrf.mxu0
    %4237 = vmatprep.mubr.f32.mxu0 0.0
    %4238 = vmatmul.mubr.f32.gmra.mxu0 %v4142
    %v4239 = vpop.f32.mrf.mxu0
    %v4240 = vadd.f32 0.0, %v4239
    %v4241 = vpop.f32.mrf.mxu0
    %4242 = vmatprep.mubr.f32.mxu0 0.0
    %4243 = vmatmul.mubr.f32.gmra.mxu0 %v4145
    %v4244 = vpop.f32.mrf.mxu0
    %v4245 = vadd.f32 0.0, %v4244
    %v4246 = vpop.f32.mrf.mxu0
    %4247 = vmatprep.mubr.f32.mxu0 0.0
    %4248 = vmatmul.mubr.f32.gmra.mxu0 %v4148
    %v4249 = vpop.f32.mrf.mxu0
    %v4250 = vadd.f32 0.0, %v4249
    %v4251 = vpop.f32.mrf.mxu0
    %4252 = vmatprep.mubr.f32.mxu0 0.0
    %4253 = vmatmul.mubr.f32.gmra.mxu0 %v4151
    %v4254 = vpop.f32.mrf.mxu0
    %v4255 = vadd.f32 0.0, %v4254
    %v4256 = vpop.f32.mrf.mxu0
    %4257 = vdwg.mxu0
    %v4258 = vadd.f32 %v4220, %v4230
    %v4259 = vadd.f32 %v4225, %v4235
    %v4260 = vadd.f32 %v4258, %v4240
    %v4261 = vadd.f32 %v4259, %v4245
    %v4262 = vadd.f32 %v4260, %v4250
    %v4263 = vadd.f32 %v4261, %v4255
    %v4265 = vlaneseq
    %v4266 = vshrl.u32 %v4265, 7
    %v4267 = vsub.s32 0, %v4266
    %v4268 = vrot.slane %v3795, %v4267
    %4269 = vrot.lane.b32.xlu0 %v3595, 32
    %v4270 = vpop.permute.xlu0 %4269
    %4271 = vrot.lane.b32.xlu0 %v3596, 32
    %v4272 = vpop.permute.xlu0 %4271
    %4273 = vrot.lane.b32.xlu0 %v3597, 32
    %v4274 = vpop.permute.xlu0 %4273
    %4275 = vrot.lane.b32.xlu0 %v3598, 32
    %v4276 = vpop.permute.xlu0 %4275
    %4281 = vrot.lane.b32.xlu0 %v4268, 96
    %v4282 = vpop.permute.xlu0 %4281
    %v4285 = vsel %vm1075, %v4262, 0
    %v4288 = vsel %vm1075, %v4263, 0
    %4290 = vmatprep.subr.mxu0 0.0
    %4291 = vmatpush1.msra.mxu0 0.0
    %4292 = vmatprep.subr.mxu0 0.0
    %4293 = vmatpush1.msra.mxu0 0.0
    %4294 = vmatprep.subr.mxu0 0.0
    %4295 = vmatpush1.msra.mxu0 0.0
    %4296 = vmatprep.subr.mxu0 0.0
    %4297 = vmatpush1.msra.mxu0 0.0
    %4298 = vmatprep.subr.mxu0 0.0
    %4299 = vmatpush1.msra.mxu0 0.0
    %4300 = vmatprep.subr.mxu0 0.0
    %4301 = vmatpush1.msra.mxu0 0.0
    %4302 = vmatprep.subr.mxu0 0.0
    %4303 = vmatpush1.msra.mxu0 0.0
    %4304 = vmatprep.subr.mxu0 0.0
    %4305 = vmatpush1.msra.mxu0 0.0
    %4306 = vmatprep.subr.mxu0 0.0
    %4307 = vmatpush1.msra.mxu0 0.0
    %4308 = vmatprep.subr.mxu0 0.0
    %4309 = vmatpush1.msra.mxu0 0.0
    %4310 = vmatprep.subr.mxu0 0.0
    %4311 = vmatpush1.msra.mxu0 0.0
    %4312 = vmatprep.subr.mxu0 0.0
    %4313 = vmatpush1.msra.mxu0 0.0
    %4314 = vmatprep.subr.mxu0 0.0
    %4315 = vmatpush1.msra.mxu0 %v4276
    %4316 = vmatprep.subr.mxu0 0.0
    %4317 = vmatpush1.msra.mxu0 %v4274
    %4318 = vmatprep.subr.mxu0 0.0
    %4319 = vmatpush1.msra.mxu0 %v4272
    %4320 = vmatprep.subr.mxu0 0.0
    %4321 = vmatpush1.msra.mxu0 %v4270
    %4322 = vmatprep.subr.mxu0 0.0
    %4323 = vmatpush2.msra.mxu0 0.0
    %4324 = vmatprep.subr.mxu0 0.0
    %4325 = vmatpush2.msra.mxu0 0.0
    %4326 = vmatprep.subr.mxu0 0.0
    %4327 = vmatpush2.msra.mxu0 0.0
    %4328 = vmatprep.subr.mxu0 0.0
    %4329 = vmatpush2.msra.mxu0 0.0
    %4330 = vmatprep.subr.mxu0 0.0
    %4331 = vmatpush2.msra.mxu0 0.0
    %4332 = vmatprep.subr.mxu0 0.0
    %4333 = vmatpush2.msra.mxu0 0.0
    %4334 = vmatprep.subr.mxu0 0.0
    %4335 = vmatpush2.msra.mxu0 0.0
    %4336 = vmatprep.subr.mxu0 0.0
    %4337 = vmatpush2.msra.mxu0 0.0
    %4338 = vmatprep.subr.mxu0 0.0
    %4339 = vmatpush2.msra.mxu0 0.0
    %4340 = vmatprep.subr.mxu0 0.0
    %4341 = vmatpush2.msra.mxu0 0.0
    %4342 = vmatprep.subr.mxu0 0.0
    %4343 = vmatpush2.msra.mxu0 0.0
    %4344 = vmatprep.subr.mxu0 0.0
    %4345 = vmatpush2.msra.mxu0 0.0
    %4346 = vmatprep.subr.mxu0 0.0
    %4347 = vmatpush2.msra.mxu0 0.0
    %4348 = vmatprep.subr.mxu0 0.0
    %4349 = vmatpush2.msra.mxu0 0.0
    %4350 = vmatprep.subr.mxu0 0.0
    %4351 = vmatpush2.msra.mxu0 0.0
    %4352 = vmatprep.subr.mxu0 0.0
    %4353 = vmatpush2.msra.mxu0 0.0
    %4354 = vmatprep.mubr.f32.mxu0 0.0
    %4355 = vmatmul.mubr.f32.gmra.mxu0 %v4285
    %v4356 = vpop.f32.mrf.mxu0
    %v4357 = vadd.f32 %v4282, %v4356
    %v4358 = vpop.f32.mrf.mxu0
    %4359 = vmatprep.mubr.f32.mxu0 0.0
    %4360 = vmatmul.mubr.f32.gmra.mxu0 %v4288
    %v4361 = vpop.f32.mrf.mxu0
    %v4362 = vadd.f32 %v4282, %v4361
    %v4363 = vpop.f32.mrf.mxu0
    %4364 = vdwg.mxu0
    %v4365 = vadd.f32 %v3593, %v4357
    %v4366 = vadd.f32 %v3594, %v4362
    %v4367 = vsel %vm1075, %v4365, 0.0
    %4368 = vadd.xlane.f32.xlu0 %v4367
    %v4369 = vpop.xlane.xlu0 %4368
    %v4370 = vsel %vm1075, %v4366, 0.0
    %4371 = vadd.xlane.f32.xlu0 %v4370
    %v4372 = vpop.xlane.xlu0 %4371
    %v4373 = vmul.f32 %v4369, %v1771
    %v4374 = vmul.f32 %v4372, %v1771
    %v4375 = vsub.f32 %v4365, %v4373
    %v4376 = vsub.f32 %v4366, %v4374
    %v4377 = vmul.f32 %v4375, %v4375
    %v4378 = vmul.f32 %v4376, %v4376
    %v4379 = vsel %vm1075, %v4377, 0.0
    %4380 = vadd.xlane.f32.xlu0 %v4379
    %v4381 = vpop.xlane.xlu0 %4380
    %v4382 = vsel %vm1075, %v4378, 0.0
    %4383 = vadd.xlane.f32.xlu0 %v4382
    %v4384 = vpop.xlane.xlu0 %4383
    %v4385 = vmul.f32 %v4381, %v1771
    %v4386 = vmul.f32 %v4384, %v1771
    %v4387 = vadd.f32 %v4385, 1e-05
    %v4388 = vadd.f32 %v4386, 1e-05
    %v4389 = vrsqrt.pop %v4387
    %v4390 = vrsqrt.pop %v4388
    %v4391 = vmul.f32 %v4375, %v4389
    %v4392 = vmul.f32 %v4376, %v4390
    %4393 = vrot.lane.b32.xlu0 %v4268, 64
    %v4394 = vpop.permute.xlu0 %4393
    %v4396 = vmul.f32 %v4391, %v4394
    %v4397 = vmul.f32 %v4392, %v4394
    %4398 = vrot.lane.b32.xlu0 %v4268, 32
    %v4399 = vpop.permute.xlu0 %4398
    %v4401 = vadd.f32 %v4396, %v4399
    %v4402 = vadd.f32 %v4397, %v4399
    %v4403 = vld [vmem:[%s2911 + $0x10] sm:$0xff]
    %v4404 = vld [vmem:[%s2911 + $0x28] sm:$0xff]
    %v4405 = vld [vmem:[%s2911 + $0x40] sm:$0xff]
    %v4406 = vld [vmem:[%s2911 + $0x58] sm:$0xff]
    %v4407 = vld [vmem:[%s2916 + $0x3] sm:$0x1]
    %v4409 = vlaneseq
    %v4410 = vshrl.u32 %v4409, 7
    %v4411 = vsub.s32 0, %v4410
    %v4412 = vrot.slane %v4407, %v4411
    %v4415 = vsel %vm1075, %v4401, 0
    %v4418 = vsel %vm1075, %v4402, 0
    %4420 = vmatprep.subr.mxu0 0.0
    %4421 = vmatpush1.msra.mxu0 0.0
    %4422 = vmatprep.subr.mxu0 0.0
    %4423 = vmatpush1.msra.mxu0 0.0
    %4424 = vmatprep.subr.mxu0 0.0
    %4425 = vmatpush1.msra.mxu0 0.0
    %4426 = vmatprep.subr.mxu0 0.0
    %4427 = vmatpush1.msra.mxu0 0.0
    %4428 = vmatprep.subr.mxu0 0.0
    %4429 = vmatpush1.msra.mxu0 0.0
    %4430 = vmatprep.subr.mxu0 0.0
    %4431 = vmatpush1.msra.mxu0 0.0
    %4432 = vmatprep.subr.mxu0 0.0
    %4433 = vmatpush1.msra.mxu0 0.0
    %4434 = vmatprep.subr.mxu0 0.0
    %4435 = vmatpush1.msra.mxu0 0.0
    %4436 = vmatprep.subr.mxu0 0.0
    %4437 = vmatpush1.msra.mxu0 0.0
    %4438 = vmatprep.subr.mxu0 0.0
    %4439 = vmatpush1.msra.mxu0 0.0
    %4440 = vmatprep.subr.mxu0 0.0
    %4441 = vmatpush1.msra.mxu0 0.0
    %4442 = vmatprep.subr.mxu0 0.0
    %4443 = vmatpush1.msra.mxu0 0.0
    %4444 = vmatprep.subr.mxu0 0.0
    %4445 = vmatpush1.msra.mxu0 %v4406
    %4446 = vmatprep.subr.mxu0 0.0
    %4447 = vmatpush1.msra.mxu0 %v4405
    %4448 = vmatprep.subr.mxu0 0.0
    %4449 = vmatpush1.msra.mxu0 %v4404
    %4450 = vmatprep.subr.mxu0 0.0
    %4451 = vmatpush1.msra.mxu0 %v4403
    %4452 = vmatprep.subr.mxu0 0.0
    %4453 = vmatpush2.msra.mxu0 0.0
    %4454 = vmatprep.subr.mxu0 0.0
    %4455 = vmatpush2.msra.mxu0 0.0
    %4456 = vmatprep.subr.mxu0 0.0
    %4457 = vmatpush2.msra.mxu0 0.0
    %4458 = vmatprep.subr.mxu0 0.0
    %4459 = vmatpush2.msra.mxu0 0.0
    %4460 = vmatprep.subr.mxu0 0.0
    %4461 = vmatpush2.msra.mxu0 0.0
    %4462 = vmatprep.subr.mxu0 0.0
    %4463 = vmatpush2.msra.mxu0 0.0
    %4464 = vmatprep.subr.mxu0 0.0
    %4465 = vmatpush2.msra.mxu0 0.0
    %4466 = vmatprep.subr.mxu0 0.0
    %4467 = vmatpush2.msra.mxu0 0.0
    %4468 = vmatprep.subr.mxu0 0.0
    %4469 = vmatpush2.msra.mxu0 0.0
    %4470 = vmatprep.subr.mxu0 0.0
    %4471 = vmatpush2.msra.mxu0 0.0
    %4472 = vmatprep.subr.mxu0 0.0
    %4473 = vmatpush2.msra.mxu0 0.0
    %4474 = vmatprep.subr.mxu0 0.0
    %4475 = vmatpush2.msra.mxu0 0.0
    %4476 = vmatprep.subr.mxu0 0.0
    %4477 = vmatpush2.msra.mxu0 0.0
    %4478 = vmatprep.subr.mxu0 0.0
    %4479 = vmatpush2.msra.mxu0 0.0
    %4480 = vmatprep.subr.mxu0 0.0
    %4481 = vmatpush2.msra.mxu0 0.0
    %4482 = vmatprep.subr.mxu0 0.0
    %4483 = vmatpush2.msra.mxu0 0.0
    %4484 = vmatprep.mubr.f32.mxu0 0.0
    %4485 = vmatmul.mubr.f32.gmra.mxu0 %v4415
    %v4486 = vpop.f32.mrf.mxu0
    %v4487 = vadd.f32 %v4412, %v4486
    %v4488 = vpop.f32.mrf.mxu0
    %4489 = vmatprep.mubr.f32.mxu0 0.0
    %4490 = vmatmul.mubr.f32.gmra.mxu0 %v4418
    %v4491 = vpop.f32.mrf.mxu0
    %v4492 = vadd.f32 %v4412, %v4491
    %v4493 = vpop.f32.mrf.mxu0
    %4494 = vdwg.mxu0
    %v4495 = vmax.f32 %v4487, 0.0
    %v4496 = vmax.f32 %v4492, 0.0
    %4501 = vrot.lane.b32.xlu0 %v4403, 64
    %v4502 = vpop.permute.xlu0 %4501
    %4503 = vrot.lane.b32.xlu0 %v4404, 64
    %v4504 = vpop.permute.xlu0 %4503
    %4505 = vrot.lane.b32.xlu0 %v4405, 64
    %v4506 = vpop.permute.xlu0 %4505
    %4507 = vrot.lane.b32.xlu0 %v4406, 64
    %v4508 = vpop.permute.xlu0 %4507
    %4509 = vrot.lane.b32.xlu0 %v4412, 64
    %v4510 = vpop.permute.xlu0 %4509
    %v4513 = vsel %vm1406, %v4495, 0
    %v4516 = vsel %vm1406, %v4496, 0
    %v4518 = vsel %vm1406, %v4502, 0
    %v4520 = vsel %vm1406, %v4504, 0
    %v4522 = vsel %vm1406, %v4506, 0
    %v4524 = vsel %vm1406, %v4508, 0
    %4526 = vmatprep.subr.mxu0 0.0
    %4527 = vmatpush1.xpose.msra.mxu0 0.0
    %4528 = vmatprep.subr.mxu0 0.0
    %4529 = vmatpush1.xpose.msra.mxu0 0.0
    %4530 = vmatprep.subr.mxu0 0.0
    %4531 = vmatpush1.xpose.msra.mxu0 0.0
    %4532 = vmatprep.subr.mxu0 0.0
    %4533 = vmatpush1.xpose.msra.mxu0 0.0
    %4534 = vmatprep.subr.mxu0 0.0
    %4535 = vmatpush1.xpose.msra.mxu0 0.0
    %4536 = vmatprep.subr.mxu0 0.0
    %4537 = vmatpush1.xpose.msra.mxu0 0.0
    %4538 = vmatprep.subr.mxu0 0.0
    %4539 = vmatpush1.xpose.msra.mxu0 0.0
    %4540 = vmatprep.subr.mxu0 0.0
    %4541 = vmatpush1.xpose.msra.mxu0 0.0
    %4542 = vmatprep.subr.mxu0 0.0
    %4543 = vmatpush1.xpose.msra.mxu0 0.0
    %4544 = vmatprep.subr.mxu0 0.0
    %4545 = vmatpush1.xpose.msra.mxu0 0.0
    %4546 = vmatprep.subr.mxu0 0.0
    %4547 = vmatpush1.xpose.msra.mxu0 0.0
    %4548 = vmatprep.subr.mxu0 0.0
    %4549 = vmatpush1.xpose.msra.mxu0 0.0
    %4550 = vmatprep.subr.mxu0 0.0
    %4551 = vmatpush1.xpose.msra.mxu0 %v4524
    %4552 = vmatprep.subr.mxu0 0.0
    %4553 = vmatpush1.xpose.msra.mxu0 %v4522
    %4554 = vmatprep.subr.mxu0 0.0
    %4555 = vmatpush1.xpose.msra.mxu0 %v4520
    %4556 = vmatprep.subr.mxu0 0.0
    %4557 = vmatpush1.xpose.msra.mxu0 %v4518
    %4558 = vmatprep.subr.mxu0 0.0
    %4559 = vmatpush2.xpose.msra.mxu0 0.0
    %4560 = vmatprep.subr.mxu0 0.0
    %4561 = vmatpush2.xpose.msra.mxu0 0.0
    %4562 = vmatprep.subr.mxu0 0.0
    %4563 = vmatpush2.xpose.msra.mxu0 0.0
    %4564 = vmatprep.subr.mxu0 0.0
    %4565 = vmatpush2.xpose.msra.mxu0 0.0
    %4566 = vmatprep.subr.mxu0 0.0
    %4567 = vmatpush2.xpose.msra.mxu0 0.0
    %4568 = vmatprep.subr.mxu0 0.0
    %4569 = vmatpush2.xpose.msra.mxu0 0.0
    %4570 = vmatprep.subr.mxu0 0.0
    %4571 = vmatpush2.xpose.msra.mxu0 0.0
    %4572 = vmatprep.subr.mxu0 0.0
    %4573 = vmatpush2.xpose.msra.mxu0 0.0
    %4574 = vmatprep.subr.mxu0 0.0
    %4575 = vmatpush2.xpose.msra.mxu0 0.0
    %4576 = vmatprep.subr.mxu0 0.0
    %4577 = vmatpush2.xpose.msra.mxu0 0.0
    %4578 = vmatprep.subr.mxu0 0.0
    %4579 = vmatpush2.xpose.msra.mxu0 0.0
    %4580 = vmatprep.subr.mxu0 0.0
    %4581 = vmatpush2.xpose.msra.mxu0 0.0
    %4582 = vmatprep.subr.mxu0 0.0
    %4583 = vmatpush2.xpose.msra.mxu0 0.0
    %4584 = vmatprep.subr.mxu0 0.0
    %4585 = vmatpush2.xpose.msra.mxu0 0.0
    %4586 = vmatprep.subr.mxu0 0.0
    %4587 = vmatpush2.xpose.msra.mxu0 0.0
    %4588 = vmatprep.subr.mxu0 0.0
    %4589 = vmatpush2.xpose.msra.mxu0 0.0
    %4590 = vmatprep.mubr.f32.mxu0 0.0
    %4591 = vmatmul.mubr.f32.gmra.mxu0 %v4513
    %v4592 = vpop.f32.mrf.mxu0
    %v4593 = vadd.f32 %v4510, %v4592
    %v4594 = vpop.f32.mrf.mxu0
    %4595 = vmatprep.mubr.f32.mxu0 0.0
    %4596 = vmatmul.mubr.f32.gmra.mxu0 %v4516
    %v4597 = vpop.f32.mrf.mxu0
    %v4598 = vadd.f32 %v4510, %v4597
    %v4599 = vpop.f32.mrf.mxu0
    %4600 = vdwg.mxu0
    %v4601 = vadd.f32 %v4401, %v4593
    %v4602 = vadd.f32 %v4402, %v4598
    %v4603 = vld [vmem:[%s2916 + $0x4] sm:$0x1]
    %v4604 = vsel %vm1075, %v4601, 0.0
    %4605 = vadd.xlane.f32.xlu0 %v4604
    %v4606 = vpop.xlane.xlu0 %4605
    %v4607 = vsel %vm1075, %v4602, 0.0
    %4608 = vadd.xlane.f32.xlu0 %v4607
    %v4609 = vpop.xlane.xlu0 %4608
    %v4610 = vmul.f32 %v4606, %v1771
    %v4611 = vmul.f32 %v4609, %v1771
    %v4612 = vsub.f32 %v4601, %v4610
    %v4613 = vsub.f32 %v4602, %v4611
    %v4614 = vmul.f32 %v4612, %v4612
    %v4615 = vmul.f32 %v4613, %v4613
    %v4616 = vsel %vm1075, %v4614, 0.0
    %4617 = vadd.xlane.f32.xlu0 %v4616
    %v4618 = vpop.xlane.xlu0 %4617
    %v4619 = vsel %vm1075, %v4615, 0.0
    %4620 = vadd.xlane.f32.xlu0 %v4619
    %v4621 = vpop.xlane.xlu0 %4620
    %v4622 = vmul.f32 %v4618, %v1771
    %v4623 = vmul.f32 %v4621, %v1771
    %v4624 = vadd.f32 %v4622, 1e-05
    %v4625 = vadd.f32 %v4623, 1e-05
    %v4626 = vrsqrt.pop %v4624
    %v4627 = vrsqrt.pop %v4625
    %v4628 = vmul.f32 %v4612, %v4626
    %v4629 = vmul.f32 %v4613, %v4627
    %4630 = vrot.lane.b32.xlu0 %v4412, 32
    %v4631 = vpop.permute.xlu0 %4630
    %v4633 = vmul.f32 %v4628, %v4631
    %v4634 = vmul.f32 %v4629, %v4631
    %v4636 = vlaneseq
    %v4637 = vshrl.u32 %v4636, 7
    %v4638 = vsub.s32 0, %v4637
    %v4639 = vrot.slane %v4603, %v4638
    %v4641 = vadd.f32 %v4633, %v4639
    %v4642 = vadd.f32 %v4634, %v4639
    %s4643 = scalar_lea.vmem [#allocation8], 10
    %v4644 = vld [vmem:[%s4643] sm:$0x1]
    %v4645 = vsel %vm1075, %v4641, 0.0
    %4646 = vadd.xlane.f32.xlu0 %v4645
    %v4647 = vpop.xlane.xlu0 %4646
    %v4648 = vsel %vm1075, %v4642, 0.0
    %4649 = vadd.xlane.f32.xlu0 %v4648
    %v4650 = vpop.xlane.xlu0 %4649
    %v4651 = vmul.f32 %v4647, %v1771
    %v4652 = vmul.f32 %v4650, %v1771
    %v4653 = vsub.f32 %v4641, %v4651
    %v4654 = vsub.f32 %v4642, %v4652
    %v4655 = vmul.f32 %v4653, %v4653
    %v4656 = vmul.f32 %v4654, %v4654
    %v4657 = vsel %vm1075, %v4655, 0.0
    %4658 = vadd.xlane.f32.xlu0 %v4657
    %v4659 = vpop.xlane.xlu0 %4658
    %v4660 = vsel %vm1075, %v4656, 0.0
    %4661 = vadd.xlane.f32.xlu0 %v4660
    %v4662 = vpop.xlane.xlu0 %4661
    %v4663 = vmul.f32 %v4659, %v1771
    %v4664 = vmul.f32 %v4662, %v1771
    %v4665 = vadd.f32 %v4663, 1e-05
    %v4666 = vadd.f32 %v4664, 1e-05
    %v4667 = vrsqrt.pop %v4665
    %v4668 = vrsqrt.pop %v4666
    %v4669 = vmul.f32 %v4653, %v4667
    %v4670 = vmul.f32 %v4654, %v4668
    %v4672 = vlaneseq
    %v4673 = vshrl.u32 %v4672, 7
    %v4674 = vsub.s32 0, %v4673
    %v4675 = vrot.slane %v4644, %v4674
    %v4677 = vmul.f32 %v4669, %v4675
    %v4678 = vmul.f32 %v4670, %v4675
    %4679 = vrot.lane.b32.xlu0 %v4675, 96
    %v4680 = vpop.permute.xlu0 %4679
    %v4682 = vadd.f32 %v4677, %v4680
    %v4683 = vadd.f32 %v4678, %v4680
    %4684 = vst.msk [vmem:[#allocation10] sm:$0xff] %vm1075, %v4682
    %4685 = vst.msk [vmem:[#allocation10 + $0x8] sm:$0xff] %vm1075, %v4683
    // Predicated region
    $region34: #{tpu_custom_call.1} parent=1 // pred_check
      _
    $region35: #{tpu_custom_call.1} parent=1 // pred_check_branch
      %4687 = sbr.rel (0) target = $region37
    $region36: #{tpu_custom_call.1} parent=1 // pred_region
      %s4689 = ssub.s32 256, 256
      %4690 = vsyncadd [#allocation4], %s4689
      %s4691 = sshll.u32 [#allocation10], 4
      %s4692 = int_to_ptr.vmem [resolvable:$true] %s4691
      %4697 = dma.vmem_to_hbm [thread:$0]  %s4692, 256, %s4, [#allocation4], 128, 128, 8
    $region37: #{tpu_custom_call.1} parent=1 // pred_fallthru
      _
    // Predicated region
    $region38: #{tpu_custom_call.1} parent=1 // pred_check
      _
    $region39: #{tpu_custom_call.1} parent=1 // pred_check_branch
      %4699 = sbr.rel (0) target = $region41
    $region40: #{tpu_custom_call.1} parent=1 // pred_region
      %4700 = dma.done [#allocation4], 256
    $region41: #{tpu_custom_call.1} parent=1 // pred_fallthru
      _
    %4701 = vsyncpa [#allocation3], 1
    %4702 = vsyncpa [#allocation6], 1
    %4703 = vsyncpa [#allocation9], 1
    %4704 = vsyncpa [#allocation4], 1

</llo_original>
